<compile_context>
chip_gen: v5e
topology: v5e:2x2
jax: 0.10.0
libtpu: 0.0.40
codegen_flags: <defaults>
</compile_context>

<pallas_src>
import jax
import jax.numpy as jnp
from jax.experimental import pallas as pl
from jax.experimental.pallas import tpu as pltpu

IN_FEATURES = 10
OUT_FEATURES = 1
GROUP = 128           # batch elements packed per reshaped row (=> 1280 dense lanes)
MAX_ROW_TILE = 1024   # 1024 rows * 128 = 131072 batch elements / grid step (~12.5 MiB VMEM)


def _round_up(n: int, m: int) -> int:
    return ((n + m - 1) // m) * m


def linear_kernel(x_ref, w_ref, b_ref, o_ref):
    # x_ref: (row_tile, 1280) f32 VMEM — 128 batch elements x 10 features per row.
    # w_ref: (1280, 128) f32 VMEM block-diagonal weight (constant index_map -> resident).
    # b_ref: (1,) f32 SMEM scalar bias.
    # o_ref: (row_tile, 128) f32 VMEM — lane-dense output block.
    acc = jnp.dot(
        x_ref[...], w_ref[...],
        preferred_element_type=jnp.float32,
        precision=jax.lax.Precision.HIGHEST,   # exact f32 contraction (no bf16 rounding)
    )
    # Fold the bias into the single store pass (one VALU add + cast + vst).
    o_ref[...] = (acc + b_ref[0]).astype(o_ref.dtype)


def linear_forward(x, w, b, *, max_row_tile=MAX_ROW_TILE):
    """x: (B, 10), w: (1, 10) (PyTorch layout), b: (1,) -> (B, 1) float32."""
    B, in_features = x.shape
    assert in_features == IN_FEATURES
    assert w.shape == (OUT_FEATURES, IN_FEATURES)
    assert max_row_tile % 8 == 0

    if x.dtype != jnp.float32:
        # TODO(synk): for narrow inputs (e.g. bf16) DMA the narrow dtype and upcast in-kernel
        # instead of upcasting in HBM here.
        x = x.astype(jnp.float32)
    w_vec = w.reshape(IN_FEATURES).astype(jnp.float32)
    b_vec = b.reshape(OUT_FEATURES).astype(jnp.float32)

    # Pack GROUP=128 batch rows per reshaped row -> fully lane-dense layout with NO
    # transpose: a contiguous reshape of the row-major (B, 10) array is free.
    padded_b = _round_up(B, GROUP)
    if padded_b != B:
        # Only ragged batches pay this copy; supply B % 128 == 0 to hit the zero-copy path.
        x = jnp.pad(x, ((0, padded_b - B), (0, 0)))
    rows = padded_b // GROUP
    x_packed = x.reshape(rows, GROUP * IN_FEATURES)          # (rows, 1280), free reshape

    # Row-tile selection: as large as VMEM comfortably allows; split evenly so large
    # batches get several pipelined grid steps (and the v7x 2-TC "parallel" split).
    if rows <= max_row_tile:
        row_tile = rows                                      # block == full dim (always legal)
    else:
        num_tiles = pl.cdiv(rows, max_row_tile)
        row_tile = _round_up(pl.cdiv(rows, num_tiles), 8)    # multiple of 8, <= max_row_tile
    grid = (pl.cdiv(rows, row_tile),)                        # last block may be partial; OOB writes dropped

    # Block-diagonal weight: W_blk[j*10 + k, j] = w[k].  x_packed @ W_blk computes, for
    # every packed row, the 128 per-batch-element dot products in one MXU pass.
    w_blk = (jnp.eye(GROUP, dtype=jnp.float32)[:, None, :]
             * w_vec[None, :, None]).reshape(GROUP * IN_FEATURES, GROUP)

    out_packed = pl.pallas_call(
        linear_kernel,
        out_shape=jax.ShapeDtypeStruct((rows, GROUP), jnp.float32),
        grid_spec=pltpu.PrefetchScalarGridSpec(
            num_scalar_prefetch=0,
            grid=grid,
            in_specs=[
                # (row_tile, 1280) lane-dense input block: one big contiguous HBM read / step.
                pl.BlockSpec((row_tile, GROUP * IN_FEATURES), lambda i: (i, 0)),
                # Block-diagonal weight: constant block index -> fetched once, stays resident.
                pl.BlockSpec((GROUP * IN_FEATURES, GROUP), lambda i: (0, 0)),
                # Bias as an SMEM scalar (no padded VMEM tile).
                pl.BlockSpec(memory_space=pltpu.MemorySpace.SMEM),
            ],
            # Lane-dense (row_tile, 128) output block: unmasked stores, contiguous write-back.
            out_specs=pl.BlockSpec((row_tile, GROUP), lambda i: (i, 0)),
        ),
        compiler_params=pltpu.CompilerParams(
            dimension_semantics=("parallel",),   # split batch tiles across TCs on v7x
        ),
        cost_estimate=pl.CostEstimate(
            flops=2 * IN_FEATURES * padded_b + padded_b,
            transcendentals=0,
            bytes_accessed=4 * (IN_FEATURES + 1) * padded_b
                           + 4 * GROUP * IN_FEATURES * GROUP,
        ),
    )(x_packed, w_blk, b_vec)

    # (rows, 128) -> (padded_b, 1) is another free contiguous reshape; drop pad rows.
    return out_packed.reshape(padded_b, OUT_FEATURES)[:B]


if __name__ == "__main__":
    key = jax.random.PRNGKey(0)
    kx, kw, kb = jax.random.split(key, 3)

    # Deterministic nn.Linear(10, 1)-style params (PyTorch (out, in) weight layout).
    bound = 1.0 / (IN_FEATURES ** 0.5)
    w = jax.random.uniform(kw, (OUT_FEATURES, IN_FEATURES),
                           minval=-bound, maxval=bound, dtype=jnp.float32)
    b = jax.random.uniform(kb, (OUT_FEATURES,),
                           minval=-bound, maxval=bound, dtype=jnp.float32)

    def ref_linear(xx):
        # Pure elementwise/reduce f32 reference (no matmul-precision ambiguity).
        return jnp.sum(xx * w.reshape(1, IN_FEATURES), axis=1, keepdims=True) + b.reshape(1, 1)

    # 1) Small batch, matching the PyTorch demo scale.
    B = 8
    x = jax.random.normal(kx, (B, IN_FEATURES), dtype=jnp.float32)
    out = jax.block_until_ready(linear_forward(x, w, b))
    assert out.shape == (B, OUT_FEATURES)
    assert jnp.allclose(out, ref_linear(x), atol=1e-4, rtol=1e-4)

    # 2) Ragged batch (exercises the pad-to-128 path).
    B2 = 600
    x2 = jax.random.normal(kx, (B2, IN_FEATURES), dtype=jnp.float32)
    out2 = jax.block_until_ready(linear_forward(x2, w, b))
    assert out2.shape == (B2, OUT_FEATURES)
    assert jnp.allclose(out2, ref_linear(x2), atol=1e-4, rtol=1e-4)

    # 3) Multi-step grid including a partial last block (tiny max_row_tile just for the
    #    test; production uses MAX_ROW_TILE=1024 rows = 131072 batch elements / step).
    B3 = 1280   # 10 packed rows, row_tile=8 -> grid=2 with a partial last block
    x3 = jax.random.normal(kx, (B3, IN_FEATURES), dtype=jnp.float32)
    out3 = jax.block_until_ready(linear_forward(x3, w, b, max_row_tile=8))
    assert out3.shape == (B3, OUT_FEATURES)
    assert jnp.allclose(out3, ref_linear(x3), atol=1e-4, rtol=1e-4)

    print("KERNEL_OK")
</pallas_src>

<mosaic_0001>
module attributes {stable_mosaic.version = 11 : i64} {
  func.func @linear_kernel(%arg0: i32, %arg1: memref<1x1280xf32, #tpu.memory_space<vmem>>, %arg2: memref<1280x128xf32, #tpu.memory_space<vmem>>, %arg3: memref<1xf32, #tpu.memory_space<smem>>, %arg4: memref<1x128xf32, #tpu.memory_space<vmem>>) attributes {dimension_semantics = [#tpu.dimension_semantics<parallel>], iteration_bounds = array<i64: 1>, scalar_prefetch = 0 : i64, scratch_operands = 0 : i64, tpu.core_type = #tpu.core_type<tc>, window_params = [{transform_indices = @transform_0, window_bounds = array<i64: 1, 1280>}, {pipeline_mode = #tpu.pipeline_mode<synchronous>, transform_indices = @transform_1, window_bounds = array<i64: 1280, 128>}, {transform_indices = @transform_2, window_bounds = array<i64: 1>}, {transform_indices = @transform_3, window_bounds = array<i64: 1, 128>}]} {
    %c0 = arith.constant 0 : index
    %c0_0 = arith.constant 0 : index
    %0 = vector.load %arg1[%c0, %c0_0] : memref<1x1280xf32, #tpu.memory_space<vmem>>, vector<1x1280xf32>
    %c0_1 = arith.constant 0 : index
    %c0_2 = arith.constant 0 : index
    %1 = vector.load %arg2[%c0_1, %c0_2] : memref<1280x128xf32, #tpu.memory_space<vmem>>, vector<1280x128xf32>
    %cst = arith.constant dense<0.000000e+00> : vector<1x128xf32>
    %2 = tpu.matmul %0, %1, %cst {dimension_numbers = #tpu.dot_dimension_numbers<[1], [0], [0], [1], [0, 0, 1, 1], [], []>, precision = #tpu.contract_precision<fp32>} : vector<1x1280xf32>, vector<1280x128xf32>, vector<1x128xf32> -> vector<1x128xf32>
    %c0_3 = arith.constant 0 : index
    %3 = memref.load %arg3[%c0_3] : memref<1xf32, #tpu.memory_space<smem>>
    %4 = vector.broadcast %3 : f32 to vector<1x128xf32>
    %5 = arith.addf %2, %4 : vector<1x128xf32>
    %c0_4 = arith.constant 0 : index
    %c0_5 = arith.constant 0 : index
    %6 = vector.load %arg4[%c0_4, %c0_5] : memref<1x128xf32, #tpu.memory_space<vmem>>, vector<1x128xf32>
    tpu.vector_store %arg4[%c0_4, %c0_5], %5 {strides = array<i32>} : memref<1x128xf32, #tpu.memory_space<vmem>>, vector<1x128xf32>,
    return
  }
  func.func @transform_0(%arg0: i32) -> (i32, i32) {
    %c0_i32 = arith.constant 0 : i32
    %c0_i32_0 = arith.constant 0 : i32
    return %arg0, %c0_i32 : i32, i32
  }
  func.func @transform_1(%arg0: i32) -> (i32, i32) {
    %c0_i32 = arith.constant 0 : i32
    %c0_i32_0 = arith.constant 0 : i32
    %c0_i32_1 = arith.constant 0 : i32
    return %c0_i32, %c0_i32_0 : i32, i32
  }
  func.func @transform_2(%arg0: i32) -> i32 {
    %c0_i32 = arith.constant 0 : i32
    %c0_i32_0 = arith.constant 0 : i32
    return %c0_i32 : i32
  }
  func.func @transform_3(%arg0: i32) -> (i32, i32) {
    %c0_i32 = arith.constant 0 : i32
    %c0_i32_0 = arith.constant 0 : i32
    return %arg0, %c0_i32 : i32, i32
  }
}

</mosaic_0001>

<llo_original>
// kernel: tpu_custom_call.1
$region0: #{tpu_custom_call.1}
  #allocation0 [shape = 'u32[]', space=smem, size = 0x4, offset = 0x4, fixed_abs, tag = 'smem constant byte address 0x4 - core index']
  #allocation1 [shape = 'u32[72,128]{1,0:T(1,128)}', space=vmem, size = 0x9000, scoped, tag = 'internal scratch']
  #allocation2 [shape = 'f32[1]{0:T(128)S(6)}', space=smem, size = 0x200, scoped, tag = 'scoped memory for tpu_custom_call.1']
  %s0 = inlined_call_operand.hbm [shape: f32[1,1280], index: 0, kind: input, shape index: {}]
  %s1 = inlined_call_operand.hbm [shape: f32[1280,128], index: 1, kind: input, shape index: {}]
  %s2 = inlined_call_operand.<no memory space> [shape: f32[1], index: 2, kind: input, shape index: {}]
  %s3 = inlined_call_operand.hbm [shape: f32[1,128], index: 3, kind: output, shape index: {}]
  %s4 = sld [smem:[#allocation0]]
  $region30: #{tpu_custom_call.1} parent=0
    _
  %s6 = ssub.s32 1, %s4
  %s7 = scalar_select 0, %s6, %s4
  %8 = sst [smem:[#allocation2]] %s2
  $region1: #{tpu_custom_call.1} parent=0
    #allocation3 [shape = 'u8[5120]{0}', space=vmem, size = 0x1400, scoped, tag = 'input window, operand 0, single buffered']
    #allocation4 [shape = 's32[1]{0}', space=sflag, size = 0x4, scoped, tag = 'scoped memory for tpu_custom_call.1']
    #allocation5 [shape = 's32[1]{0}', space=sflag, size = 0x4, scoped, tag = 'scoped memory for tpu_custom_call.1']
    #allocation6 [shape = 'u8[655360]{0}', space=vmem, size = 0xa0000, scoped, tag = 'input window, operand 1, single buffered']
    #allocation7 [shape = 's32[1]{0}', space=sflag, size = 0x4, scoped, tag = 'scoped memory for tpu_custom_call.1']
    #allocation8 [shape = 'u8[512]{0}', space=vmem, size = 0x400, scoped, tag = 'output window, operand 0, single buffered']
    %9 = vsyncpa [#allocation4], 0
    %10 = vsyncpa [#allocation7], 0
    %11 = vsyncpa [#allocation5], 0
    // Predicated region
    $region2: #{tpu_custom_call.1} parent=1 // pred_check
      _
    $region3: #{tpu_custom_call.1} parent=1 // pred_check_branch
      %13 = sbr.rel (0) target = $region5
    $region4: #{tpu_custom_call.1} parent=1 // pred_region
      %15 = vsyncadd [#allocation4], 0
      %s17 = sshll.u32 %s0, 4
      %s18 = int_to_ptr.hbm [resolvable:$true] %s17
      %s19 = sshll.u32 [#allocation3], 4
      %s20 = int_to_ptr.vmem [resolvable:$true] %s19
      %22 = dma.hbm_to_vmem [thread:$0]  %s18, 160, %s20, [#allocation4]
    $region5: #{tpu_custom_call.1} parent=1 // pred_fallthru
      _
    // Predicated region
    $region6: #{tpu_custom_call.1} parent=1 // pred_check
      _
    $region7: #{tpu_custom_call.1} parent=1 // pred_check_branch
      %24 = sbr.rel (0) target = $region9
    $region8: #{tpu_custom_call.1} parent=1 // pred_region
      %26 = vsyncadd [#allocation7], 0
      %s27 = sshll.u32 %s1, 4
      %s28 = int_to_ptr.hbm [resolvable:$true] %s27
      %s29 = sshll.u32 [#allocation6], 4
      %s30 = int_to_ptr.vmem [resolvable:$true] %s29
      %35 = dma.hbm_to_vmem [thread:$0]  %s28, 20480, %s30, [#allocation7], 128, 128, 8
    $region9: #{tpu_custom_call.1} parent=1 // pred_fallthru
      _
    // Predicated region
    $region10: #{tpu_custom_call.1} parent=1 // pred_check
      _
    $region11: #{tpu_custom_call.1} parent=1 // pred_check_branch
      %37 = sbr.rel (0) target = $region13
    $region12: #{tpu_custom_call.1} parent=1 // pred_region
      _
    $region13: #{tpu_custom_call.1} parent=1 // pred_fallthru
      _
    // Predicated region
    $region14: #{tpu_custom_call.1} parent=1 // pred_check
      _
    $region15: #{tpu_custom_call.1} parent=1 // pred_check_branch
      %39 = sbr.rel (0) target = $region17
    $region16: #{tpu_custom_call.1} parent=1 // pred_region
      %41 = dma.done [#allocation4], 160
    $region17: #{tpu_custom_call.1} parent=1 // pred_fallthru
      _
    // Predicated region
    $region18: #{tpu_custom_call.1} parent=1 // pred_check
      _
    $region19: #{tpu_custom_call.1} parent=1 // pred_check_branch
      %43 = sbr.rel (0) target = $region21
    $region20: #{tpu_custom_call.1} parent=1 // pred_region
      %45 = dma.done [#allocation7], 20480
    $region21: #{tpu_custom_call.1} parent=1 // pred_fallthru
      _
    %v46 = vld [vmem:[#allocation3] sm:$0xff]
    %v47 = vld [vmem:[#allocation3 + $0x8] sm:$0x3]
    %v48 = vld [vmem:[#allocation6] sm:$0xff]
    %v49 = vld [vmem:[#allocation6 + $0x8] sm:$0xff]
    %v50 = vld [vmem:[#allocation6 + $0x10] sm:$0xff]
    %v51 = vld [vmem:[#allocation6 + $0x18] sm:$0xff]
    %v52 = vld [vmem:[#allocation6 + $0x20] sm:$0xff]
    %v53 = vld [vmem:[#allocation6 + $0x28] sm:$0xff]
    %v54 = vld [vmem:[#allocation6 + $0x30] sm:$0xff]
    %v55 = vld [vmem:[#allocation6 + $0x38] sm:$0xff]
    %v56 = vld [vmem:[#allocation6 + $0x40] sm:$0xff]
    %v57 = vld [vmem:[#allocation6 + $0x48] sm:$0xff]
    %v58 = vld [vmem:[#allocation6 + $0x50] sm:$0xff]
    %v59 = vld [vmem:[#allocation6 + $0x58] sm:$0xff]
    %v60 = vld [vmem:[#allocation6 + $0x60] sm:$0xff]
    %v61 = vld [vmem:[#allocation6 + $0x68] sm:$0xff]
    %v62 = vld [vmem:[#allocation6 + $0x70] sm:$0xff]
    %v63 = vld [vmem:[#allocation6 + $0x78] sm:$0xff]
    %v64 = vld [vmem:[#allocation6 + $0x80] sm:$0xff]
    %v65 = vld [vmem:[#allocation6 + $0x88] sm:$0xff]
    %v66 = vld [vmem:[#allocation6 + $0x90] sm:$0xff]
    %v67 = vld [vmem:[#allocation6 + $0x98] sm:$0xff]
    %v68 = vld [vmem:[#allocation6 + $0xa0] sm:$0xff]
    %v69 = vld [vmem:[#allocation6 + $0xa8] sm:$0xff]
    %v70 = vld [vmem:[#allocation6 + $0xb0] sm:$0xff]
    %v71 = vld [vmem:[#allocation6 + $0xb8] sm:$0xff]
    %v72 = vld [vmem:[#allocation6 + $0xc0] sm:$0xff]
    %v73 = vld [vmem:[#allocation6 + $0xc8] sm:$0xff]
    %v74 = vld [vmem:[#allocation6 + $0xd0] sm:$0xff]
    %v75 = vld [vmem:[#allocation6 + $0xd8] sm:$0xff]
    %v76 = vld [vmem:[#allocation6 + $0xe0] sm:$0xff]
    %v77 = vld [vmem:[#allocation6 + $0xe8] sm:$0xff]
    %v78 = vld [vmem:[#allocation6 + $0xf0] sm:$0xff]
    %v79 = vld [vmem:[#allocation6 + $0xf8] sm:$0xff]
    %v80 = vld [vmem:[#allocation6 + $0x100] sm:$0xff]
    %v81 = vld [vmem:[#allocation6 + $0x108] sm:$0xff]
    %v82 = vld [vmem:[#allocation6 + $0x110] sm:$0xff]
    %v83 = vld [vmem:[#allocation6 + $0x118] sm:$0xff]
    %v84 = vld [vmem:[#allocation6 + $0x120] sm:$0xff]
    %v85 = vld [vmem:[#allocation6 + $0x128] sm:$0xff]
    %v86 = vld [vmem:[#allocation6 + $0x130] sm:$0xff]
    %v87 = vld [vmem:[#allocation6 + $0x138] sm:$0xff]
    %v88 = vld [vmem:[#allocation6 + $0x140] sm:$0xff]
    %v89 = vld [vmem:[#allocation6 + $0x148] sm:$0xff]
    %v90 = vld [vmem:[#allocation6 + $0x150] sm:$0xff]
    %v91 = vld [vmem:[#allocation6 + $0x158] sm:$0xff]
    %v92 = vld [vmem:[#allocation6 + $0x160] sm:$0xff]
    %v93 = vld [vmem:[#allocation6 + $0x168] sm:$0xff]
    %v94 = vld [vmem:[#allocation6 + $0x170] sm:$0xff]
    %v95 = vld [vmem:[#allocation6 + $0x178] sm:$0xff]
    %v96 = vld [vmem:[#allocation6 + $0x180] sm:$0xff]
    %v97 = vld [vmem:[#allocation6 + $0x188] sm:$0xff]
    %v98 = vld [vmem:[#allocation6 + $0x190] sm:$0xff]
    %v99 = vld [vmem:[#allocation6 + $0x198] sm:$0xff]
    %v100 = vld [vmem:[#allocation6 + $0x1a0] sm:$0xff]
    %v101 = vld [vmem:[#allocation6 + $0x1a8] sm:$0xff]
    %v102 = vld [vmem:[#allocation6 + $0x1b0] sm:$0xff]
    %v103 = vld [vmem:[#allocation6 + $0x1b8] sm:$0xff]
    %v104 = vld [vmem:[#allocation6 + $0x1c0] sm:$0xff]
    %v105 = vld [vmem:[#allocation6 + $0x1c8] sm:$0xff]
    %v106 = vld [vmem:[#allocation6 + $0x1d0] sm:$0xff]
    %v107 = vld [vmem:[#allocation6 + $0x1d8] sm:$0xff]
    %v108 = vld [vmem:[#allocation6 + $0x1e0] sm:$0xff]
    %v109 = vld [vmem:[#allocation6 + $0x1e8] sm:$0xff]
    %v110 = vld [vmem:[#allocation6 + $0x1f0] sm:$0xff]
    %v111 = vld [vmem:[#allocation6 + $0x1f8] sm:$0xff]
    %v112 = vld [vmem:[#allocation6 + $0x200] sm:$0xff]
    %v113 = vld [vmem:[#allocation6 + $0x208] sm:$0xff]
    %v114 = vld [vmem:[#allocation6 + $0x210] sm:$0xff]
    %v115 = vld [vmem:[#allocation6 + $0x218] sm:$0xff]
    %v116 = vld [vmem:[#allocation6 + $0x220] sm:$0xff]
    %v117 = vld [vmem:[#allocation6 + $0x228] sm:$0xff]
    %v118 = vld [vmem:[#allocation6 + $0x230] sm:$0xff]
    %v119 = vld [vmem:[#allocation6 + $0x238] sm:$0xff]
    %v120 = vld [vmem:[#allocation6 + $0x240] sm:$0xff]
    %v121 = vld [vmem:[#allocation6 + $0x248] sm:$0xff]
    %v122 = vld [vmem:[#allocation6 + $0x250] sm:$0xff]
    %v123 = vld [vmem:[#allocation6 + $0x258] sm:$0xff]
    %v124 = vld [vmem:[#allocation6 + $0x260] sm:$0xff]
    %v125 = vld [vmem:[#allocation6 + $0x268] sm:$0xff]
    %v126 = vld [vmem:[#allocation6 + $0x270] sm:$0xff]
    %v127 = vld [vmem:[#allocation6 + $0x278] sm:$0xff]
    %v128 = vld [vmem:[#allocation6 + $0x280] sm:$0xff]
    %v129 = vld [vmem:[#allocation6 + $0x288] sm:$0xff]
    %v130 = vld [vmem:[#allocation6 + $0x290] sm:$0xff]
    %v131 = vld [vmem:[#allocation6 + $0x298] sm:$0xff]
    %v132 = vld [vmem:[#allocation6 + $0x2a0] sm:$0xff]
    %v133 = vld [vmem:[#allocation6 + $0x2a8] sm:$0xff]
    %v134 = vld [vmem:[#allocation6 + $0x2b0] sm:$0xff]
    %v135 = vld [vmem:[#allocation6 + $0x2b8] sm:$0xff]
    %v136 = vld [vmem:[#allocation6 + $0x2c0] sm:$0xff]
    %v137 = vld [vmem:[#allocation6 + $0x2c8] sm:$0xff]
    %v138 = vld [vmem:[#allocation6 + $0x2d0] sm:$0xff]
    %v139 = vld [vmem:[#allocation6 + $0x2d8] sm:$0xff]
    %v140 = vld [vmem:[#allocation6 + $0x2e0] sm:$0xff]
    %v141 = vld [vmem:[#allocation6 + $0x2e8] sm:$0xff]
    %v142 = vld [vmem:[#allocation6 + $0x2f0] sm:$0xff]
    %v143 = vld [vmem:[#allocation6 + $0x2f8] sm:$0xff]
    %v144 = vld [vmem:[#allocation6 + $0x300] sm:$0xff]
    %v145 = vld [vmem:[#allocation6 + $0x308] sm:$0xff]
    %v146 = vld [vmem:[#allocation6 + $0x310] sm:$0xff]
    %v147 = vld [vmem:[#allocation6 + $0x318] sm:$0xff]
    %v148 = vld [vmem:[#allocation6 + $0x320] sm:$0xff]
    %v149 = vld [vmem:[#allocation6 + $0x328] sm:$0xff]
    %v150 = vld [vmem:[#allocation6 + $0x330] sm:$0xff]
    %v151 = vld [vmem:[#allocation6 + $0x338] sm:$0xff]
    %v152 = vld [vmem:[#allocation6 + $0x340] sm:$0xff]
    %v153 = vld [vmem:[#allocation6 + $0x348] sm:$0xff]
    %v154 = vld [vmem:[#allocation6 + $0x350] sm:$0xff]
    %v155 = vld [vmem:[#allocation6 + $0x358] sm:$0xff]
    %v156 = vld [vmem:[#allocation6 + $0x360] sm:$0xff]
    %v157 = vld [vmem:[#allocation6 + $0x368] sm:$0xff]
    %v158 = vld [vmem:[#allocation6 + $0x370] sm:$0xff]
    %v159 = vld [vmem:[#allocation6 + $0x378] sm:$0xff]
    %v160 = vld [vmem:[#allocation6 + $0x380] sm:$0xff]
    %v161 = vld [vmem:[#allocation6 + $0x388] sm:$0xff]
    %v162 = vld [vmem:[#allocation6 + $0x390] sm:$0xff]
    %v163 = vld [vmem:[#allocation6 + $0x398] sm:$0xff]
    %v164 = vld [vmem:[#allocation6 + $0x3a0] sm:$0xff]
    %v165 = vld [vmem:[#allocation6 + $0x3a8] sm:$0xff]
    %v166 = vld [vmem:[#allocation6 + $0x3b0] sm:$0xff]
    %v167 = vld [vmem:[#allocation6 + $0x3b8] sm:$0xff]
    %v168 = vld [vmem:[#allocation6 + $0x3c0] sm:$0xff]
    %v169 = vld [vmem:[#allocation6 + $0x3c8] sm:$0xff]
    %v170 = vld [vmem:[#allocation6 + $0x3d0] sm:$0xff]
    %v171 = vld [vmem:[#allocation6 + $0x3d8] sm:$0xff]
    %v172 = vld [vmem:[#allocation6 + $0x3e0] sm:$0xff]
    %v173 = vld [vmem:[#allocation6 + $0x3e8] sm:$0xff]
    %v174 = vld [vmem:[#allocation6 + $0x3f0] sm:$0xff]
    %v175 = vld [vmem:[#allocation6 + $0x3f8] sm:$0xff]
    %v176 = vld [vmem:[#allocation6 + $0x400] sm:$0xff]
    %v177 = vld [vmem:[#allocation6 + $0x408] sm:$0xff]
    %v178 = vld [vmem:[#allocation6 + $0x410] sm:$0xff]
    %v179 = vld [vmem:[#allocation6 + $0x418] sm:$0xff]
    %v180 = vld [vmem:[#allocation6 + $0x420] sm:$0xff]
    %v181 = vld [vmem:[#allocation6 + $0x428] sm:$0xff]
    %v182 = vld [vmem:[#allocation6 + $0x430] sm:$0xff]
    %v183 = vld [vmem:[#allocation6 + $0x438] sm:$0xff]
    %v184 = vld [vmem:[#allocation6 + $0x440] sm:$0xff]
    %v185 = vld [vmem:[#allocation6 + $0x448] sm:$0xff]
    %v186 = vld [vmem:[#allocation6 + $0x450] sm:$0xff]
    %v187 = vld [vmem:[#allocation6 + $0x458] sm:$0xff]
    %v188 = vld [vmem:[#allocation6 + $0x460] sm:$0xff]
    %v189 = vld [vmem:[#allocation6 + $0x468] sm:$0xff]
    %v190 = vld [vmem:[#allocation6 + $0x470] sm:$0xff]
    %v191 = vld [vmem:[#allocation6 + $0x478] sm:$0xff]
    %v192 = vld [vmem:[#allocation6 + $0x480] sm:$0xff]
    %v193 = vld [vmem:[#allocation6 + $0x488] sm:$0xff]
    %v194 = vld [vmem:[#allocation6 + $0x490] sm:$0xff]
    %v195 = vld [vmem:[#allocation6 + $0x498] sm:$0xff]
    %v196 = vld [vmem:[#allocation6 + $0x4a0] sm:$0xff]
    %v197 = vld [vmem:[#allocation6 + $0x4a8] sm:$0xff]
    %v198 = vld [vmem:[#allocation6 + $0x4b0] sm:$0xff]
    %v199 = vld [vmem:[#allocation6 + $0x4b8] sm:$0xff]
    %v200 = vld [vmem:[#allocation6 + $0x4c0] sm:$0xff]
    %v201 = vld [vmem:[#allocation6 + $0x4c8] sm:$0xff]
    %v202 = vld [vmem:[#allocation6 + $0x4d0] sm:$0xff]
    %v203 = vld [vmem:[#allocation6 + $0x4d8] sm:$0xff]
    %v204 = vld [vmem:[#allocation6 + $0x4e0] sm:$0xff]
    %v205 = vld [vmem:[#allocation6 + $0x4e8] sm:$0xff]
    %v206 = vld [vmem:[#allocation6 + $0x4f0] sm:$0xff]
    %v207 = vld [vmem:[#allocation6 + $0x4f8] sm:$0xff]
    %s208 = sld [smem:[#allocation2]]
    %v209 = vstv %s208
    %v212 = vperm.slane %v46, 0
    %v213 = vperm.slane %v46, 1
    %v214 = vperm.slane %v46, 2
    %v215 = vperm.slane %v46, 3
    %v216 = vperm.slane %v46, 4
    %v217 = vperm.slane %v46, 5
    %v218 = vperm.slane %v46, 6
    %v219 = vperm.slane %v46, 7
    %v220 = vperm.slane %v47, 0
    %v221 = vperm.slane %v47, 1
    %v232 = vand.u32 %v63, 4294901760
    %233 = vmatpush.msra.mxu0 %v232
    %v234 = vand.u32 %v62, 4294901760
    %235 = vmatpush.msra.mxu0 %v234
    %v236 = vand.u32 %v61, 4294901760
    %237 = vmatpush.msra.mxu0 %v236
    %v238 = vand.u32 %v60, 4294901760
    %239 = vmatpush.msra.mxu0 %v238
    %v240 = vand.u32 %v59, 4294901760
    %241 = vmatpush.msra.mxu0 %v240
    %v242 = vand.u32 %v58, 4294901760
    %243 = vmatpush.msra.mxu0 %v242
    %v244 = vand.u32 %v57, 4294901760
    %245 = vmatpush.msra.mxu0 %v244
    %v246 = vand.u32 %v56, 4294901760
    %247 = vmatpush.msra.mxu0 %v246
    %v248 = vand.u32 %v55, 4294901760
    %249 = vmatpush.msra.mxu0 %v248
    %v250 = vand.u32 %v54, 4294901760
    %251 = vmatpush.msra.mxu0 %v250
    %v252 = vand.u32 %v53, 4294901760
    %253 = vmatpush.msra.mxu0 %v252
    %v254 = vand.u32 %v52, 4294901760
    %255 = vmatpush.msra.mxu0 %v254
    %v256 = vand.u32 %v51, 4294901760
    %257 = vmatpush.msra.mxu0 %v256
    %v258 = vand.u32 %v50, 4294901760
    %259 = vmatpush.msra.mxu0 %v258
    %v260 = vand.u32 %v49, 4294901760
    %261 = vmatpush.msra.mxu0 %v260
    %v262 = vand.u32 %v48, 4294901760
    %263 = vmatpush.msra.mxu0 %v262
    %v264 = vand.u32 %v212, 4294901760
    %v265 = vsub.f32 %v212, %v264
    %v266 = vand.u32 %v265, 4294901760
    %v267 = vsub.f32 %v265, %v266
    %v268 = vand.u32 %v267, 4294901760
    %269 = vmatmul.f32.gmra.mxu0 %v268
    %v270 = vpop.f32.mrf.mxu0
    %v271 = vadd.f32 %v209, %v270
    %272 = vdwg.mxu0
    %v273 = vand.u32 %v63, 4294901760
    %v274 = vsub.f32 %v63, %v273
    %v275 = vand.u32 %v274, 4294901760
    %v276 = vsub.f32 %v274, %v275
    %v277 = vand.u32 %v276, 4294901760
    %278 = vmatpush.msra.mxu0 %v277
    %v279 = vand.u32 %v62, 4294901760
    %v280 = vsub.f32 %v62, %v279
    %v281 = vand.u32 %v280, 4294901760
    %v282 = vsub.f32 %v280, %v281
    %v283 = vand.u32 %v282, 4294901760
    %284 = vmatpush.msra.mxu0 %v283
    %v285 = vand.u32 %v61, 4294901760
    %v286 = vsub.f32 %v61, %v285
    %v287 = vand.u32 %v286, 4294901760
    %v288 = vsub.f32 %v286, %v287
    %v289 = vand.u32 %v288, 4294901760
    %290 = vmatpush.msra.mxu0 %v289
    %v291 = vand.u32 %v60, 4294901760
    %v292 = vsub.f32 %v60, %v291
    %v293 = vand.u32 %v292, 4294901760
    %v294 = vsub.f32 %v292, %v293
    %v295 = vand.u32 %v294, 4294901760
    %296 = vmatpush.msra.mxu0 %v295
    %v297 = vand.u32 %v59, 4294901760
    %v298 = vsub.f32 %v59, %v297
    %v299 = vand.u32 %v298, 4294901760
    %v300 = vsub.f32 %v298, %v299
    %v301 = vand.u32 %v300, 4294901760
    %302 = vmatpush.msra.mxu0 %v301
    %v303 = vand.u32 %v58, 4294901760
    %v304 = vsub.f32 %v58, %v303
    %v305 = vand.u32 %v304, 4294901760
    %v306 = vsub.f32 %v304, %v305
    %v307 = vand.u32 %v306, 4294901760
    %308 = vmatpush.msra.mxu0 %v307
    %v309 = vand.u32 %v57, 4294901760
    %v310 = vsub.f32 %v57, %v309
    %v311 = vand.u32 %v310, 4294901760
    %v312 = vsub.f32 %v310, %v311
    %v313 = vand.u32 %v312, 4294901760
    %314 = vmatpush.msra.mxu0 %v313
    %v315 = vand.u32 %v56, 4294901760
    %v316 = vsub.f32 %v56, %v315
    %v317 = vand.u32 %v316, 4294901760
    %v318 = vsub.f32 %v316, %v317
    %v319 = vand.u32 %v318, 4294901760
    %320 = vmatpush.msra.mxu0 %v319
    %v321 = vand.u32 %v55, 4294901760
    %v322 = vsub.f32 %v55, %v321
    %v323 = vand.u32 %v322, 4294901760
    %v324 = vsub.f32 %v322, %v323
    %v325 = vand.u32 %v324, 4294901760
    %326 = vmatpush.msra.mxu0 %v325
    %v327 = vand.u32 %v54, 4294901760
    %v328 = vsub.f32 %v54, %v327
    %v329 = vand.u32 %v328, 4294901760
    %v330 = vsub.f32 %v328, %v329
    %v331 = vand.u32 %v330, 4294901760
    %332 = vmatpush.msra.mxu0 %v331
    %v333 = vand.u32 %v53, 4294901760
    %v334 = vsub.f32 %v53, %v333
    %v335 = vand.u32 %v334, 4294901760
    %v336 = vsub.f32 %v334, %v335
    %v337 = vand.u32 %v336, 4294901760
    %338 = vmatpush.msra.mxu0 %v337
    %v339 = vand.u32 %v52, 4294901760
    %v340 = vsub.f32 %v52, %v339
    %v341 = vand.u32 %v340, 4294901760
    %v342 = vsub.f32 %v340, %v341
    %v343 = vand.u32 %v342, 4294901760
    %344 = vmatpush.msra.mxu0 %v343
    %v345 = vand.u32 %v51, 4294901760
    %v346 = vsub.f32 %v51, %v345
    %v347 = vand.u32 %v346, 4294901760
    %v348 = vsub.f32 %v346, %v347
    %v349 = vand.u32 %v348, 4294901760
    %350 = vmatpush.msra.mxu0 %v349
    %v351 = vand.u32 %v50, 4294901760
    %v352 = vsub.f32 %v50, %v351
    %v353 = vand.u32 %v352, 4294901760
    %v354 = vsub.f32 %v352, %v353
    %v355 = vand.u32 %v354, 4294901760
    %356 = vmatpush.msra.mxu0 %v355
    %v357 = vand.u32 %v49, 4294901760
    %v358 = vsub.f32 %v49, %v357
    %v359 = vand.u32 %v358, 4294901760
    %v360 = vsub.f32 %v358, %v359
    %v361 = vand.u32 %v360, 4294901760
    %362 = vmatpush.msra.mxu0 %v361
    %v363 = vand.u32 %v48, 4294901760
    %v364 = vsub.f32 %v48, %v363
    %v365 = vand.u32 %v364, 4294901760
    %v366 = vsub.f32 %v364, %v365
    %v367 = vand.u32 %v366, 4294901760
    %368 = vmatpush.msra.mxu0 %v367
    %v369 = vand.u32 %v212, 4294901760
    %370 = vmatmul.f32.gmra.mxu0 %v369
    %v371 = vpop.f32.mrf.mxu0
    %v372 = vadd.f32 %v271, %v371
    %373 = vdwg.mxu0
    %v374 = vand.u32 %v63, 4294901760
    %v375 = vsub.f32 %v63, %v374
    %376 = vmatpush.msra.mxu0 %v375
    %v377 = vand.u32 %v62, 4294901760
    %v378 = vsub.f32 %v62, %v377
    %379 = vmatpush.msra.mxu0 %v378
    %v380 = vand.u32 %v61, 4294901760
    %v381 = vsub.f32 %v61, %v380
    %382 = vmatpush.msra.mxu0 %v381
    %v383 = vand.u32 %v60, 4294901760
    %v384 = vsub.f32 %v60, %v383
    %385 = vmatpush.msra.mxu0 %v384
    %v386 = vand.u32 %v59, 4294901760
    %v387 = vsub.f32 %v59, %v386
    %388 = vmatpush.msra.mxu0 %v387
    %v389 = vand.u32 %v58, 4294901760
    %v390 = vsub.f32 %v58, %v389
    %391 = vmatpush.msra.mxu0 %v390
    %v392 = vand.u32 %v57, 4294901760
    %v393 = vsub.f32 %v57, %v392
    %394 = vmatpush.msra.mxu0 %v393
    %v395 = vand.u32 %v56, 4294901760
    %v396 = vsub.f32 %v56, %v395
    %397 = vmatpush.msra.mxu0 %v396
    %v398 = vand.u32 %v55, 4294901760
    %v399 = vsub.f32 %v55, %v398
    %400 = vmatpush.msra.mxu0 %v399
    %v401 = vand.u32 %v54, 4294901760
    %v402 = vsub.f32 %v54, %v401
    %403 = vmatpush.msra.mxu0 %v402
    %v404 = vand.u32 %v53, 4294901760
    %v405 = vsub.f32 %v53, %v404
    %406 = vmatpush.msra.mxu0 %v405
    %v407 = vand.u32 %v52, 4294901760
    %v408 = vsub.f32 %v52, %v407
    %409 = vmatpush.msra.mxu0 %v408
    %v410 = vand.u32 %v51, 4294901760
    %v411 = vsub.f32 %v51, %v410
    %412 = vmatpush.msra.mxu0 %v411
    %v413 = vand.u32 %v50, 4294901760
    %v414 = vsub.f32 %v50, %v413
    %415 = vmatpush.msra.mxu0 %v414
    %v416 = vand.u32 %v49, 4294901760
    %v417 = vsub.f32 %v49, %v416
    %418 = vmatpush.msra.mxu0 %v417
    %v419 = vand.u32 %v48, 4294901760
    %v420 = vsub.f32 %v48, %v419
    %421 = vmatpush.msra.mxu0 %v420
    %v422 = vand.u32 %v212, 4294901760
    %v423 = vsub.f32 %v212, %v422
    %424 = vmatmul.f32.gmra.mxu0 %v423
    %v425 = vpop.f32.mrf.mxu0
    %v426 = vadd.f32 %v372, %v425
    %427 = vdwg.mxu0
    %v428 = vand.u32 %v63, 4294901760
    %429 = vmatpush.msra.mxu0 %v428
    %v430 = vand.u32 %v62, 4294901760
    %431 = vmatpush.msra.mxu0 %v430
    %v432 = vand.u32 %v61, 4294901760
    %433 = vmatpush.msra.mxu0 %v432
    %v434 = vand.u32 %v60, 4294901760
    %435 = vmatpush.msra.mxu0 %v434
    %v436 = vand.u32 %v59, 4294901760
    %437 = vmatpush.msra.mxu0 %v436
    %v438 = vand.u32 %v58, 4294901760
    %439 = vmatpush.msra.mxu0 %v438
    %v440 = vand.u32 %v57, 4294901760
    %441 = vmatpush.msra.mxu0 %v440
    %v442 = vand.u32 %v56, 4294901760
    %443 = vmatpush.msra.mxu0 %v442
    %v444 = vand.u32 %v55, 4294901760
    %445 = vmatpush.msra.mxu0 %v444
    %v446 = vand.u32 %v54, 4294901760
    %447 = vmatpush.msra.mxu0 %v446
    %v448 = vand.u32 %v53, 4294901760
    %449 = vmatpush.msra.mxu0 %v448
    %v450 = vand.u32 %v52, 4294901760
    %451 = vmatpush.msra.mxu0 %v450
    %v452 = vand.u32 %v51, 4294901760
    %453 = vmatpush.msra.mxu0 %v452
    %v454 = vand.u32 %v50, 4294901760
    %455 = vmatpush.msra.mxu0 %v454
    %v456 = vand.u32 %v49, 4294901760
    %457 = vmatpush.msra.mxu0 %v456
    %v458 = vand.u32 %v48, 4294901760
    %459 = vmatpush.msra.mxu0 %v458
    %v460 = vand.u32 %v212, 4294901760
    %v461 = vsub.f32 %v212, %v460
    %v462 = vand.u32 %v461, 4294901760
    %463 = vmatmul.f32.gmra.mxu0 %v462
    %v464 = vpop.f32.mrf.mxu0
    %v465 = vadd.f32 %v426, %v464
    %466 = vdwg.mxu0
    %v467 = vand.u32 %v63, 4294901760
    %v468 = vsub.f32 %v63, %v467
    %v469 = vand.u32 %v468, 4294901760
    %470 = vmatpush.msra.mxu0 %v469
    %v471 = vand.u32 %v62, 4294901760
    %v472 = vsub.f32 %v62, %v471
    %v473 = vand.u32 %v472, 4294901760
    %474 = vmatpush.msra.mxu0 %v473
    %v475 = vand.u32 %v61, 4294901760
    %v476 = vsub.f32 %v61, %v475
    %v477 = vand.u32 %v476, 4294901760
    %478 = vmatpush.msra.mxu0 %v477
    %v479 = vand.u32 %v60, 4294901760
    %v480 = vsub.f32 %v60, %v479
    %v481 = vand.u32 %v480, 4294901760
    %482 = vmatpush.msra.mxu0 %v481
    %v483 = vand.u32 %v59, 4294901760
    %v484 = vsub.f32 %v59, %v483
    %v485 = vand.u32 %v484, 4294901760
    %486 = vmatpush.msra.mxu0 %v485
    %v487 = vand.u32 %v58, 4294901760
    %v488 = vsub.f32 %v58, %v487
    %v489 = vand.u32 %v488, 4294901760
    %490 = vmatpush.msra.mxu0 %v489
    %v491 = vand.u32 %v57, 4294901760
    %v492 = vsub.f32 %v57, %v491
    %v493 = vand.u32 %v492, 4294901760
    %494 = vmatpush.msra.mxu0 %v493
    %v495 = vand.u32 %v56, 4294901760
    %v496 = vsub.f32 %v56, %v495
    %v497 = vand.u32 %v496, 4294901760
    %498 = vmatpush.msra.mxu0 %v497
    %v499 = vand.u32 %v55, 4294901760
    %v500 = vsub.f32 %v55, %v499
    %v501 = vand.u32 %v500, 4294901760
    %502 = vmatpush.msra.mxu0 %v501
    %v503 = vand.u32 %v54, 4294901760
    %v504 = vsub.f32 %v54, %v503
    %v505 = vand.u32 %v504, 4294901760
    %506 = vmatpush.msra.mxu0 %v505
    %v507 = vand.u32 %v53, 4294901760
    %v508 = vsub.f32 %v53, %v507
    %v509 = vand.u32 %v508, 4294901760
    %510 = vmatpush.msra.mxu0 %v509
    %v511 = vand.u32 %v52, 4294901760
    %v512 = vsub.f32 %v52, %v511
    %v513 = vand.u32 %v512, 4294901760
    %514 = vmatpush.msra.mxu0 %v513
    %v515 = vand.u32 %v51, 4294901760
    %v516 = vsub.f32 %v51, %v515
    %v517 = vand.u32 %v516, 4294901760
    %518 = vmatpush.msra.mxu0 %v517
    %v519 = vand.u32 %v50, 4294901760
    %v520 = vsub.f32 %v50, %v519
    %v521 = vand.u32 %v520, 4294901760
    %522 = vmatpush.msra.mxu0 %v521
    %v523 = vand.u32 %v49, 4294901760
    %v524 = vsub.f32 %v49, %v523
    %v525 = vand.u32 %v524, 4294901760
    %526 = vmatpush.msra.mxu0 %v525
    %v527 = vand.u32 %v48, 4294901760
    %v528 = vsub.f32 %v48, %v527
    %v529 = vand.u32 %v528, 4294901760
    %530 = vmatpush.msra.mxu0 %v529
    %v531 = vand.u32 %v212, 4294901760
    %532 = vmatmul.f32.gmra.mxu0 %v531
    %v533 = vpop.f32.mrf.mxu0
    %v534 = vadd.f32 %v465, %v533
    %535 = vdwg.mxu0
    %v536 = vand.u32 %v63, 4294901760
    %537 = vmatpush.msra.mxu0 %v536
    %v538 = vand.u32 %v62, 4294901760
    %539 = vmatpush.msra.mxu0 %v538
    %v540 = vand.u32 %v61, 4294901760
    %541 = vmatpush.msra.mxu0 %v540
    %v542 = vand.u32 %v60, 4294901760
    %543 = vmatpush.msra.mxu0 %v542
    %v544 = vand.u32 %v59, 4294901760
    %545 = vmatpush.msra.mxu0 %v544
    %v546 = vand.u32 %v58, 4294901760
    %547 = vmatpush.msra.mxu0 %v546
    %v548 = vand.u32 %v57, 4294901760
    %549 = vmatpush.msra.mxu0 %v548
    %v550 = vand.u32 %v56, 4294901760
    %551 = vmatpush.msra.mxu0 %v550
    %v552 = vand.u32 %v55, 4294901760
    %553 = vmatpush.msra.mxu0 %v552
    %v554 = vand.u32 %v54, 4294901760
    %555 = vmatpush.msra.mxu0 %v554
    %v556 = vand.u32 %v53, 4294901760
    %557 = vmatpush.msra.mxu0 %v556
    %v558 = vand.u32 %v52, 4294901760
    %559 = vmatpush.msra.mxu0 %v558
    %v560 = vand.u32 %v51, 4294901760
    %561 = vmatpush.msra.mxu0 %v560
    %v562 = vand.u32 %v50, 4294901760
    %563 = vmatpush.msra.mxu0 %v562
    %v564 = vand.u32 %v49, 4294901760
    %565 = vmatpush.msra.mxu0 %v564
    %v566 = vand.u32 %v48, 4294901760
    %567 = vmatpush.msra.mxu0 %v566
    %v568 = vand.u32 %v212, 4294901760
    %569 = vmatmul.f32.gmra.mxu0 %v568
    %v570 = vpop.f32.mrf.mxu0
    %v571 = vadd.f32 %v534, %v570
    %572 = vdwg.mxu0
    %v573 = vand.u32 %v79, 4294901760
    %574 = vmatpush.msra.mxu0 %v573
    %v575 = vand.u32 %v78, 4294901760
    %576 = vmatpush.msra.mxu0 %v575
    %v577 = vand.u32 %v77, 4294901760
    %578 = vmatpush.msra.mxu0 %v577
    %v579 = vand.u32 %v76, 4294901760
    %580 = vmatpush.msra.mxu0 %v579
    %v581 = vand.u32 %v75, 4294901760
    %582 = vmatpush.msra.mxu0 %v581
    %v583 = vand.u32 %v74, 4294901760
    %584 = vmatpush.msra.mxu0 %v583
    %v585 = vand.u32 %v73, 4294901760
    %586 = vmatpush.msra.mxu0 %v585
    %v587 = vand.u32 %v72, 4294901760
    %588 = vmatpush.msra.mxu0 %v587
    %v589 = vand.u32 %v71, 4294901760
    %590 = vmatpush.msra.mxu0 %v589
    %v591 = vand.u32 %v70, 4294901760
    %592 = vmatpush.msra.mxu0 %v591
    %v593 = vand.u32 %v69, 4294901760
    %594 = vmatpush.msra.mxu0 %v593
    %v595 = vand.u32 %v68, 4294901760
    %596 = vmatpush.msra.mxu0 %v595
    %v597 = vand.u32 %v67, 4294901760
    %598 = vmatpush.msra.mxu0 %v597
    %v599 = vand.u32 %v66, 4294901760
    %600 = vmatpush.msra.mxu0 %v599
    %v601 = vand.u32 %v65, 4294901760
    %602 = vmatpush.msra.mxu0 %v601
    %v603 = vand.u32 %v64, 4294901760
    %604 = vmatpush.msra.mxu0 %v603
    %v605 = vand.u32 %v213, 4294901760
    %v606 = vsub.f32 %v213, %v605
    %v607 = vand.u32 %v606, 4294901760
    %v608 = vsub.f32 %v606, %v607
    %v609 = vand.u32 %v608, 4294901760
    %610 = vmatmul.f32.gmra.mxu0 %v609
    %v611 = vpop.f32.mrf.mxu0
    %v612 = vadd.f32 %v571, %v611
    %613 = vdwg.mxu0
    %v614 = vand.u32 %v79, 4294901760
    %v615 = vsub.f32 %v79, %v614
    %v616 = vand.u32 %v615, 4294901760
    %v617 = vsub.f32 %v615, %v616
    %v618 = vand.u32 %v617, 4294901760
    %619 = vmatpush.msra.mxu0 %v618
    %v620 = vand.u32 %v78, 4294901760
    %v621 = vsub.f32 %v78, %v620
    %v622 = vand.u32 %v621, 4294901760
    %v623 = vsub.f32 %v621, %v622
    %v624 = vand.u32 %v623, 4294901760
    %625 = vmatpush.msra.mxu0 %v624
    %v626 = vand.u32 %v77, 4294901760
    %v627 = vsub.f32 %v77, %v626
    %v628 = vand.u32 %v627, 4294901760
    %v629 = vsub.f32 %v627, %v628
    %v630 = vand.u32 %v629, 4294901760
    %631 = vmatpush.msra.mxu0 %v630
    %v632 = vand.u32 %v76, 4294901760
    %v633 = vsub.f32 %v76, %v632
    %v634 = vand.u32 %v633, 4294901760
    %v635 = vsub.f32 %v633, %v634
    %v636 = vand.u32 %v635, 4294901760
    %637 = vmatpush.msra.mxu0 %v636
    %v638 = vand.u32 %v75, 4294901760
    %v639 = vsub.f32 %v75, %v638
    %v640 = vand.u32 %v639, 4294901760
    %v641 = vsub.f32 %v639, %v640
    %v642 = vand.u32 %v641, 4294901760
    %643 = vmatpush.msra.mxu0 %v642
    %v644 = vand.u32 %v74, 4294901760
    %v645 = vsub.f32 %v74, %v644
    %v646 = vand.u32 %v645, 4294901760
    %v647 = vsub.f32 %v645, %v646
    %v648 = vand.u32 %v647, 4294901760
    %649 = vmatpush.msra.mxu0 %v648
    %v650 = vand.u32 %v73, 4294901760
    %v651 = vsub.f32 %v73, %v650
    %v652 = vand.u32 %v651, 4294901760
    %v653 = vsub.f32 %v651, %v652
    %v654 = vand.u32 %v653, 4294901760
    %655 = vmatpush.msra.mxu0 %v654
    %v656 = vand.u32 %v72, 4294901760
    %v657 = vsub.f32 %v72, %v656
    %v658 = vand.u32 %v657, 4294901760
    %v659 = vsub.f32 %v657, %v658
    %v660 = vand.u32 %v659, 4294901760
    %661 = vmatpush.msra.mxu0 %v660
    %v662 = vand.u32 %v71, 4294901760
    %v663 = vsub.f32 %v71, %v662
    %v664 = vand.u32 %v663, 4294901760
    %v665 = vsub.f32 %v663, %v664
    %v666 = vand.u32 %v665, 4294901760
    %667 = vmatpush.msra.mxu0 %v666
    %v668 = vand.u32 %v70, 4294901760
    %v669 = vsub.f32 %v70, %v668
    %v670 = vand.u32 %v669, 4294901760
    %v671 = vsub.f32 %v669, %v670
    %v672 = vand.u32 %v671, 4294901760
    %673 = vmatpush.msra.mxu0 %v672
    %v674 = vand.u32 %v69, 4294901760
    %v675 = vsub.f32 %v69, %v674
    %v676 = vand.u32 %v675, 4294901760
    %v677 = vsub.f32 %v675, %v676
    %v678 = vand.u32 %v677, 4294901760
    %679 = vmatpush.msra.mxu0 %v678
    %v680 = vand.u32 %v68, 4294901760
    %v681 = vsub.f32 %v68, %v680
    %v682 = vand.u32 %v681, 4294901760
    %v683 = vsub.f32 %v681, %v682
    %v684 = vand.u32 %v683, 4294901760
    %685 = vmatpush.msra.mxu0 %v684
    %v686 = vand.u32 %v67, 4294901760
    %v687 = vsub.f32 %v67, %v686
    %v688 = vand.u32 %v687, 4294901760
    %v689 = vsub.f32 %v687, %v688
    %v690 = vand.u32 %v689, 4294901760
    %691 = vmatpush.msra.mxu0 %v690
    %v692 = vand.u32 %v66, 4294901760
    %v693 = vsub.f32 %v66, %v692
    %v694 = vand.u32 %v693, 4294901760
    %v695 = vsub.f32 %v693, %v694
    %v696 = vand.u32 %v695, 4294901760
    %697 = vmatpush.msra.mxu0 %v696
    %v698 = vand.u32 %v65, 4294901760
    %v699 = vsub.f32 %v65, %v698
    %v700 = vand.u32 %v699, 4294901760
    %v701 = vsub.f32 %v699, %v700
    %v702 = vand.u32 %v701, 4294901760
    %703 = vmatpush.msra.mxu0 %v702
    %v704 = vand.u32 %v64, 4294901760
    %v705 = vsub.f32 %v64, %v704
    %v706 = vand.u32 %v705, 4294901760
    %v707 = vsub.f32 %v705, %v706
    %v708 = vand.u32 %v707, 4294901760
    %709 = vmatpush.msra.mxu0 %v708
    %v710 = vand.u32 %v213, 4294901760
    %711 = vmatmul.f32.gmra.mxu0 %v710
    %v712 = vpop.f32.mrf.mxu0
    %v713 = vadd.f32 %v612, %v712
    %714 = vdwg.mxu0
    %v715 = vand.u32 %v79, 4294901760
    %v716 = vsub.f32 %v79, %v715
    %717 = vmatpush.msra.mxu0 %v716
    %v718 = vand.u32 %v78, 4294901760
    %v719 = vsub.f32 %v78, %v718
    %720 = vmatpush.msra.mxu0 %v719
    %v721 = vand.u32 %v77, 4294901760
    %v722 = vsub.f32 %v77, %v721
    %723 = vmatpush.msra.mxu0 %v722
    %v724 = vand.u32 %v76, 4294901760
    %v725 = vsub.f32 %v76, %v724
    %726 = vmatpush.msra.mxu0 %v725
    %v727 = vand.u32 %v75, 4294901760
    %v728 = vsub.f32 %v75, %v727
    %729 = vmatpush.msra.mxu0 %v728
    %v730 = vand.u32 %v74, 4294901760
    %v731 = vsub.f32 %v74, %v730
    %732 = vmatpush.msra.mxu0 %v731
    %v733 = vand.u32 %v73, 4294901760
    %v734 = vsub.f32 %v73, %v733
    %735 = vmatpush.msra.mxu0 %v734
    %v736 = vand.u32 %v72, 4294901760
    %v737 = vsub.f32 %v72, %v736
    %738 = vmatpush.msra.mxu0 %v737
    %v739 = vand.u32 %v71, 4294901760
    %v740 = vsub.f32 %v71, %v739
    %741 = vmatpush.msra.mxu0 %v740
    %v742 = vand.u32 %v70, 4294901760
    %v743 = vsub.f32 %v70, %v742
    %744 = vmatpush.msra.mxu0 %v743
    %v745 = vand.u32 %v69, 4294901760
    %v746 = vsub.f32 %v69, %v745
    %747 = vmatpush.msra.mxu0 %v746
    %v748 = vand.u32 %v68, 4294901760
    %v749 = vsub.f32 %v68, %v748
    %750 = vmatpush.msra.mxu0 %v749
    %v751 = vand.u32 %v67, 4294901760
    %v752 = vsub.f32 %v67, %v751
    %753 = vmatpush.msra.mxu0 %v752
    %v754 = vand.u32 %v66, 4294901760
    %v755 = vsub.f32 %v66, %v754
    %756 = vmatpush.msra.mxu0 %v755
    %v757 = vand.u32 %v65, 4294901760
    %v758 = vsub.f32 %v65, %v757
    %759 = vmatpush.msra.mxu0 %v758
    %v760 = vand.u32 %v64, 4294901760
    %v761 = vsub.f32 %v64, %v760
    %762 = vmatpush.msra.mxu0 %v761
    %v763 = vand.u32 %v213, 4294901760
    %v764 = vsub.f32 %v213, %v763
    %765 = vmatmul.f32.gmra.mxu0 %v764
    %v766 = vpop.f32.mrf.mxu0
    %v767 = vadd.f32 %v713, %v766
    %768 = vdwg.mxu0
    %v769 = vand.u32 %v79, 4294901760
    %770 = vmatpush.msra.mxu0 %v769
    %v771 = vand.u32 %v78, 4294901760
    %772 = vmatpush.msra.mxu0 %v771
    %v773 = vand.u32 %v77, 4294901760
    %774 = vmatpush.msra.mxu0 %v773
    %v775 = vand.u32 %v76, 4294901760
    %776 = vmatpush.msra.mxu0 %v775
    %v777 = vand.u32 %v75, 4294901760
    %778 = vmatpush.msra.mxu0 %v777
    %v779 = vand.u32 %v74, 4294901760
    %780 = vmatpush.msra.mxu0 %v779
    %v781 = vand.u32 %v73, 4294901760
    %782 = vmatpush.msra.mxu0 %v781
    %v783 = vand.u32 %v72, 4294901760
    %784 = vmatpush.msra.mxu0 %v783
    %v785 = vand.u32 %v71, 4294901760
    %786 = vmatpush.msra.mxu0 %v785
    %v787 = vand.u32 %v70, 4294901760
    %788 = vmatpush.msra.mxu0 %v787
    %v789 = vand.u32 %v69, 4294901760
    %790 = vmatpush.msra.mxu0 %v789
    %v791 = vand.u32 %v68, 4294901760
    %792 = vmatpush.msra.mxu0 %v791
    %v793 = vand.u32 %v67, 4294901760
    %794 = vmatpush.msra.mxu0 %v793
    %v795 = vand.u32 %v66, 4294901760
    %796 = vmatpush.msra.mxu0 %v795
    %v797 = vand.u32 %v65, 4294901760
    %798 = vmatpush.msra.mxu0 %v797
    %v799 = vand.u32 %v64, 4294901760
    %800 = vmatpush.msra.mxu0 %v799
    %v801 = vand.u32 %v213, 4294901760
    %v802 = vsub.f32 %v213, %v801
    %v803 = vand.u32 %v802, 4294901760
    %804 = vmatmul.f32.gmra.mxu0 %v803
    %v805 = vpop.f32.mrf.mxu0
    %v806 = vadd.f32 %v767, %v805
    %807 = vdwg.mxu0
    %v808 = vand.u32 %v79, 4294901760
    %v809 = vsub.f32 %v79, %v808
    %v810 = vand.u32 %v809, 4294901760
    %811 = vmatpush.msra.mxu0 %v810
    %v812 = vand.u32 %v78, 4294901760
    %v813 = vsub.f32 %v78, %v812
    %v814 = vand.u32 %v813, 4294901760
    %815 = vmatpush.msra.mxu0 %v814
    %v816 = vand.u32 %v77, 4294901760
    %v817 = vsub.f32 %v77, %v816
    %v818 = vand.u32 %v817, 4294901760
    %819 = vmatpush.msra.mxu0 %v818
    %v820 = vand.u32 %v76, 4294901760
    %v821 = vsub.f32 %v76, %v820
    %v822 = vand.u32 %v821, 4294901760
    %823 = vmatpush.msra.mxu0 %v822
    %v824 = vand.u32 %v75, 4294901760
    %v825 = vsub.f32 %v75, %v824
    %v826 = vand.u32 %v825, 4294901760
    %827 = vmatpush.msra.mxu0 %v826
    %v828 = vand.u32 %v74, 4294901760
    %v829 = vsub.f32 %v74, %v828
    %v830 = vand.u32 %v829, 4294901760
    %831 = vmatpush.msra.mxu0 %v830
    %v832 = vand.u32 %v73, 4294901760
    %v833 = vsub.f32 %v73, %v832
    %v834 = vand.u32 %v833, 4294901760
    %835 = vmatpush.msra.mxu0 %v834
    %v836 = vand.u32 %v72, 4294901760
    %v837 = vsub.f32 %v72, %v836
    %v838 = vand.u32 %v837, 4294901760
    %839 = vmatpush.msra.mxu0 %v838
    %v840 = vand.u32 %v71, 4294901760
    %v841 = vsub.f32 %v71, %v840
    %v842 = vand.u32 %v841, 4294901760
    %843 = vmatpush.msra.mxu0 %v842
    %v844 = vand.u32 %v70, 4294901760
    %v845 = vsub.f32 %v70, %v844
    %v846 = vand.u32 %v845, 4294901760
    %847 = vmatpush.msra.mxu0 %v846
    %v848 = vand.u32 %v69, 4294901760
    %v849 = vsub.f32 %v69, %v848
    %v850 = vand.u32 %v849, 4294901760
    %851 = vmatpush.msra.mxu0 %v850
    %v852 = vand.u32 %v68, 4294901760
    %v853 = vsub.f32 %v68, %v852
    %v854 = vand.u32 %v853, 4294901760
    %855 = vmatpush.msra.mxu0 %v854
    %v856 = vand.u32 %v67, 4294901760
    %v857 = vsub.f32 %v67, %v856
    %v858 = vand.u32 %v857, 4294901760
    %859 = vmatpush.msra.mxu0 %v858
    %v860 = vand.u32 %v66, 4294901760
    %v861 = vsub.f32 %v66, %v860
    %v862 = vand.u32 %v861, 4294901760
    %863 = vmatpush.msra.mxu0 %v862
    %v864 = vand.u32 %v65, 4294901760
    %v865 = vsub.f32 %v65, %v864
    %v866 = vand.u32 %v865, 4294901760
    %867 = vmatpush.msra.mxu0 %v866
    %v868 = vand.u32 %v64, 4294901760
    %v869 = vsub.f32 %v64, %v868
    %v870 = vand.u32 %v869, 4294901760
    %871 = vmatpush.msra.mxu0 %v870
    %v872 = vand.u32 %v213, 4294901760
    %873 = vmatmul.f32.gmra.mxu0 %v872
    %v874 = vpop.f32.mrf.mxu0
    %v875 = vadd.f32 %v806, %v874
    %876 = vdwg.mxu0
    %v877 = vand.u32 %v79, 4294901760
    %878 = vmatpush.msra.mxu0 %v877
    %v879 = vand.u32 %v78, 4294901760
    %880 = vmatpush.msra.mxu0 %v879
    %v881 = vand.u32 %v77, 4294901760
    %882 = vmatpush.msra.mxu0 %v881
    %v883 = vand.u32 %v76, 4294901760
    %884 = vmatpush.msra.mxu0 %v883
    %v885 = vand.u32 %v75, 4294901760
    %886 = vmatpush.msra.mxu0 %v885
    %v887 = vand.u32 %v74, 4294901760
    %888 = vmatpush.msra.mxu0 %v887
    %v889 = vand.u32 %v73, 4294901760
    %890 = vmatpush.msra.mxu0 %v889
    %v891 = vand.u32 %v72, 4294901760
    %892 = vmatpush.msra.mxu0 %v891
    %v893 = vand.u32 %v71, 4294901760
    %894 = vmatpush.msra.mxu0 %v893
    %v895 = vand.u32 %v70, 4294901760
    %896 = vmatpush.msra.mxu0 %v895
    %v897 = vand.u32 %v69, 4294901760
    %898 = vmatpush.msra.mxu0 %v897
    %v899 = vand.u32 %v68, 4294901760
    %900 = vmatpush.msra.mxu0 %v899
    %v901 = vand.u32 %v67, 4294901760
    %902 = vmatpush.msra.mxu0 %v901
    %v903 = vand.u32 %v66, 4294901760
    %904 = vmatpush.msra.mxu0 %v903
    %v905 = vand.u32 %v65, 4294901760
    %906 = vmatpush.msra.mxu0 %v905
    %v907 = vand.u32 %v64, 4294901760
    %908 = vmatpush.msra.mxu0 %v907
    %v909 = vand.u32 %v213, 4294901760
    %910 = vmatmul.f32.gmra.mxu0 %v909
    %v911 = vpop.f32.mrf.mxu0
    %v912 = vadd.f32 %v875, %v911
    %913 = vdwg.mxu0
    %v914 = vand.u32 %v95, 4294901760
    %915 = vmatpush.msra.mxu0 %v914
    %v916 = vand.u32 %v94, 4294901760
    %917 = vmatpush.msra.mxu0 %v916
    %v918 = vand.u32 %v93, 4294901760
    %919 = vmatpush.msra.mxu0 %v918
    %v920 = vand.u32 %v92, 4294901760
    %921 = vmatpush.msra.mxu0 %v920
    %v922 = vand.u32 %v91, 4294901760
    %923 = vmatpush.msra.mxu0 %v922
    %v924 = vand.u32 %v90, 4294901760
    %925 = vmatpush.msra.mxu0 %v924
    %v926 = vand.u32 %v89, 4294901760
    %927 = vmatpush.msra.mxu0 %v926
    %v928 = vand.u32 %v88, 4294901760
    %929 = vmatpush.msra.mxu0 %v928
    %v930 = vand.u32 %v87, 4294901760
    %931 = vmatpush.msra.mxu0 %v930
    %v932 = vand.u32 %v86, 4294901760
    %933 = vmatpush.msra.mxu0 %v932
    %v934 = vand.u32 %v85, 4294901760
    %935 = vmatpush.msra.mxu0 %v934
    %v936 = vand.u32 %v84, 4294901760
    %937 = vmatpush.msra.mxu0 %v936
    %v938 = vand.u32 %v83, 4294901760
    %939 = vmatpush.msra.mxu0 %v938
    %v940 = vand.u32 %v82, 4294901760
    %941 = vmatpush.msra.mxu0 %v940
    %v942 = vand.u32 %v81, 4294901760
    %943 = vmatpush.msra.mxu0 %v942
    %v944 = vand.u32 %v80, 4294901760
    %945 = vmatpush.msra.mxu0 %v944
    %v946 = vand.u32 %v214, 4294901760
    %v947 = vsub.f32 %v214, %v946
    %v948 = vand.u32 %v947, 4294901760
    %v949 = vsub.f32 %v947, %v948
    %v950 = vand.u32 %v949, 4294901760
    %951 = vmatmul.f32.gmra.mxu0 %v950
    %v952 = vpop.f32.mrf.mxu0
    %v953 = vadd.f32 %v912, %v952
    %954 = vdwg.mxu0
    %v955 = vand.u32 %v95, 4294901760
    %v956 = vsub.f32 %v95, %v955
    %v957 = vand.u32 %v956, 4294901760
    %v958 = vsub.f32 %v956, %v957
    %v959 = vand.u32 %v958, 4294901760
    %960 = vmatpush.msra.mxu0 %v959
    %v961 = vand.u32 %v94, 4294901760
    %v962 = vsub.f32 %v94, %v961
    %v963 = vand.u32 %v962, 4294901760
    %v964 = vsub.f32 %v962, %v963
    %v965 = vand.u32 %v964, 4294901760
    %966 = vmatpush.msra.mxu0 %v965
    %v967 = vand.u32 %v93, 4294901760
    %v968 = vsub.f32 %v93, %v967
    %v969 = vand.u32 %v968, 4294901760
    %v970 = vsub.f32 %v968, %v969
    %v971 = vand.u32 %v970, 4294901760
    %972 = vmatpush.msra.mxu0 %v971
    %v973 = vand.u32 %v92, 4294901760
    %v974 = vsub.f32 %v92, %v973
    %v975 = vand.u32 %v974, 4294901760
    %v976 = vsub.f32 %v974, %v975
    %v977 = vand.u32 %v976, 4294901760
    %978 = vmatpush.msra.mxu0 %v977
    %v979 = vand.u32 %v91, 4294901760
    %v980 = vsub.f32 %v91, %v979
    %v981 = vand.u32 %v980, 4294901760
    %v982 = vsub.f32 %v980, %v981
    %v983 = vand.u32 %v982, 4294901760
    %984 = vmatpush.msra.mxu0 %v983
    %v985 = vand.u32 %v90, 4294901760
    %v986 = vsub.f32 %v90, %v985
    %v987 = vand.u32 %v986, 4294901760
    %v988 = vsub.f32 %v986, %v987
    %v989 = vand.u32 %v988, 4294901760
    %990 = vmatpush.msra.mxu0 %v989
    %v991 = vand.u32 %v89, 4294901760
    %v992 = vsub.f32 %v89, %v991
    %v993 = vand.u32 %v992, 4294901760
    %v994 = vsub.f32 %v992, %v993
    %v995 = vand.u32 %v994, 4294901760
    %996 = vmatpush.msra.mxu0 %v995
    %v997 = vand.u32 %v88, 4294901760
    %v998 = vsub.f32 %v88, %v997
    %v999 = vand.u32 %v998, 4294901760
    %v1000 = vsub.f32 %v998, %v999
    %v1001 = vand.u32 %v1000, 4294901760
    %1002 = vmatpush.msra.mxu0 %v1001
    %v1003 = vand.u32 %v87, 4294901760
    %v1004 = vsub.f32 %v87, %v1003
    %v1005 = vand.u32 %v1004, 4294901760
    %v1006 = vsub.f32 %v1004, %v1005
    %v1007 = vand.u32 %v1006, 4294901760
    %1008 = vmatpush.msra.mxu0 %v1007
    %v1009 = vand.u32 %v86, 4294901760
    %v1010 = vsub.f32 %v86, %v1009
    %v1011 = vand.u32 %v1010, 4294901760
    %v1012 = vsub.f32 %v1010, %v1011
    %v1013 = vand.u32 %v1012, 4294901760
    %1014 = vmatpush.msra.mxu0 %v1013
    %v1015 = vand.u32 %v85, 4294901760
    %v1016 = vsub.f32 %v85, %v1015
    %v1017 = vand.u32 %v1016, 4294901760
    %v1018 = vsub.f32 %v1016, %v1017
    %v1019 = vand.u32 %v1018, 4294901760
    %1020 = vmatpush.msra.mxu0 %v1019
    %v1021 = vand.u32 %v84, 4294901760
    %v1022 = vsub.f32 %v84, %v1021
    %v1023 = vand.u32 %v1022, 4294901760
    %v1024 = vsub.f32 %v1022, %v1023
    %v1025 = vand.u32 %v1024, 4294901760
    %1026 = vmatpush.msra.mxu0 %v1025
    %v1027 = vand.u32 %v83, 4294901760
    %v1028 = vsub.f32 %v83, %v1027
    %v1029 = vand.u32 %v1028, 4294901760
    %v1030 = vsub.f32 %v1028, %v1029
    %v1031 = vand.u32 %v1030, 4294901760
    %1032 = vmatpush.msra.mxu0 %v1031
    %v1033 = vand.u32 %v82, 4294901760
    %v1034 = vsub.f32 %v82, %v1033
    %v1035 = vand.u32 %v1034, 4294901760
    %v1036 = vsub.f32 %v1034, %v1035
    %v1037 = vand.u32 %v1036, 4294901760
    %1038 = vmatpush.msra.mxu0 %v1037
    %v1039 = vand.u32 %v81, 4294901760
    %v1040 = vsub.f32 %v81, %v1039
    %v1041 = vand.u32 %v1040, 4294901760
    %v1042 = vsub.f32 %v1040, %v1041
    %v1043 = vand.u32 %v1042, 4294901760
    %1044 = vmatpush.msra.mxu0 %v1043
    %v1045 = vand.u32 %v80, 4294901760
    %v1046 = vsub.f32 %v80, %v1045
    %v1047 = vand.u32 %v1046, 4294901760
    %v1048 = vsub.f32 %v1046, %v1047
    %v1049 = vand.u32 %v1048, 4294901760
    %1050 = vmatpush.msra.mxu0 %v1049
    %v1051 = vand.u32 %v214, 4294901760
    %1052 = vmatmul.f32.gmra.mxu0 %v1051
    %v1053 = vpop.f32.mrf.mxu0
    %v1054 = vadd.f32 %v953, %v1053
    %1055 = vdwg.mxu0
    %v1056 = vand.u32 %v95, 4294901760
    %v1057 = vsub.f32 %v95, %v1056
    %1058 = vmatpush.msra.mxu0 %v1057
    %v1059 = vand.u32 %v94, 4294901760
    %v1060 = vsub.f32 %v94, %v1059
    %1061 = vmatpush.msra.mxu0 %v1060
    %v1062 = vand.u32 %v93, 4294901760
    %v1063 = vsub.f32 %v93, %v1062
    %1064 = vmatpush.msra.mxu0 %v1063
    %v1065 = vand.u32 %v92, 4294901760
    %v1066 = vsub.f32 %v92, %v1065
    %1067 = vmatpush.msra.mxu0 %v1066
    %v1068 = vand.u32 %v91, 4294901760
    %v1069 = vsub.f32 %v91, %v1068
    %1070 = vmatpush.msra.mxu0 %v1069
    %v1071 = vand.u32 %v90, 4294901760
    %v1072 = vsub.f32 %v90, %v1071
    %1073 = vmatpush.msra.mxu0 %v1072
    %v1074 = vand.u32 %v89, 4294901760
    %v1075 = vsub.f32 %v89, %v1074
    %1076 = vmatpush.msra.mxu0 %v1075
    %v1077 = vand.u32 %v88, 4294901760
    %v1078 = vsub.f32 %v88, %v1077
    %1079 = vmatpush.msra.mxu0 %v1078
    %v1080 = vand.u32 %v87, 4294901760
    %v1081 = vsub.f32 %v87, %v1080
    %1082 = vmatpush.msra.mxu0 %v1081
    %v1083 = vand.u32 %v86, 4294901760
    %v1084 = vsub.f32 %v86, %v1083
    %1085 = vmatpush.msra.mxu0 %v1084
    %v1086 = vand.u32 %v85, 4294901760
    %v1087 = vsub.f32 %v85, %v1086
    %1088 = vmatpush.msra.mxu0 %v1087
    %v1089 = vand.u32 %v84, 4294901760
    %v1090 = vsub.f32 %v84, %v1089
    %1091 = vmatpush.msra.mxu0 %v1090
    %v1092 = vand.u32 %v83, 4294901760
    %v1093 = vsub.f32 %v83, %v1092
    %1094 = vmatpush.msra.mxu0 %v1093
    %v1095 = vand.u32 %v82, 4294901760
    %v1096 = vsub.f32 %v82, %v1095
    %1097 = vmatpush.msra.mxu0 %v1096
    %v1098 = vand.u32 %v81, 4294901760
    %v1099 = vsub.f32 %v81, %v1098
    %1100 = vmatpush.msra.mxu0 %v1099
    %v1101 = vand.u32 %v80, 4294901760
    %v1102 = vsub.f32 %v80, %v1101
    %1103 = vmatpush.msra.mxu0 %v1102
    %v1104 = vand.u32 %v214, 4294901760
    %v1105 = vsub.f32 %v214, %v1104
    %1106 = vmatmul.f32.gmra.mxu0 %v1105
    %v1107 = vpop.f32.mrf.mxu0
    %v1108 = vadd.f32 %v1054, %v1107
    %1109 = vdwg.mxu0
    %v1110 = vand.u32 %v95, 4294901760
    %1111 = vmatpush.msra.mxu0 %v1110
    %v1112 = vand.u32 %v94, 4294901760
    %1113 = vmatpush.msra.mxu0 %v1112
    %v1114 = vand.u32 %v93, 4294901760
    %1115 = vmatpush.msra.mxu0 %v1114
    %v1116 = vand.u32 %v92, 4294901760
    %1117 = vmatpush.msra.mxu0 %v1116
    %v1118 = vand.u32 %v91, 4294901760
    %1119 = vmatpush.msra.mxu0 %v1118
    %v1120 = vand.u32 %v90, 4294901760
    %1121 = vmatpush.msra.mxu0 %v1120
    %v1122 = vand.u32 %v89, 4294901760
    %1123 = vmatpush.msra.mxu0 %v1122
    %v1124 = vand.u32 %v88, 4294901760
    %1125 = vmatpush.msra.mxu0 %v1124
    %v1126 = vand.u32 %v87, 4294901760
    %1127 = vmatpush.msra.mxu0 %v1126
    %v1128 = vand.u32 %v86, 4294901760
    %1129 = vmatpush.msra.mxu0 %v1128
    %v1130 = vand.u32 %v85, 4294901760
    %1131 = vmatpush.msra.mxu0 %v1130
    %v1132 = vand.u32 %v84, 4294901760
    %1133 = vmatpush.msra.mxu0 %v1132
    %v1134 = vand.u32 %v83, 4294901760
    %1135 = vmatpush.msra.mxu0 %v1134
    %v1136 = vand.u32 %v82, 4294901760
    %1137 = vmatpush.msra.mxu0 %v1136
    %v1138 = vand.u32 %v81, 4294901760
    %1139 = vmatpush.msra.mxu0 %v1138
    %v1140 = vand.u32 %v80, 4294901760
    %1141 = vmatpush.msra.mxu0 %v1140
    %v1142 = vand.u32 %v214, 4294901760
    %v1143 = vsub.f32 %v214, %v1142
    %v1144 = vand.u32 %v1143, 4294901760
    %1145 = vmatmul.f32.gmra.mxu0 %v1144
    %v1146 = vpop.f32.mrf.mxu0
    %v1147 = vadd.f32 %v1108, %v1146
    %1148 = vdwg.mxu0
    %v1149 = vand.u32 %v95, 4294901760
    %v1150 = vsub.f32 %v95, %v1149
    %v1151 = vand.u32 %v1150, 4294901760
    %1152 = vmatpush.msra.mxu0 %v1151
    %v1153 = vand.u32 %v94, 4294901760
    %v1154 = vsub.f32 %v94, %v1153
    %v1155 = vand.u32 %v1154, 4294901760
    %1156 = vmatpush.msra.mxu0 %v1155
    %v1157 = vand.u32 %v93, 4294901760
    %v1158 = vsub.f32 %v93, %v1157
    %v1159 = vand.u32 %v1158, 4294901760
    %1160 = vmatpush.msra.mxu0 %v1159
    %v1161 = vand.u32 %v92, 4294901760
    %v1162 = vsub.f32 %v92, %v1161
    %v1163 = vand.u32 %v1162, 4294901760
    %1164 = vmatpush.msra.mxu0 %v1163
    %v1165 = vand.u32 %v91, 4294901760
    %v1166 = vsub.f32 %v91, %v1165
    %v1167 = vand.u32 %v1166, 4294901760
    %1168 = vmatpush.msra.mxu0 %v1167
    %v1169 = vand.u32 %v90, 4294901760
    %v1170 = vsub.f32 %v90, %v1169
    %v1171 = vand.u32 %v1170, 4294901760
    %1172 = vmatpush.msra.mxu0 %v1171
    %v1173 = vand.u32 %v89, 4294901760
    %v1174 = vsub.f32 %v89, %v1173
    %v1175 = vand.u32 %v1174, 4294901760
    %1176 = vmatpush.msra.mxu0 %v1175
    %v1177 = vand.u32 %v88, 4294901760
    %v1178 = vsub.f32 %v88, %v1177
    %v1179 = vand.u32 %v1178, 4294901760
    %1180 = vmatpush.msra.mxu0 %v1179
    %v1181 = vand.u32 %v87, 4294901760
    %v1182 = vsub.f32 %v87, %v1181
    %v1183 = vand.u32 %v1182, 4294901760
    %1184 = vmatpush.msra.mxu0 %v1183
    %v1185 = vand.u32 %v86, 4294901760
    %v1186 = vsub.f32 %v86, %v1185
    %v1187 = vand.u32 %v1186, 4294901760
    %1188 = vmatpush.msra.mxu0 %v1187
    %v1189 = vand.u32 %v85, 4294901760
    %v1190 = vsub.f32 %v85, %v1189
    %v1191 = vand.u32 %v1190, 4294901760
    %1192 = vmatpush.msra.mxu0 %v1191
    %v1193 = vand.u32 %v84, 4294901760
    %v1194 = vsub.f32 %v84, %v1193
    %v1195 = vand.u32 %v1194, 4294901760
    %1196 = vmatpush.msra.mxu0 %v1195
    %v1197 = vand.u32 %v83, 4294901760
    %v1198 = vsub.f32 %v83, %v1197
    %v1199 = vand.u32 %v1198, 4294901760
    %1200 = vmatpush.msra.mxu0 %v1199
    %v1201 = vand.u32 %v82, 4294901760
    %v1202 = vsub.f32 %v82, %v1201
    %v1203 = vand.u32 %v1202, 4294901760
    %1204 = vmatpush.msra.mxu0 %v1203
    %v1205 = vand.u32 %v81, 4294901760
    %v1206 = vsub.f32 %v81, %v1205
    %v1207 = vand.u32 %v1206, 4294901760
    %1208 = vmatpush.msra.mxu0 %v1207
    %v1209 = vand.u32 %v80, 4294901760
    %v1210 = vsub.f32 %v80, %v1209
    %v1211 = vand.u32 %v1210, 4294901760
    %1212 = vmatpush.msra.mxu0 %v1211
    %v1213 = vand.u32 %v214, 4294901760
    %1214 = vmatmul.f32.gmra.mxu0 %v1213
    %v1215 = vpop.f32.mrf.mxu0
    %v1216 = vadd.f32 %v1147, %v1215
    %1217 = vdwg.mxu0
    %v1218 = vand.u32 %v95, 4294901760
    %1219 = vmatpush.msra.mxu0 %v1218
    %v1220 = vand.u32 %v94, 4294901760
    %1221 = vmatpush.msra.mxu0 %v1220
    %v1222 = vand.u32 %v93, 4294901760
    %1223 = vmatpush.msra.mxu0 %v1222
    %v1224 = vand.u32 %v92, 4294901760
    %1225 = vmatpush.msra.mxu0 %v1224
    %v1226 = vand.u32 %v91, 4294901760
    %1227 = vmatpush.msra.mxu0 %v1226
    %v1228 = vand.u32 %v90, 4294901760
    %1229 = vmatpush.msra.mxu0 %v1228
    %v1230 = vand.u32 %v89, 4294901760
    %1231 = vmatpush.msra.mxu0 %v1230
    %v1232 = vand.u32 %v88, 4294901760
    %1233 = vmatpush.msra.mxu0 %v1232
    %v1234 = vand.u32 %v87, 4294901760
    %1235 = vmatpush.msra.mxu0 %v1234
    %v1236 = vand.u32 %v86, 4294901760
    %1237 = vmatpush.msra.mxu0 %v1236
    %v1238 = vand.u32 %v85, 4294901760
    %1239 = vmatpush.msra.mxu0 %v1238
    %v1240 = vand.u32 %v84, 4294901760
    %1241 = vmatpush.msra.mxu0 %v1240
    %v1242 = vand.u32 %v83, 4294901760
    %1243 = vmatpush.msra.mxu0 %v1242
    %v1244 = vand.u32 %v82, 4294901760
    %1245 = vmatpush.msra.mxu0 %v1244
    %v1246 = vand.u32 %v81, 4294901760
    %1247 = vmatpush.msra.mxu0 %v1246
    %v1248 = vand.u32 %v80, 4294901760
    %1249 = vmatpush.msra.mxu0 %v1248
    %v1250 = vand.u32 %v214, 4294901760
    %1251 = vmatmul.f32.gmra.mxu0 %v1250
    %v1252 = vpop.f32.mrf.mxu0
    %v1253 = vadd.f32 %v1216, %v1252
    %1254 = vdwg.mxu0
    %v1255 = vand.u32 %v111, 4294901760
    %1256 = vmatpush.msra.mxu0 %v1255
    %v1257 = vand.u32 %v110, 4294901760
    %1258 = vmatpush.msra.mxu0 %v1257
    %v1259 = vand.u32 %v109, 4294901760
    %1260 = vmatpush.msra.mxu0 %v1259
    %v1261 = vand.u32 %v108, 4294901760
    %1262 = vmatpush.msra.mxu0 %v1261
    %v1263 = vand.u32 %v107, 4294901760
    %1264 = vmatpush.msra.mxu0 %v1263
    %v1265 = vand.u32 %v106, 4294901760
    %1266 = vmatpush.msra.mxu0 %v1265
    %v1267 = vand.u32 %v105, 4294901760
    %1268 = vmatpush.msra.mxu0 %v1267
    %v1269 = vand.u32 %v104, 4294901760
    %1270 = vmatpush.msra.mxu0 %v1269
    %v1271 = vand.u32 %v103, 4294901760
    %1272 = vmatpush.msra.mxu0 %v1271
    %v1273 = vand.u32 %v102, 4294901760
    %1274 = vmatpush.msra.mxu0 %v1273
    %v1275 = vand.u32 %v101, 4294901760
    %1276 = vmatpush.msra.mxu0 %v1275
    %v1277 = vand.u32 %v100, 4294901760
    %1278 = vmatpush.msra.mxu0 %v1277
    %v1279 = vand.u32 %v99, 4294901760
    %1280 = vmatpush.msra.mxu0 %v1279
    %v1281 = vand.u32 %v98, 4294901760
    %1282 = vmatpush.msra.mxu0 %v1281
    %v1283 = vand.u32 %v97, 4294901760
    %1284 = vmatpush.msra.mxu0 %v1283
    %v1285 = vand.u32 %v96, 4294901760
    %1286 = vmatpush.msra.mxu0 %v1285
    %v1287 = vand.u32 %v215, 4294901760
    %v1288 = vsub.f32 %v215, %v1287
    %v1289 = vand.u32 %v1288, 4294901760
    %v1290 = vsub.f32 %v1288, %v1289
    %v1291 = vand.u32 %v1290, 4294901760
    %1292 = vmatmul.f32.gmra.mxu0 %v1291
    %v1293 = vpop.f32.mrf.mxu0
    %v1294 = vadd.f32 %v1253, %v1293
    %1295 = vdwg.mxu0
    %v1296 = vand.u32 %v111, 4294901760
    %v1297 = vsub.f32 %v111, %v1296
    %v1298 = vand.u32 %v1297, 4294901760
    %v1299 = vsub.f32 %v1297, %v1298
    %v1300 = vand.u32 %v1299, 4294901760
    %1301 = vmatpush.msra.mxu0 %v1300
    %v1302 = vand.u32 %v110, 4294901760
    %v1303 = vsub.f32 %v110, %v1302
    %v1304 = vand.u32 %v1303, 4294901760
    %v1305 = vsub.f32 %v1303, %v1304
    %v1306 = vand.u32 %v1305, 4294901760
    %1307 = vmatpush.msra.mxu0 %v1306
    %v1308 = vand.u32 %v109, 4294901760
    %v1309 = vsub.f32 %v109, %v1308
    %v1310 = vand.u32 %v1309, 4294901760
    %v1311 = vsub.f32 %v1309, %v1310
    %v1312 = vand.u32 %v1311, 4294901760
    %1313 = vmatpush.msra.mxu0 %v1312
    %v1314 = vand.u32 %v108, 4294901760
    %v1315 = vsub.f32 %v108, %v1314
    %v1316 = vand.u32 %v1315, 4294901760
    %v1317 = vsub.f32 %v1315, %v1316
    %v1318 = vand.u32 %v1317, 4294901760
    %1319 = vmatpush.msra.mxu0 %v1318
    %v1320 = vand.u32 %v107, 4294901760
    %v1321 = vsub.f32 %v107, %v1320
    %v1322 = vand.u32 %v1321, 4294901760
    %v1323 = vsub.f32 %v1321, %v1322
    %v1324 = vand.u32 %v1323, 4294901760
    %1325 = vmatpush.msra.mxu0 %v1324
    %v1326 = vand.u32 %v106, 4294901760
    %v1327 = vsub.f32 %v106, %v1326
    %v1328 = vand.u32 %v1327, 4294901760
    %v1329 = vsub.f32 %v1327, %v1328
    %v1330 = vand.u32 %v1329, 4294901760
    %1331 = vmatpush.msra.mxu0 %v1330
    %v1332 = vand.u32 %v105, 4294901760
    %v1333 = vsub.f32 %v105, %v1332
    %v1334 = vand.u32 %v1333, 4294901760
    %v1335 = vsub.f32 %v1333, %v1334
    %v1336 = vand.u32 %v1335, 4294901760
    %1337 = vmatpush.msra.mxu0 %v1336
    %v1338 = vand.u32 %v104, 4294901760
    %v1339 = vsub.f32 %v104, %v1338
    %v1340 = vand.u32 %v1339, 4294901760
    %v1341 = vsub.f32 %v1339, %v1340
    %v1342 = vand.u32 %v1341, 4294901760
    %1343 = vmatpush.msra.mxu0 %v1342
    %v1344 = vand.u32 %v103, 4294901760
    %v1345 = vsub.f32 %v103, %v1344
    %v1346 = vand.u32 %v1345, 4294901760
    %v1347 = vsub.f32 %v1345, %v1346
    %v1348 = vand.u32 %v1347, 4294901760
    %1349 = vmatpush.msra.mxu0 %v1348
    %v1350 = vand.u32 %v102, 4294901760
    %v1351 = vsub.f32 %v102, %v1350
    %v1352 = vand.u32 %v1351, 4294901760
    %v1353 = vsub.f32 %v1351, %v1352
    %v1354 = vand.u32 %v1353, 4294901760
    %1355 = vmatpush.msra.mxu0 %v1354
    %v1356 = vand.u32 %v101, 4294901760
    %v1357 = vsub.f32 %v101, %v1356
    %v1358 = vand.u32 %v1357, 4294901760
    %v1359 = vsub.f32 %v1357, %v1358
    %v1360 = vand.u32 %v1359, 4294901760
    %1361 = vmatpush.msra.mxu0 %v1360
    %v1362 = vand.u32 %v100, 4294901760
    %v1363 = vsub.f32 %v100, %v1362
    %v1364 = vand.u32 %v1363, 4294901760
    %v1365 = vsub.f32 %v1363, %v1364
    %v1366 = vand.u32 %v1365, 4294901760
    %1367 = vmatpush.msra.mxu0 %v1366
    %v1368 = vand.u32 %v99, 4294901760
    %v1369 = vsub.f32 %v99, %v1368
    %v1370 = vand.u32 %v1369, 4294901760
    %v1371 = vsub.f32 %v1369, %v1370
    %v1372 = vand.u32 %v1371, 4294901760
    %1373 = vmatpush.msra.mxu0 %v1372
    %v1374 = vand.u32 %v98, 4294901760
    %v1375 = vsub.f32 %v98, %v1374
    %v1376 = vand.u32 %v1375, 4294901760
    %v1377 = vsub.f32 %v1375, %v1376
    %v1378 = vand.u32 %v1377, 4294901760
    %1379 = vmatpush.msra.mxu0 %v1378
    %v1380 = vand.u32 %v97, 4294901760
    %v1381 = vsub.f32 %v97, %v1380
    %v1382 = vand.u32 %v1381, 4294901760
    %v1383 = vsub.f32 %v1381, %v1382
    %v1384 = vand.u32 %v1383, 4294901760
    %1385 = vmatpush.msra.mxu0 %v1384
    %v1386 = vand.u32 %v96, 4294901760
    %v1387 = vsub.f32 %v96, %v1386
    %v1388 = vand.u32 %v1387, 4294901760
    %v1389 = vsub.f32 %v1387, %v1388
    %v1390 = vand.u32 %v1389, 4294901760
    %1391 = vmatpush.msra.mxu0 %v1390
    %v1392 = vand.u32 %v215, 4294901760
    %1393 = vmatmul.f32.gmra.mxu0 %v1392
    %v1394 = vpop.f32.mrf.mxu0
    %v1395 = vadd.f32 %v1294, %v1394
    %1396 = vdwg.mxu0
    %v1397 = vand.u32 %v111, 4294901760
    %v1398 = vsub.f32 %v111, %v1397
    %1399 = vmatpush.msra.mxu0 %v1398
    %v1400 = vand.u32 %v110, 4294901760
    %v1401 = vsub.f32 %v110, %v1400
    %1402 = vmatpush.msra.mxu0 %v1401
    %v1403 = vand.u32 %v109, 4294901760
    %v1404 = vsub.f32 %v109, %v1403
    %1405 = vmatpush.msra.mxu0 %v1404
    %v1406 = vand.u32 %v108, 4294901760
    %v1407 = vsub.f32 %v108, %v1406
    %1408 = vmatpush.msra.mxu0 %v1407
    %v1409 = vand.u32 %v107, 4294901760
    %v1410 = vsub.f32 %v107, %v1409
    %1411 = vmatpush.msra.mxu0 %v1410
    %v1412 = vand.u32 %v106, 4294901760
    %v1413 = vsub.f32 %v106, %v1412
    %1414 = vmatpush.msra.mxu0 %v1413
    %v1415 = vand.u32 %v105, 4294901760
    %v1416 = vsub.f32 %v105, %v1415
    %1417 = vmatpush.msra.mxu0 %v1416
    %v1418 = vand.u32 %v104, 4294901760
    %v1419 = vsub.f32 %v104, %v1418
    %1420 = vmatpush.msra.mxu0 %v1419
    %v1421 = vand.u32 %v103, 4294901760
    %v1422 = vsub.f32 %v103, %v1421
    %1423 = vmatpush.msra.mxu0 %v1422
    %v1424 = vand.u32 %v102, 4294901760
    %v1425 = vsub.f32 %v102, %v1424
    %1426 = vmatpush.msra.mxu0 %v1425
    %v1427 = vand.u32 %v101, 4294901760
    %v1428 = vsub.f32 %v101, %v1427
    %1429 = vmatpush.msra.mxu0 %v1428
    %v1430 = vand.u32 %v100, 4294901760
    %v1431 = vsub.f32 %v100, %v1430
    %1432 = vmatpush.msra.mxu0 %v1431
    %v1433 = vand.u32 %v99, 4294901760
    %v1434 = vsub.f32 %v99, %v1433
    %1435 = vmatpush.msra.mxu0 %v1434
    %v1436 = vand.u32 %v98, 4294901760
    %v1437 = vsub.f32 %v98, %v1436
    %1438 = vmatpush.msra.mxu0 %v1437
    %v1439 = vand.u32 %v97, 4294901760
    %v1440 = vsub.f32 %v97, %v1439
    %1441 = vmatpush.msra.mxu0 %v1440
    %v1442 = vand.u32 %v96, 4294901760
    %v1443 = vsub.f32 %v96, %v1442
    %1444 = vmatpush.msra.mxu0 %v1443
    %v1445 = vand.u32 %v215, 4294901760
    %v1446 = vsub.f32 %v215, %v1445
    %1447 = vmatmul.f32.gmra.mxu0 %v1446
    %v1448 = vpop.f32.mrf.mxu0
    %v1449 = vadd.f32 %v1395, %v1448
    %1450 = vdwg.mxu0
    %v1451 = vand.u32 %v111, 4294901760
    %1452 = vmatpush.msra.mxu0 %v1451
    %v1453 = vand.u32 %v110, 4294901760
    %1454 = vmatpush.msra.mxu0 %v1453
    %v1455 = vand.u32 %v109, 4294901760
    %1456 = vmatpush.msra.mxu0 %v1455
    %v1457 = vand.u32 %v108, 4294901760
    %1458 = vmatpush.msra.mxu0 %v1457
    %v1459 = vand.u32 %v107, 4294901760
    %1460 = vmatpush.msra.mxu0 %v1459
    %v1461 = vand.u32 %v106, 4294901760
    %1462 = vmatpush.msra.mxu0 %v1461
    %v1463 = vand.u32 %v105, 4294901760
    %1464 = vmatpush.msra.mxu0 %v1463
    %v1465 = vand.u32 %v104, 4294901760
    %1466 = vmatpush.msra.mxu0 %v1465
    %v1467 = vand.u32 %v103, 4294901760
    %1468 = vmatpush.msra.mxu0 %v1467
    %v1469 = vand.u32 %v102, 4294901760
    %1470 = vmatpush.msra.mxu0 %v1469
    %v1471 = vand.u32 %v101, 4294901760
    %1472 = vmatpush.msra.mxu0 %v1471
    %v1473 = vand.u32 %v100, 4294901760
    %1474 = vmatpush.msra.mxu0 %v1473
    %v1475 = vand.u32 %v99, 4294901760
    %1476 = vmatpush.msra.mxu0 %v1475
    %v1477 = vand.u32 %v98, 4294901760
    %1478 = vmatpush.msra.mxu0 %v1477
    %v1479 = vand.u32 %v97, 4294901760
    %1480 = vmatpush.msra.mxu0 %v1479
    %v1481 = vand.u32 %v96, 4294901760
    %1482 = vmatpush.msra.mxu0 %v1481
    %v1483 = vand.u32 %v215, 4294901760
    %v1484 = vsub.f32 %v215, %v1483
    %v1485 = vand.u32 %v1484, 4294901760
    %1486 = vmatmul.f32.gmra.mxu0 %v1485
    %v1487 = vpop.f32.mrf.mxu0
    %v1488 = vadd.f32 %v1449, %v1487
    %1489 = vdwg.mxu0
    %v1490 = vand.u32 %v111, 4294901760
    %v1491 = vsub.f32 %v111, %v1490
    %v1492 = vand.u32 %v1491, 4294901760
    %1493 = vmatpush.msra.mxu0 %v1492
    %v1494 = vand.u32 %v110, 4294901760
    %v1495 = vsub.f32 %v110, %v1494
    %v1496 = vand.u32 %v1495, 4294901760
    %1497 = vmatpush.msra.mxu0 %v1496
    %v1498 = vand.u32 %v109, 4294901760
    %v1499 = vsub.f32 %v109, %v1498
    %v1500 = vand.u32 %v1499, 4294901760
    %1501 = vmatpush.msra.mxu0 %v1500
    %v1502 = vand.u32 %v108, 4294901760
    %v1503 = vsub.f32 %v108, %v1502
    %v1504 = vand.u32 %v1503, 4294901760
    %1505 = vmatpush.msra.mxu0 %v1504
    %v1506 = vand.u32 %v107, 4294901760
    %v1507 = vsub.f32 %v107, %v1506
    %v1508 = vand.u32 %v1507, 4294901760
    %1509 = vmatpush.msra.mxu0 %v1508
    %v1510 = vand.u32 %v106, 4294901760
    %v1511 = vsub.f32 %v106, %v1510
    %v1512 = vand.u32 %v1511, 4294901760
    %1513 = vmatpush.msra.mxu0 %v1512
    %v1514 = vand.u32 %v105, 4294901760
    %v1515 = vsub.f32 %v105, %v1514
    %v1516 = vand.u32 %v1515, 4294901760
    %1517 = vmatpush.msra.mxu0 %v1516
    %v1518 = vand.u32 %v104, 4294901760
    %v1519 = vsub.f32 %v104, %v1518
    %v1520 = vand.u32 %v1519, 4294901760
    %1521 = vmatpush.msra.mxu0 %v1520
    %v1522 = vand.u32 %v103, 4294901760
    %v1523 = vsub.f32 %v103, %v1522
    %v1524 = vand.u32 %v1523, 4294901760
    %1525 = vmatpush.msra.mxu0 %v1524
    %v1526 = vand.u32 %v102, 4294901760
    %v1527 = vsub.f32 %v102, %v1526
    %v1528 = vand.u32 %v1527, 4294901760
    %1529 = vmatpush.msra.mxu0 %v1528
    %v1530 = vand.u32 %v101, 4294901760
    %v1531 = vsub.f32 %v101, %v1530
    %v1532 = vand.u32 %v1531, 4294901760
    %1533 = vmatpush.msra.mxu0 %v1532
    %v1534 = vand.u32 %v100, 4294901760
    %v1535 = vsub.f32 %v100, %v1534
    %v1536 = vand.u32 %v1535, 4294901760
    %1537 = vmatpush.msra.mxu0 %v1536
    %v1538 = vand.u32 %v99, 4294901760
    %v1539 = vsub.f32 %v99, %v1538
    %v1540 = vand.u32 %v1539, 4294901760
    %1541 = vmatpush.msra.mxu0 %v1540
    %v1542 = vand.u32 %v98, 4294901760
    %v1543 = vsub.f32 %v98, %v1542
    %v1544 = vand.u32 %v1543, 4294901760
    %1545 = vmatpush.msra.mxu0 %v1544
    %v1546 = vand.u32 %v97, 4294901760
    %v1547 = vsub.f32 %v97, %v1546
    %v1548 = vand.u32 %v1547, 4294901760
    %1549 = vmatpush.msra.mxu0 %v1548
    %v1550 = vand.u32 %v96, 4294901760
    %v1551 = vsub.f32 %v96, %v1550
    %v1552 = vand.u32 %v1551, 4294901760
    %1553 = vmatpush.msra.mxu0 %v1552
    %v1554 = vand.u32 %v215, 4294901760
    %1555 = vmatmul.f32.gmra.mxu0 %v1554
    %v1556 = vpop.f32.mrf.mxu0
    %v1557 = vadd.f32 %v1488, %v1556
    %1558 = vdwg.mxu0
    %v1559 = vand.u32 %v111, 4294901760
    %1560 = vmatpush.msra.mxu0 %v1559
    %v1561 = vand.u32 %v110, 4294901760
    %1562 = vmatpush.msra.mxu0 %v1561
    %v1563 = vand.u32 %v109, 4294901760
    %1564 = vmatpush.msra.mxu0 %v1563
    %v1565 = vand.u32 %v108, 4294901760
    %1566 = vmatpush.msra.mxu0 %v1565
    %v1567 = vand.u32 %v107, 4294901760
    %1568 = vmatpush.msra.mxu0 %v1567
    %v1569 = vand.u32 %v106, 4294901760
    %1570 = vmatpush.msra.mxu0 %v1569
    %v1571 = vand.u32 %v105, 4294901760
    %1572 = vmatpush.msra.mxu0 %v1571
    %v1573 = vand.u32 %v104, 4294901760
    %1574 = vmatpush.msra.mxu0 %v1573
    %v1575 = vand.u32 %v103, 4294901760
    %1576 = vmatpush.msra.mxu0 %v1575
    %v1577 = vand.u32 %v102, 4294901760
    %1578 = vmatpush.msra.mxu0 %v1577
    %v1579 = vand.u32 %v101, 4294901760
    %1580 = vmatpush.msra.mxu0 %v1579
    %v1581 = vand.u32 %v100, 4294901760
    %1582 = vmatpush.msra.mxu0 %v1581
    %v1583 = vand.u32 %v99, 4294901760
    %1584 = vmatpush.msra.mxu0 %v1583
    %v1585 = vand.u32 %v98, 4294901760
    %1586 = vmatpush.msra.mxu0 %v1585
    %v1587 = vand.u32 %v97, 4294901760
    %1588 = vmatpush.msra.mxu0 %v1587
    %v1589 = vand.u32 %v96, 4294901760
    %1590 = vmatpush.msra.mxu0 %v1589
    %v1591 = vand.u32 %v215, 4294901760
    %1592 = vmatmul.f32.gmra.mxu0 %v1591
    %v1593 = vpop.f32.mrf.mxu0
    %v1594 = vadd.f32 %v1557, %v1593
    %1595 = vdwg.mxu0
    %v1596 = vand.u32 %v127, 4294901760
    %1597 = vmatpush.msra.mxu0 %v1596
    %v1598 = vand.u32 %v126, 4294901760
    %1599 = vmatpush.msra.mxu0 %v1598
    %v1600 = vand.u32 %v125, 4294901760
    %1601 = vmatpush.msra.mxu0 %v1600
    %v1602 = vand.u32 %v124, 4294901760
    %1603 = vmatpush.msra.mxu0 %v1602
    %v1604 = vand.u32 %v123, 4294901760
    %1605 = vmatpush.msra.mxu0 %v1604
    %v1606 = vand.u32 %v122, 4294901760
    %1607 = vmatpush.msra.mxu0 %v1606
    %v1608 = vand.u32 %v121, 4294901760
    %1609 = vmatpush.msra.mxu0 %v1608
    %v1610 = vand.u32 %v120, 4294901760
    %1611 = vmatpush.msra.mxu0 %v1610
    %v1612 = vand.u32 %v119, 4294901760
    %1613 = vmatpush.msra.mxu0 %v1612
    %v1614 = vand.u32 %v118, 4294901760
    %1615 = vmatpush.msra.mxu0 %v1614
    %v1616 = vand.u32 %v117, 4294901760
    %1617 = vmatpush.msra.mxu0 %v1616
    %v1618 = vand.u32 %v116, 4294901760
    %1619 = vmatpush.msra.mxu0 %v1618
    %v1620 = vand.u32 %v115, 4294901760
    %1621 = vmatpush.msra.mxu0 %v1620
    %v1622 = vand.u32 %v114, 4294901760
    %1623 = vmatpush.msra.mxu0 %v1622
    %v1624 = vand.u32 %v113, 4294901760
    %1625 = vmatpush.msra.mxu0 %v1624
    %v1626 = vand.u32 %v112, 4294901760
    %1627 = vmatpush.msra.mxu0 %v1626
    %v1628 = vand.u32 %v216, 4294901760
    %v1629 = vsub.f32 %v216, %v1628
    %v1630 = vand.u32 %v1629, 4294901760
    %v1631 = vsub.f32 %v1629, %v1630
    %v1632 = vand.u32 %v1631, 4294901760
    %1633 = vmatmul.f32.gmra.mxu0 %v1632
    %v1634 = vpop.f32.mrf.mxu0
    %v1635 = vadd.f32 %v1594, %v1634
    %1636 = vdwg.mxu0
    %v1637 = vand.u32 %v127, 4294901760
    %v1638 = vsub.f32 %v127, %v1637
    %v1639 = vand.u32 %v1638, 4294901760
    %v1640 = vsub.f32 %v1638, %v1639
    %v1641 = vand.u32 %v1640, 4294901760
    %1642 = vmatpush.msra.mxu0 %v1641
    %v1643 = vand.u32 %v126, 4294901760
    %v1644 = vsub.f32 %v126, %v1643
    %v1645 = vand.u32 %v1644, 4294901760
    %v1646 = vsub.f32 %v1644, %v1645
    %v1647 = vand.u32 %v1646, 4294901760
    %1648 = vmatpush.msra.mxu0 %v1647
    %v1649 = vand.u32 %v125, 4294901760
    %v1650 = vsub.f32 %v125, %v1649
    %v1651 = vand.u32 %v1650, 4294901760
    %v1652 = vsub.f32 %v1650, %v1651
    %v1653 = vand.u32 %v1652, 4294901760
    %1654 = vmatpush.msra.mxu0 %v1653
    %v1655 = vand.u32 %v124, 4294901760
    %v1656 = vsub.f32 %v124, %v1655
    %v1657 = vand.u32 %v1656, 4294901760
    %v1658 = vsub.f32 %v1656, %v1657
    %v1659 = vand.u32 %v1658, 4294901760
    %1660 = vmatpush.msra.mxu0 %v1659
    %v1661 = vand.u32 %v123, 4294901760
    %v1662 = vsub.f32 %v123, %v1661
    %v1663 = vand.u32 %v1662, 4294901760
    %v1664 = vsub.f32 %v1662, %v1663
    %v1665 = vand.u32 %v1664, 4294901760
    %1666 = vmatpush.msra.mxu0 %v1665
    %v1667 = vand.u32 %v122, 4294901760
    %v1668 = vsub.f32 %v122, %v1667
    %v1669 = vand.u32 %v1668, 4294901760
    %v1670 = vsub.f32 %v1668, %v1669
    %v1671 = vand.u32 %v1670, 4294901760
    %1672 = vmatpush.msra.mxu0 %v1671
    %v1673 = vand.u32 %v121, 4294901760
    %v1674 = vsub.f32 %v121, %v1673
    %v1675 = vand.u32 %v1674, 4294901760
    %v1676 = vsub.f32 %v1674, %v1675
    %v1677 = vand.u32 %v1676, 4294901760
    %1678 = vmatpush.msra.mxu0 %v1677
    %v1679 = vand.u32 %v120, 4294901760
    %v1680 = vsub.f32 %v120, %v1679
    %v1681 = vand.u32 %v1680, 4294901760
    %v1682 = vsub.f32 %v1680, %v1681
    %v1683 = vand.u32 %v1682, 4294901760
    %1684 = vmatpush.msra.mxu0 %v1683
    %v1685 = vand.u32 %v119, 4294901760
    %v1686 = vsub.f32 %v119, %v1685
    %v1687 = vand.u32 %v1686, 4294901760
    %v1688 = vsub.f32 %v1686, %v1687
    %v1689 = vand.u32 %v1688, 4294901760
    %1690 = vmatpush.msra.mxu0 %v1689
    %v1691 = vand.u32 %v118, 4294901760
    %v1692 = vsub.f32 %v118, %v1691
    %v1693 = vand.u32 %v1692, 4294901760
    %v1694 = vsub.f32 %v1692, %v1693
    %v1695 = vand.u32 %v1694, 4294901760
    %1696 = vmatpush.msra.mxu0 %v1695
    %v1697 = vand.u32 %v117, 4294901760
    %v1698 = vsub.f32 %v117, %v1697
    %v1699 = vand.u32 %v1698, 4294901760
    %v1700 = vsub.f32 %v1698, %v1699
    %v1701 = vand.u32 %v1700, 4294901760
    %1702 = vmatpush.msra.mxu0 %v1701
    %v1703 = vand.u32 %v116, 4294901760
    %v1704 = vsub.f32 %v116, %v1703
    %v1705 = vand.u32 %v1704, 4294901760
    %v1706 = vsub.f32 %v1704, %v1705
    %v1707 = vand.u32 %v1706, 4294901760
    %1708 = vmatpush.msra.mxu0 %v1707
    %v1709 = vand.u32 %v115, 4294901760
    %v1710 = vsub.f32 %v115, %v1709
    %v1711 = vand.u32 %v1710, 4294901760
    %v1712 = vsub.f32 %v1710, %v1711
    %v1713 = vand.u32 %v1712, 4294901760
    %1714 = vmatpush.msra.mxu0 %v1713
    %v1715 = vand.u32 %v114, 4294901760
    %v1716 = vsub.f32 %v114, %v1715
    %v1717 = vand.u32 %v1716, 4294901760
    %v1718 = vsub.f32 %v1716, %v1717
    %v1719 = vand.u32 %v1718, 4294901760
    %1720 = vmatpush.msra.mxu0 %v1719
    %v1721 = vand.u32 %v113, 4294901760
    %v1722 = vsub.f32 %v113, %v1721
    %v1723 = vand.u32 %v1722, 4294901760
    %v1724 = vsub.f32 %v1722, %v1723
    %v1725 = vand.u32 %v1724, 4294901760
    %1726 = vmatpush.msra.mxu0 %v1725
    %v1727 = vand.u32 %v112, 4294901760
    %v1728 = vsub.f32 %v112, %v1727
    %v1729 = vand.u32 %v1728, 4294901760
    %v1730 = vsub.f32 %v1728, %v1729
    %v1731 = vand.u32 %v1730, 4294901760
    %1732 = vmatpush.msra.mxu0 %v1731
    %v1733 = vand.u32 %v216, 4294901760
    %1734 = vmatmul.f32.gmra.mxu0 %v1733
    %v1735 = vpop.f32.mrf.mxu0
    %v1736 = vadd.f32 %v1635, %v1735
    %1737 = vdwg.mxu0
    %v1738 = vand.u32 %v127, 4294901760
    %v1739 = vsub.f32 %v127, %v1738
    %1740 = vmatpush.msra.mxu0 %v1739
    %v1741 = vand.u32 %v126, 4294901760
    %v1742 = vsub.f32 %v126, %v1741
    %1743 = vmatpush.msra.mxu0 %v1742
    %v1744 = vand.u32 %v125, 4294901760
    %v1745 = vsub.f32 %v125, %v1744
    %1746 = vmatpush.msra.mxu0 %v1745
    %v1747 = vand.u32 %v124, 4294901760
    %v1748 = vsub.f32 %v124, %v1747
    %1749 = vmatpush.msra.mxu0 %v1748
    %v1750 = vand.u32 %v123, 4294901760
    %v1751 = vsub.f32 %v123, %v1750
    %1752 = vmatpush.msra.mxu0 %v1751
    %v1753 = vand.u32 %v122, 4294901760
    %v1754 = vsub.f32 %v122, %v1753
    %1755 = vmatpush.msra.mxu0 %v1754
    %v1756 = vand.u32 %v121, 4294901760
    %v1757 = vsub.f32 %v121, %v1756
    %1758 = vmatpush.msra.mxu0 %v1757
    %v1759 = vand.u32 %v120, 4294901760
    %v1760 = vsub.f32 %v120, %v1759
    %1761 = vmatpush.msra.mxu0 %v1760
    %v1762 = vand.u32 %v119, 4294901760
    %v1763 = vsub.f32 %v119, %v1762
    %1764 = vmatpush.msra.mxu0 %v1763
    %v1765 = vand.u32 %v118, 4294901760
    %v1766 = vsub.f32 %v118, %v1765
    %1767 = vmatpush.msra.mxu0 %v1766
    %v1768 = vand.u32 %v117, 4294901760
    %v1769 = vsub.f32 %v117, %v1768
    %1770 = vmatpush.msra.mxu0 %v1769
    %v1771 = vand.u32 %v116, 4294901760
    %v1772 = vsub.f32 %v116, %v1771
    %1773 = vmatpush.msra.mxu0 %v1772
    %v1774 = vand.u32 %v115, 4294901760
    %v1775 = vsub.f32 %v115, %v1774
    %1776 = vmatpush.msra.mxu0 %v1775
    %v1777 = vand.u32 %v114, 4294901760
    %v1778 = vsub.f32 %v114, %v1777
    %1779 = vmatpush.msra.mxu0 %v1778
    %v1780 = vand.u32 %v113, 4294901760
    %v1781 = vsub.f32 %v113, %v1780
    %1782 = vmatpush.msra.mxu0 %v1781
    %v1783 = vand.u32 %v112, 4294901760
    %v1784 = vsub.f32 %v112, %v1783
    %1785 = vmatpush.msra.mxu0 %v1784
    %v1786 = vand.u32 %v216, 4294901760
    %v1787 = vsub.f32 %v216, %v1786
    %1788 = vmatmul.f32.gmra.mxu0 %v1787
    %v1789 = vpop.f32.mrf.mxu0
    %v1790 = vadd.f32 %v1736, %v1789
    %1791 = vdwg.mxu0
    %v1792 = vand.u32 %v127, 4294901760
    %1793 = vmatpush.msra.mxu0 %v1792
    %v1794 = vand.u32 %v126, 4294901760
    %1795 = vmatpush.msra.mxu0 %v1794
    %v1796 = vand.u32 %v125, 4294901760
    %1797 = vmatpush.msra.mxu0 %v1796
    %v1798 = vand.u32 %v124, 4294901760
    %1799 = vmatpush.msra.mxu0 %v1798
    %v1800 = vand.u32 %v123, 4294901760
    %1801 = vmatpush.msra.mxu0 %v1800
    %v1802 = vand.u32 %v122, 4294901760
    %1803 = vmatpush.msra.mxu0 %v1802
    %v1804 = vand.u32 %v121, 4294901760
    %1805 = vmatpush.msra.mxu0 %v1804
    %v1806 = vand.u32 %v120, 4294901760
    %1807 = vmatpush.msra.mxu0 %v1806
    %v1808 = vand.u32 %v119, 4294901760
    %1809 = vmatpush.msra.mxu0 %v1808
    %v1810 = vand.u32 %v118, 4294901760
    %1811 = vmatpush.msra.mxu0 %v1810
    %v1812 = vand.u32 %v117, 4294901760
    %1813 = vmatpush.msra.mxu0 %v1812
    %v1814 = vand.u32 %v116, 4294901760
    %1815 = vmatpush.msra.mxu0 %v1814
    %v1816 = vand.u32 %v115, 4294901760
    %1817 = vmatpush.msra.mxu0 %v1816
    %v1818 = vand.u32 %v114, 4294901760
    %1819 = vmatpush.msra.mxu0 %v1818
    %v1820 = vand.u32 %v113, 4294901760
    %1821 = vmatpush.msra.mxu0 %v1820
    %v1822 = vand.u32 %v112, 4294901760
    %1823 = vmatpush.msra.mxu0 %v1822
    %v1824 = vand.u32 %v216, 4294901760
    %v1825 = vsub.f32 %v216, %v1824
    %v1826 = vand.u32 %v1825, 4294901760
    %1827 = vmatmul.f32.gmra.mxu0 %v1826
    %v1828 = vpop.f32.mrf.mxu0
    %v1829 = vadd.f32 %v1790, %v1828
    %1830 = vdwg.mxu0
    %v1831 = vand.u32 %v127, 4294901760
    %v1832 = vsub.f32 %v127, %v1831
    %v1833 = vand.u32 %v1832, 4294901760
    %1834 = vmatpush.msra.mxu0 %v1833
    %v1835 = vand.u32 %v126, 4294901760
    %v1836 = vsub.f32 %v126, %v1835
    %v1837 = vand.u32 %v1836, 4294901760
    %1838 = vmatpush.msra.mxu0 %v1837
    %v1839 = vand.u32 %v125, 4294901760
    %v1840 = vsub.f32 %v125, %v1839
    %v1841 = vand.u32 %v1840, 4294901760
    %1842 = vmatpush.msra.mxu0 %v1841
    %v1843 = vand.u32 %v124, 4294901760
    %v1844 = vsub.f32 %v124, %v1843
    %v1845 = vand.u32 %v1844, 4294901760
    %1846 = vmatpush.msra.mxu0 %v1845
    %v1847 = vand.u32 %v123, 4294901760
    %v1848 = vsub.f32 %v123, %v1847
    %v1849 = vand.u32 %v1848, 4294901760
    %1850 = vmatpush.msra.mxu0 %v1849
    %v1851 = vand.u32 %v122, 4294901760
    %v1852 = vsub.f32 %v122, %v1851
    %v1853 = vand.u32 %v1852, 4294901760
    %1854 = vmatpush.msra.mxu0 %v1853
    %v1855 = vand.u32 %v121, 4294901760
    %v1856 = vsub.f32 %v121, %v1855
    %v1857 = vand.u32 %v1856, 4294901760
    %1858 = vmatpush.msra.mxu0 %v1857
    %v1859 = vand.u32 %v120, 4294901760
    %v1860 = vsub.f32 %v120, %v1859
    %v1861 = vand.u32 %v1860, 4294901760
    %1862 = vmatpush.msra.mxu0 %v1861
    %v1863 = vand.u32 %v119, 4294901760
    %v1864 = vsub.f32 %v119, %v1863
    %v1865 = vand.u32 %v1864, 4294901760
    %1866 = vmatpush.msra.mxu0 %v1865
    %v1867 = vand.u32 %v118, 4294901760
    %v1868 = vsub.f32 %v118, %v1867
    %v1869 = vand.u32 %v1868, 4294901760
    %1870 = vmatpush.msra.mxu0 %v1869
    %v1871 = vand.u32 %v117, 4294901760
    %v1872 = vsub.f32 %v117, %v1871
    %v1873 = vand.u32 %v1872, 4294901760
    %1874 = vmatpush.msra.mxu0 %v1873
    %v1875 = vand.u32 %v116, 4294901760
    %v1876 = vsub.f32 %v116, %v1875
    %v1877 = vand.u32 %v1876, 4294901760
    %1878 = vmatpush.msra.mxu0 %v1877
    %v1879 = vand.u32 %v115, 4294901760
    %v1880 = vsub.f32 %v115, %v1879
    %v1881 = vand.u32 %v1880, 4294901760
    %1882 = vmatpush.msra.mxu0 %v1881
    %v1883 = vand.u32 %v114, 4294901760
    %v1884 = vsub.f32 %v114, %v1883
    %v1885 = vand.u32 %v1884, 4294901760
    %1886 = vmatpush.msra.mxu0 %v1885
    %v1887 = vand.u32 %v113, 4294901760
    %v1888 = vsub.f32 %v113, %v1887
    %v1889 = vand.u32 %v1888, 4294901760
    %1890 = vmatpush.msra.mxu0 %v1889
    %v1891 = vand.u32 %v112, 4294901760
    %v1892 = vsub.f32 %v112, %v1891
    %v1893 = vand.u32 %v1892, 4294901760
    %1894 = vmatpush.msra.mxu0 %v1893
    %v1895 = vand.u32 %v216, 4294901760
    %1896 = vmatmul.f32.gmra.mxu0 %v1895
    %v1897 = vpop.f32.mrf.mxu0
    %v1898 = vadd.f32 %v1829, %v1897
    %1899 = vdwg.mxu0
    %v1900 = vand.u32 %v127, 4294901760
    %1901 = vmatpush.msra.mxu0 %v1900
    %v1902 = vand.u32 %v126, 4294901760
    %1903 = vmatpush.msra.mxu0 %v1902
    %v1904 = vand.u32 %v125, 4294901760
    %1905 = vmatpush.msra.mxu0 %v1904
    %v1906 = vand.u32 %v124, 4294901760
    %1907 = vmatpush.msra.mxu0 %v1906
    %v1908 = vand.u32 %v123, 4294901760
    %1909 = vmatpush.msra.mxu0 %v1908
    %v1910 = vand.u32 %v122, 4294901760
    %1911 = vmatpush.msra.mxu0 %v1910
    %v1912 = vand.u32 %v121, 4294901760
    %1913 = vmatpush.msra.mxu0 %v1912
    %v1914 = vand.u32 %v120, 4294901760
    %1915 = vmatpush.msra.mxu0 %v1914
    %v1916 = vand.u32 %v119, 4294901760
    %1917 = vmatpush.msra.mxu0 %v1916
    %v1918 = vand.u32 %v118, 4294901760
    %1919 = vmatpush.msra.mxu0 %v1918
    %v1920 = vand.u32 %v117, 4294901760
    %1921 = vmatpush.msra.mxu0 %v1920
    %v1922 = vand.u32 %v116, 4294901760
    %1923 = vmatpush.msra.mxu0 %v1922
    %v1924 = vand.u32 %v115, 4294901760
    %1925 = vmatpush.msra.mxu0 %v1924
    %v1926 = vand.u32 %v114, 4294901760
    %1927 = vmatpush.msra.mxu0 %v1926
    %v1928 = vand.u32 %v113, 4294901760
    %1929 = vmatpush.msra.mxu0 %v1928
    %v1930 = vand.u32 %v112, 4294901760
    %1931 = vmatpush.msra.mxu0 %v1930
    %v1932 = vand.u32 %v216, 4294901760
    %1933 = vmatmul.f32.gmra.mxu0 %v1932
    %v1934 = vpop.f32.mrf.mxu0
    %v1935 = vadd.f32 %v1898, %v1934
    %1936 = vdwg.mxu0
    %v1937 = vand.u32 %v143, 4294901760
    %1938 = vmatpush.msra.mxu0 %v1937
    %v1939 = vand.u32 %v142, 4294901760
    %1940 = vmatpush.msra.mxu0 %v1939
    %v1941 = vand.u32 %v141, 4294901760
    %1942 = vmatpush.msra.mxu0 %v1941
    %v1943 = vand.u32 %v140, 4294901760
    %1944 = vmatpush.msra.mxu0 %v1943
    %v1945 = vand.u32 %v139, 4294901760
    %1946 = vmatpush.msra.mxu0 %v1945
    %v1947 = vand.u32 %v138, 4294901760
    %1948 = vmatpush.msra.mxu0 %v1947
    %v1949 = vand.u32 %v137, 4294901760
    %1950 = vmatpush.msra.mxu0 %v1949
    %v1951 = vand.u32 %v136, 4294901760
    %1952 = vmatpush.msra.mxu0 %v1951
    %v1953 = vand.u32 %v135, 4294901760
    %1954 = vmatpush.msra.mxu0 %v1953
    %v1955 = vand.u32 %v134, 4294901760
    %1956 = vmatpush.msra.mxu0 %v1955
    %v1957 = vand.u32 %v133, 4294901760
    %1958 = vmatpush.msra.mxu0 %v1957
    %v1959 = vand.u32 %v132, 4294901760
    %1960 = vmatpush.msra.mxu0 %v1959
    %v1961 = vand.u32 %v131, 4294901760
    %1962 = vmatpush.msra.mxu0 %v1961
    %v1963 = vand.u32 %v130, 4294901760
    %1964 = vmatpush.msra.mxu0 %v1963
    %v1965 = vand.u32 %v129, 4294901760
    %1966 = vmatpush.msra.mxu0 %v1965
    %v1967 = vand.u32 %v128, 4294901760
    %1968 = vmatpush.msra.mxu0 %v1967
    %v1969 = vand.u32 %v217, 4294901760
    %v1970 = vsub.f32 %v217, %v1969
    %v1971 = vand.u32 %v1970, 4294901760
    %v1972 = vsub.f32 %v1970, %v1971
    %v1973 = vand.u32 %v1972, 4294901760
    %1974 = vmatmul.f32.gmra.mxu0 %v1973
    %v1975 = vpop.f32.mrf.mxu0
    %v1976 = vadd.f32 %v1935, %v1975
    %1977 = vdwg.mxu0
    %v1978 = vand.u32 %v143, 4294901760
    %v1979 = vsub.f32 %v143, %v1978
    %v1980 = vand.u32 %v1979, 4294901760
    %v1981 = vsub.f32 %v1979, %v1980
    %v1982 = vand.u32 %v1981, 4294901760
    %1983 = vmatpush.msra.mxu0 %v1982
    %v1984 = vand.u32 %v142, 4294901760
    %v1985 = vsub.f32 %v142, %v1984
    %v1986 = vand.u32 %v1985, 4294901760
    %v1987 = vsub.f32 %v1985, %v1986
    %v1988 = vand.u32 %v1987, 4294901760
    %1989 = vmatpush.msra.mxu0 %v1988
    %v1990 = vand.u32 %v141, 4294901760
    %v1991 = vsub.f32 %v141, %v1990
    %v1992 = vand.u32 %v1991, 4294901760
    %v1993 = vsub.f32 %v1991, %v1992
    %v1994 = vand.u32 %v1993, 4294901760
    %1995 = vmatpush.msra.mxu0 %v1994
    %v1996 = vand.u32 %v140, 4294901760
    %v1997 = vsub.f32 %v140, %v1996
    %v1998 = vand.u32 %v1997, 4294901760
    %v1999 = vsub.f32 %v1997, %v1998
    %v2000 = vand.u32 %v1999, 4294901760
    %2001 = vmatpush.msra.mxu0 %v2000
    %v2002 = vand.u32 %v139, 4294901760
    %v2003 = vsub.f32 %v139, %v2002
    %v2004 = vand.u32 %v2003, 4294901760
    %v2005 = vsub.f32 %v2003, %v2004
    %v2006 = vand.u32 %v2005, 4294901760
    %2007 = vmatpush.msra.mxu0 %v2006
    %v2008 = vand.u32 %v138, 4294901760
    %v2009 = vsub.f32 %v138, %v2008
    %v2010 = vand.u32 %v2009, 4294901760
    %v2011 = vsub.f32 %v2009, %v2010
    %v2012 = vand.u32 %v2011, 4294901760
    %2013 = vmatpush.msra.mxu0 %v2012
    %v2014 = vand.u32 %v137, 4294901760
    %v2015 = vsub.f32 %v137, %v2014
    %v2016 = vand.u32 %v2015, 4294901760
    %v2017 = vsub.f32 %v2015, %v2016
    %v2018 = vand.u32 %v2017, 4294901760
    %2019 = vmatpush.msra.mxu0 %v2018
    %v2020 = vand.u32 %v136, 4294901760
    %v2021 = vsub.f32 %v136, %v2020
    %v2022 = vand.u32 %v2021, 4294901760
    %v2023 = vsub.f32 %v2021, %v2022
    %v2024 = vand.u32 %v2023, 4294901760
    %2025 = vmatpush.msra.mxu0 %v2024
    %v2026 = vand.u32 %v135, 4294901760
    %v2027 = vsub.f32 %v135, %v2026
    %v2028 = vand.u32 %v2027, 4294901760
    %v2029 = vsub.f32 %v2027, %v2028
    %v2030 = vand.u32 %v2029, 4294901760
    %2031 = vmatpush.msra.mxu0 %v2030
    %v2032 = vand.u32 %v134, 4294901760
    %v2033 = vsub.f32 %v134, %v2032
    %v2034 = vand.u32 %v2033, 4294901760
    %v2035 = vsub.f32 %v2033, %v2034
    %v2036 = vand.u32 %v2035, 4294901760
    %2037 = vmatpush.msra.mxu0 %v2036
    %v2038 = vand.u32 %v133, 4294901760
    %v2039 = vsub.f32 %v133, %v2038
    %v2040 = vand.u32 %v2039, 4294901760
    %v2041 = vsub.f32 %v2039, %v2040
    %v2042 = vand.u32 %v2041, 4294901760
    %2043 = vmatpush.msra.mxu0 %v2042
    %v2044 = vand.u32 %v132, 4294901760
    %v2045 = vsub.f32 %v132, %v2044
    %v2046 = vand.u32 %v2045, 4294901760
    %v2047 = vsub.f32 %v2045, %v2046
    %v2048 = vand.u32 %v2047, 4294901760
    %2049 = vmatpush.msra.mxu0 %v2048
    %v2050 = vand.u32 %v131, 4294901760
    %v2051 = vsub.f32 %v131, %v2050
    %v2052 = vand.u32 %v2051, 4294901760
    %v2053 = vsub.f32 %v2051, %v2052
    %v2054 = vand.u32 %v2053, 4294901760
    %2055 = vmatpush.msra.mxu0 %v2054
    %v2056 = vand.u32 %v130, 4294901760
    %v2057 = vsub.f32 %v130, %v2056
    %v2058 = vand.u32 %v2057, 4294901760
    %v2059 = vsub.f32 %v2057, %v2058
    %v2060 = vand.u32 %v2059, 4294901760
    %2061 = vmatpush.msra.mxu0 %v2060
    %v2062 = vand.u32 %v129, 4294901760
    %v2063 = vsub.f32 %v129, %v2062
    %v2064 = vand.u32 %v2063, 4294901760
    %v2065 = vsub.f32 %v2063, %v2064
    %v2066 = vand.u32 %v2065, 4294901760
    %2067 = vmatpush.msra.mxu0 %v2066
    %v2068 = vand.u32 %v128, 4294901760
    %v2069 = vsub.f32 %v128, %v2068
    %v2070 = vand.u32 %v2069, 4294901760
    %v2071 = vsub.f32 %v2069, %v2070
    %v2072 = vand.u32 %v2071, 4294901760
    %2073 = vmatpush.msra.mxu0 %v2072
    %v2074 = vand.u32 %v217, 4294901760
    %2075 = vmatmul.f32.gmra.mxu0 %v2074
    %v2076 = vpop.f32.mrf.mxu0
    %v2077 = vadd.f32 %v1976, %v2076
    %2078 = vdwg.mxu0
    %v2079 = vand.u32 %v143, 4294901760
    %v2080 = vsub.f32 %v143, %v2079
    %2081 = vmatpush.msra.mxu0 %v2080
    %v2082 = vand.u32 %v142, 4294901760
    %v2083 = vsub.f32 %v142, %v2082
    %2084 = vmatpush.msra.mxu0 %v2083
    %v2085 = vand.u32 %v141, 4294901760
    %v2086 = vsub.f32 %v141, %v2085
    %2087 = vmatpush.msra.mxu0 %v2086
    %v2088 = vand.u32 %v140, 4294901760
    %v2089 = vsub.f32 %v140, %v2088
    %2090 = vmatpush.msra.mxu0 %v2089
    %v2091 = vand.u32 %v139, 4294901760
    %v2092 = vsub.f32 %v139, %v2091
    %2093 = vmatpush.msra.mxu0 %v2092
    %v2094 = vand.u32 %v138, 4294901760
    %v2095 = vsub.f32 %v138, %v2094
    %2096 = vmatpush.msra.mxu0 %v2095
    %v2097 = vand.u32 %v137, 4294901760
    %v2098 = vsub.f32 %v137, %v2097
    %2099 = vmatpush.msra.mxu0 %v2098
    %v2100 = vand.u32 %v136, 4294901760
    %v2101 = vsub.f32 %v136, %v2100
    %2102 = vmatpush.msra.mxu0 %v2101
    %v2103 = vand.u32 %v135, 4294901760
    %v2104 = vsub.f32 %v135, %v2103
    %2105 = vmatpush.msra.mxu0 %v2104
    %v2106 = vand.u32 %v134, 4294901760
    %v2107 = vsub.f32 %v134, %v2106
    %2108 = vmatpush.msra.mxu0 %v2107
    %v2109 = vand.u32 %v133, 4294901760
    %v2110 = vsub.f32 %v133, %v2109
    %2111 = vmatpush.msra.mxu0 %v2110
    %v2112 = vand.u32 %v132, 4294901760
    %v2113 = vsub.f32 %v132, %v2112
    %2114 = vmatpush.msra.mxu0 %v2113
    %v2115 = vand.u32 %v131, 4294901760
    %v2116 = vsub.f32 %v131, %v2115
    %2117 = vmatpush.msra.mxu0 %v2116
    %v2118 = vand.u32 %v130, 4294901760
    %v2119 = vsub.f32 %v130, %v2118
    %2120 = vmatpush.msra.mxu0 %v2119
    %v2121 = vand.u32 %v129, 4294901760
    %v2122 = vsub.f32 %v129, %v2121
    %2123 = vmatpush.msra.mxu0 %v2122
    %v2124 = vand.u32 %v128, 4294901760
    %v2125 = vsub.f32 %v128, %v2124
    %2126 = vmatpush.msra.mxu0 %v2125
    %v2127 = vand.u32 %v217, 4294901760
    %v2128 = vsub.f32 %v217, %v2127
    %2129 = vmatmul.f32.gmra.mxu0 %v2128
    %v2130 = vpop.f32.mrf.mxu0
    %v2131 = vadd.f32 %v2077, %v2130
    %2132 = vdwg.mxu0
    %v2133 = vand.u32 %v143, 4294901760
    %2134 = vmatpush.msra.mxu0 %v2133
    %v2135 = vand.u32 %v142, 4294901760
    %2136 = vmatpush.msra.mxu0 %v2135
    %v2137 = vand.u32 %v141, 4294901760
    %2138 = vmatpush.msra.mxu0 %v2137
    %v2139 = vand.u32 %v140, 4294901760
    %2140 = vmatpush.msra.mxu0 %v2139
    %v2141 = vand.u32 %v139, 4294901760
    %2142 = vmatpush.msra.mxu0 %v2141
    %v2143 = vand.u32 %v138, 4294901760
    %2144 = vmatpush.msra.mxu0 %v2143
    %v2145 = vand.u32 %v137, 4294901760
    %2146 = vmatpush.msra.mxu0 %v2145
    %v2147 = vand.u32 %v136, 4294901760
    %2148 = vmatpush.msra.mxu0 %v2147
    %v2149 = vand.u32 %v135, 4294901760
    %2150 = vmatpush.msra.mxu0 %v2149
    %v2151 = vand.u32 %v134, 4294901760
    %2152 = vmatpush.msra.mxu0 %v2151
    %v2153 = vand.u32 %v133, 4294901760
    %2154 = vmatpush.msra.mxu0 %v2153
    %v2155 = vand.u32 %v132, 4294901760
    %2156 = vmatpush.msra.mxu0 %v2155
    %v2157 = vand.u32 %v131, 4294901760
    %2158 = vmatpush.msra.mxu0 %v2157
    %v2159 = vand.u32 %v130, 4294901760
    %2160 = vmatpush.msra.mxu0 %v2159
    %v2161 = vand.u32 %v129, 4294901760
    %2162 = vmatpush.msra.mxu0 %v2161
    %v2163 = vand.u32 %v128, 4294901760
    %2164 = vmatpush.msra.mxu0 %v2163
    %v2165 = vand.u32 %v217, 4294901760
    %v2166 = vsub.f32 %v217, %v2165
    %v2167 = vand.u32 %v2166, 4294901760
    %2168 = vmatmul.f32.gmra.mxu0 %v2167
    %v2169 = vpop.f32.mrf.mxu0
    %v2170 = vadd.f32 %v2131, %v2169
    %2171 = vdwg.mxu0
    %v2172 = vand.u32 %v143, 4294901760
    %v2173 = vsub.f32 %v143, %v2172
    %v2174 = vand.u32 %v2173, 4294901760
    %2175 = vmatpush.msra.mxu0 %v2174
    %v2176 = vand.u32 %v142, 4294901760
    %v2177 = vsub.f32 %v142, %v2176
    %v2178 = vand.u32 %v2177, 4294901760
    %2179 = vmatpush.msra.mxu0 %v2178
    %v2180 = vand.u32 %v141, 4294901760
    %v2181 = vsub.f32 %v141, %v2180
    %v2182 = vand.u32 %v2181, 4294901760
    %2183 = vmatpush.msra.mxu0 %v2182
    %v2184 = vand.u32 %v140, 4294901760
    %v2185 = vsub.f32 %v140, %v2184
    %v2186 = vand.u32 %v2185, 4294901760
    %2187 = vmatpush.msra.mxu0 %v2186
    %v2188 = vand.u32 %v139, 4294901760
    %v2189 = vsub.f32 %v139, %v2188
    %v2190 = vand.u32 %v2189, 4294901760
    %2191 = vmatpush.msra.mxu0 %v2190
    %v2192 = vand.u32 %v138, 4294901760
    %v2193 = vsub.f32 %v138, %v2192
    %v2194 = vand.u32 %v2193, 4294901760
    %2195 = vmatpush.msra.mxu0 %v2194
    %v2196 = vand.u32 %v137, 4294901760
    %v2197 = vsub.f32 %v137, %v2196
    %v2198 = vand.u32 %v2197, 4294901760
    %2199 = vmatpush.msra.mxu0 %v2198
    %v2200 = vand.u32 %v136, 4294901760
    %v2201 = vsub.f32 %v136, %v2200
    %v2202 = vand.u32 %v2201, 4294901760
    %2203 = vmatpush.msra.mxu0 %v2202
    %v2204 = vand.u32 %v135, 4294901760
    %v2205 = vsub.f32 %v135, %v2204
    %v2206 = vand.u32 %v2205, 4294901760
    %2207 = vmatpush.msra.mxu0 %v2206
    %v2208 = vand.u32 %v134, 4294901760
    %v2209 = vsub.f32 %v134, %v2208
    %v2210 = vand.u32 %v2209, 4294901760
    %2211 = vmatpush.msra.mxu0 %v2210
    %v2212 = vand.u32 %v133, 4294901760
    %v2213 = vsub.f32 %v133, %v2212
    %v2214 = vand.u32 %v2213, 4294901760
    %2215 = vmatpush.msra.mxu0 %v2214
    %v2216 = vand.u32 %v132, 4294901760
    %v2217 = vsub.f32 %v132, %v2216
    %v2218 = vand.u32 %v2217, 4294901760
    %2219 = vmatpush.msra.mxu0 %v2218
    %v2220 = vand.u32 %v131, 4294901760
    %v2221 = vsub.f32 %v131, %v2220
    %v2222 = vand.u32 %v2221, 4294901760
    %2223 = vmatpush.msra.mxu0 %v2222
    %v2224 = vand.u32 %v130, 4294901760
    %v2225 = vsub.f32 %v130, %v2224
    %v2226 = vand.u32 %v2225, 4294901760
    %2227 = vmatpush.msra.mxu0 %v2226
    %v2228 = vand.u32 %v129, 4294901760
    %v2229 = vsub.f32 %v129, %v2228
    %v2230 = vand.u32 %v2229, 4294901760
    %2231 = vmatpush.msra.mxu0 %v2230
    %v2232 = vand.u32 %v128, 4294901760
    %v2233 = vsub.f32 %v128, %v2232
    %v2234 = vand.u32 %v2233, 4294901760
    %2235 = vmatpush.msra.mxu0 %v2234
    %v2236 = vand.u32 %v217, 4294901760
    %2237 = vmatmul.f32.gmra.mxu0 %v2236
    %v2238 = vpop.f32.mrf.mxu0
    %v2239 = vadd.f32 %v2170, %v2238
    %2240 = vdwg.mxu0
    %v2241 = vand.u32 %v143, 4294901760
    %2242 = vmatpush.msra.mxu0 %v2241
    %v2243 = vand.u32 %v142, 4294901760
    %2244 = vmatpush.msra.mxu0 %v2243
    %v2245 = vand.u32 %v141, 4294901760
    %2246 = vmatpush.msra.mxu0 %v2245
    %v2247 = vand.u32 %v140, 4294901760
    %2248 = vmatpush.msra.mxu0 %v2247
    %v2249 = vand.u32 %v139, 4294901760
    %2250 = vmatpush.msra.mxu0 %v2249
    %v2251 = vand.u32 %v138, 4294901760
    %2252 = vmatpush.msra.mxu0 %v2251
    %v2253 = vand.u32 %v137, 4294901760
    %2254 = vmatpush.msra.mxu0 %v2253
    %v2255 = vand.u32 %v136, 4294901760
    %2256 = vmatpush.msra.mxu0 %v2255
    %v2257 = vand.u32 %v135, 4294901760
    %2258 = vmatpush.msra.mxu0 %v2257
    %v2259 = vand.u32 %v134, 4294901760
    %2260 = vmatpush.msra.mxu0 %v2259
    %v2261 = vand.u32 %v133, 4294901760
    %2262 = vmatpush.msra.mxu0 %v2261
    %v2263 = vand.u32 %v132, 4294901760
    %2264 = vmatpush.msra.mxu0 %v2263
    %v2265 = vand.u32 %v131, 4294901760
    %2266 = vmatpush.msra.mxu0 %v2265
    %v2267 = vand.u32 %v130, 4294901760
    %2268 = vmatpush.msra.mxu0 %v2267
    %v2269 = vand.u32 %v129, 4294901760
    %2270 = vmatpush.msra.mxu0 %v2269
    %v2271 = vand.u32 %v128, 4294901760
    %2272 = vmatpush.msra.mxu0 %v2271
    %v2273 = vand.u32 %v217, 4294901760
    %2274 = vmatmul.f32.gmra.mxu0 %v2273
    %v2275 = vpop.f32.mrf.mxu0
    %v2276 = vadd.f32 %v2239, %v2275
    %2277 = vdwg.mxu0
    %v2278 = vand.u32 %v159, 4294901760
    %2279 = vmatpush.msra.mxu0 %v2278
    %v2280 = vand.u32 %v158, 4294901760
    %2281 = vmatpush.msra.mxu0 %v2280
    %v2282 = vand.u32 %v157, 4294901760
    %2283 = vmatpush.msra.mxu0 %v2282
    %v2284 = vand.u32 %v156, 4294901760
    %2285 = vmatpush.msra.mxu0 %v2284
    %v2286 = vand.u32 %v155, 4294901760
    %2287 = vmatpush.msra.mxu0 %v2286
    %v2288 = vand.u32 %v154, 4294901760
    %2289 = vmatpush.msra.mxu0 %v2288
    %v2290 = vand.u32 %v153, 4294901760
    %2291 = vmatpush.msra.mxu0 %v2290
    %v2292 = vand.u32 %v152, 4294901760
    %2293 = vmatpush.msra.mxu0 %v2292
    %v2294 = vand.u32 %v151, 4294901760
    %2295 = vmatpush.msra.mxu0 %v2294
    %v2296 = vand.u32 %v150, 4294901760
    %2297 = vmatpush.msra.mxu0 %v2296
    %v2298 = vand.u32 %v149, 4294901760
    %2299 = vmatpush.msra.mxu0 %v2298
    %v2300 = vand.u32 %v148, 4294901760
    %2301 = vmatpush.msra.mxu0 %v2300
    %v2302 = vand.u32 %v147, 4294901760
    %2303 = vmatpush.msra.mxu0 %v2302
    %v2304 = vand.u32 %v146, 4294901760
    %2305 = vmatpush.msra.mxu0 %v2304
    %v2306 = vand.u32 %v145, 4294901760
    %2307 = vmatpush.msra.mxu0 %v2306
    %v2308 = vand.u32 %v144, 4294901760
    %2309 = vmatpush.msra.mxu0 %v2308
    %v2310 = vand.u32 %v218, 4294901760
    %v2311 = vsub.f32 %v218, %v2310
    %v2312 = vand.u32 %v2311, 4294901760
    %v2313 = vsub.f32 %v2311, %v2312
    %v2314 = vand.u32 %v2313, 4294901760
    %2315 = vmatmul.f32.gmra.mxu0 %v2314
    %v2316 = vpop.f32.mrf.mxu0
    %v2317 = vadd.f32 %v2276, %v2316
    %2318 = vdwg.mxu0
    %v2319 = vand.u32 %v159, 4294901760
    %v2320 = vsub.f32 %v159, %v2319
    %v2321 = vand.u32 %v2320, 4294901760
    %v2322 = vsub.f32 %v2320, %v2321
    %v2323 = vand.u32 %v2322, 4294901760
    %2324 = vmatpush.msra.mxu0 %v2323
    %v2325 = vand.u32 %v158, 4294901760
    %v2326 = vsub.f32 %v158, %v2325
    %v2327 = vand.u32 %v2326, 4294901760
    %v2328 = vsub.f32 %v2326, %v2327
    %v2329 = vand.u32 %v2328, 4294901760
    %2330 = vmatpush.msra.mxu0 %v2329
    %v2331 = vand.u32 %v157, 4294901760
    %v2332 = vsub.f32 %v157, %v2331
    %v2333 = vand.u32 %v2332, 4294901760
    %v2334 = vsub.f32 %v2332, %v2333
    %v2335 = vand.u32 %v2334, 4294901760
    %2336 = vmatpush.msra.mxu0 %v2335
    %v2337 = vand.u32 %v156, 4294901760
    %v2338 = vsub.f32 %v156, %v2337
    %v2339 = vand.u32 %v2338, 4294901760
    %v2340 = vsub.f32 %v2338, %v2339
    %v2341 = vand.u32 %v2340, 4294901760
    %2342 = vmatpush.msra.mxu0 %v2341
    %v2343 = vand.u32 %v155, 4294901760
    %v2344 = vsub.f32 %v155, %v2343
    %v2345 = vand.u32 %v2344, 4294901760
    %v2346 = vsub.f32 %v2344, %v2345
    %v2347 = vand.u32 %v2346, 4294901760
    %2348 = vmatpush.msra.mxu0 %v2347
    %v2349 = vand.u32 %v154, 4294901760
    %v2350 = vsub.f32 %v154, %v2349
    %v2351 = vand.u32 %v2350, 4294901760
    %v2352 = vsub.f32 %v2350, %v2351
    %v2353 = vand.u32 %v2352, 4294901760
    %2354 = vmatpush.msra.mxu0 %v2353
    %v2355 = vand.u32 %v153, 4294901760
    %v2356 = vsub.f32 %v153, %v2355
    %v2357 = vand.u32 %v2356, 4294901760
    %v2358 = vsub.f32 %v2356, %v2357
    %v2359 = vand.u32 %v2358, 4294901760
    %2360 = vmatpush.msra.mxu0 %v2359
    %v2361 = vand.u32 %v152, 4294901760
    %v2362 = vsub.f32 %v152, %v2361
    %v2363 = vand.u32 %v2362, 4294901760
    %v2364 = vsub.f32 %v2362, %v2363
    %v2365 = vand.u32 %v2364, 4294901760
    %2366 = vmatpush.msra.mxu0 %v2365
    %v2367 = vand.u32 %v151, 4294901760
    %v2368 = vsub.f32 %v151, %v2367
    %v2369 = vand.u32 %v2368, 4294901760
    %v2370 = vsub.f32 %v2368, %v2369
    %v2371 = vand.u32 %v2370, 4294901760
    %2372 = vmatpush.msra.mxu0 %v2371
    %v2373 = vand.u32 %v150, 4294901760
    %v2374 = vsub.f32 %v150, %v2373
    %v2375 = vand.u32 %v2374, 4294901760
    %v2376 = vsub.f32 %v2374, %v2375
    %v2377 = vand.u32 %v2376, 4294901760
    %2378 = vmatpush.msra.mxu0 %v2377
    %v2379 = vand.u32 %v149, 4294901760
    %v2380 = vsub.f32 %v149, %v2379
    %v2381 = vand.u32 %v2380, 4294901760
    %v2382 = vsub.f32 %v2380, %v2381
    %v2383 = vand.u32 %v2382, 4294901760
    %2384 = vmatpush.msra.mxu0 %v2383
    %v2385 = vand.u32 %v148, 4294901760
    %v2386 = vsub.f32 %v148, %v2385
    %v2387 = vand.u32 %v2386, 4294901760
    %v2388 = vsub.f32 %v2386, %v2387
    %v2389 = vand.u32 %v2388, 4294901760
    %2390 = vmatpush.msra.mxu0 %v2389
    %v2391 = vand.u32 %v147, 4294901760
    %v2392 = vsub.f32 %v147, %v2391
    %v2393 = vand.u32 %v2392, 4294901760
    %v2394 = vsub.f32 %v2392, %v2393
    %v2395 = vand.u32 %v2394, 4294901760
    %2396 = vmatpush.msra.mxu0 %v2395
    %v2397 = vand.u32 %v146, 4294901760
    %v2398 = vsub.f32 %v146, %v2397
    %v2399 = vand.u32 %v2398, 4294901760
    %v2400 = vsub.f32 %v2398, %v2399
    %v2401 = vand.u32 %v2400, 4294901760
    %2402 = vmatpush.msra.mxu0 %v2401
    %v2403 = vand.u32 %v145, 4294901760
    %v2404 = vsub.f32 %v145, %v2403
    %v2405 = vand.u32 %v2404, 4294901760
    %v2406 = vsub.f32 %v2404, %v2405
    %v2407 = vand.u32 %v2406, 4294901760
    %2408 = vmatpush.msra.mxu0 %v2407
    %v2409 = vand.u32 %v144, 4294901760
    %v2410 = vsub.f32 %v144, %v2409
    %v2411 = vand.u32 %v2410, 4294901760
    %v2412 = vsub.f32 %v2410, %v2411
    %v2413 = vand.u32 %v2412, 4294901760
    %2414 = vmatpush.msra.mxu0 %v2413
    %v2415 = vand.u32 %v218, 4294901760
    %2416 = vmatmul.f32.gmra.mxu0 %v2415
    %v2417 = vpop.f32.mrf.mxu0
    %v2418 = vadd.f32 %v2317, %v2417
    %2419 = vdwg.mxu0
    %v2420 = vand.u32 %v159, 4294901760
    %v2421 = vsub.f32 %v159, %v2420
    %2422 = vmatpush.msra.mxu0 %v2421
    %v2423 = vand.u32 %v158, 4294901760
    %v2424 = vsub.f32 %v158, %v2423
    %2425 = vmatpush.msra.mxu0 %v2424
    %v2426 = vand.u32 %v157, 4294901760
    %v2427 = vsub.f32 %v157, %v2426
    %2428 = vmatpush.msra.mxu0 %v2427
    %v2429 = vand.u32 %v156, 4294901760
    %v2430 = vsub.f32 %v156, %v2429
    %2431 = vmatpush.msra.mxu0 %v2430
    %v2432 = vand.u32 %v155, 4294901760
    %v2433 = vsub.f32 %v155, %v2432
    %2434 = vmatpush.msra.mxu0 %v2433
    %v2435 = vand.u32 %v154, 4294901760
    %v2436 = vsub.f32 %v154, %v2435
    %2437 = vmatpush.msra.mxu0 %v2436
    %v2438 = vand.u32 %v153, 4294901760
    %v2439 = vsub.f32 %v153, %v2438
    %2440 = vmatpush.msra.mxu0 %v2439
    %v2441 = vand.u32 %v152, 4294901760
    %v2442 = vsub.f32 %v152, %v2441
    %2443 = vmatpush.msra.mxu0 %v2442
    %v2444 = vand.u32 %v151, 4294901760
    %v2445 = vsub.f32 %v151, %v2444
    %2446 = vmatpush.msra.mxu0 %v2445
    %v2447 = vand.u32 %v150, 4294901760
    %v2448 = vsub.f32 %v150, %v2447
    %2449 = vmatpush.msra.mxu0 %v2448
    %v2450 = vand.u32 %v149, 4294901760
    %v2451 = vsub.f32 %v149, %v2450
    %2452 = vmatpush.msra.mxu0 %v2451
    %v2453 = vand.u32 %v148, 4294901760
    %v2454 = vsub.f32 %v148, %v2453
    %2455 = vmatpush.msra.mxu0 %v2454
    %v2456 = vand.u32 %v147, 4294901760
    %v2457 = vsub.f32 %v147, %v2456
    %2458 = vmatpush.msra.mxu0 %v2457
    %v2459 = vand.u32 %v146, 4294901760
    %v2460 = vsub.f32 %v146, %v2459
    %2461 = vmatpush.msra.mxu0 %v2460
    %v2462 = vand.u32 %v145, 4294901760
    %v2463 = vsub.f32 %v145, %v2462
    %2464 = vmatpush.msra.mxu0 %v2463
    %v2465 = vand.u32 %v144, 4294901760
    %v2466 = vsub.f32 %v144, %v2465
    %2467 = vmatpush.msra.mxu0 %v2466
    %v2468 = vand.u32 %v218, 4294901760
    %v2469 = vsub.f32 %v218, %v2468
    %2470 = vmatmul.f32.gmra.mxu0 %v2469
    %v2471 = vpop.f32.mrf.mxu0
    %v2472 = vadd.f32 %v2418, %v2471
    %2473 = vdwg.mxu0
    %v2474 = vand.u32 %v159, 4294901760
    %2475 = vmatpush.msra.mxu0 %v2474
    %v2476 = vand.u32 %v158, 4294901760
    %2477 = vmatpush.msra.mxu0 %v2476
    %v2478 = vand.u32 %v157, 4294901760
    %2479 = vmatpush.msra.mxu0 %v2478
    %v2480 = vand.u32 %v156, 4294901760
    %2481 = vmatpush.msra.mxu0 %v2480
    %v2482 = vand.u32 %v155, 4294901760
    %2483 = vmatpush.msra.mxu0 %v2482
    %v2484 = vand.u32 %v154, 4294901760
    %2485 = vmatpush.msra.mxu0 %v2484
    %v2486 = vand.u32 %v153, 4294901760
    %2487 = vmatpush.msra.mxu0 %v2486
    %v2488 = vand.u32 %v152, 4294901760
    %2489 = vmatpush.msra.mxu0 %v2488
    %v2490 = vand.u32 %v151, 4294901760
    %2491 = vmatpush.msra.mxu0 %v2490
    %v2492 = vand.u32 %v150, 4294901760
    %2493 = vmatpush.msra.mxu0 %v2492
    %v2494 = vand.u32 %v149, 4294901760
    %2495 = vmatpush.msra.mxu0 %v2494
    %v2496 = vand.u32 %v148, 4294901760
    %2497 = vmatpush.msra.mxu0 %v2496
    %v2498 = vand.u32 %v147, 4294901760
    %2499 = vmatpush.msra.mxu0 %v2498
    %v2500 = vand.u32 %v146, 4294901760
    %2501 = vmatpush.msra.mxu0 %v2500
    %v2502 = vand.u32 %v145, 4294901760
    %2503 = vmatpush.msra.mxu0 %v2502
    %v2504 = vand.u32 %v144, 4294901760
    %2505 = vmatpush.msra.mxu0 %v2504
    %v2506 = vand.u32 %v218, 4294901760
    %v2507 = vsub.f32 %v218, %v2506
    %v2508 = vand.u32 %v2507, 4294901760
    %2509 = vmatmul.f32.gmra.mxu0 %v2508
    %v2510 = vpop.f32.mrf.mxu0
    %v2511 = vadd.f32 %v2472, %v2510
    %2512 = vdwg.mxu0
    %v2513 = vand.u32 %v159, 4294901760
    %v2514 = vsub.f32 %v159, %v2513
    %v2515 = vand.u32 %v2514, 4294901760
    %2516 = vmatpush.msra.mxu0 %v2515
    %v2517 = vand.u32 %v158, 4294901760
    %v2518 = vsub.f32 %v158, %v2517
    %v2519 = vand.u32 %v2518, 4294901760
    %2520 = vmatpush.msra.mxu0 %v2519
    %v2521 = vand.u32 %v157, 4294901760
    %v2522 = vsub.f32 %v157, %v2521
    %v2523 = vand.u32 %v2522, 4294901760
    %2524 = vmatpush.msra.mxu0 %v2523
    %v2525 = vand.u32 %v156, 4294901760
    %v2526 = vsub.f32 %v156, %v2525
    %v2527 = vand.u32 %v2526, 4294901760
    %2528 = vmatpush.msra.mxu0 %v2527
    %v2529 = vand.u32 %v155, 4294901760
    %v2530 = vsub.f32 %v155, %v2529
    %v2531 = vand.u32 %v2530, 4294901760
    %2532 = vmatpush.msra.mxu0 %v2531
    %v2533 = vand.u32 %v154, 4294901760
    %v2534 = vsub.f32 %v154, %v2533
    %v2535 = vand.u32 %v2534, 4294901760
    %2536 = vmatpush.msra.mxu0 %v2535
    %v2537 = vand.u32 %v153, 4294901760
    %v2538 = vsub.f32 %v153, %v2537
    %v2539 = vand.u32 %v2538, 4294901760
    %2540 = vmatpush.msra.mxu0 %v2539
    %v2541 = vand.u32 %v152, 4294901760
    %v2542 = vsub.f32 %v152, %v2541
    %v2543 = vand.u32 %v2542, 4294901760
    %2544 = vmatpush.msra.mxu0 %v2543
    %v2545 = vand.u32 %v151, 4294901760
    %v2546 = vsub.f32 %v151, %v2545
    %v2547 = vand.u32 %v2546, 4294901760
    %2548 = vmatpush.msra.mxu0 %v2547
    %v2549 = vand.u32 %v150, 4294901760
    %v2550 = vsub.f32 %v150, %v2549
    %v2551 = vand.u32 %v2550, 4294901760
    %2552 = vmatpush.msra.mxu0 %v2551
    %v2553 = vand.u32 %v149, 4294901760
    %v2554 = vsub.f32 %v149, %v2553
    %v2555 = vand.u32 %v2554, 4294901760
    %2556 = vmatpush.msra.mxu0 %v2555
    %v2557 = vand.u32 %v148, 4294901760
    %v2558 = vsub.f32 %v148, %v2557
    %v2559 = vand.u32 %v2558, 4294901760
    %2560 = vmatpush.msra.mxu0 %v2559
    %v2561 = vand.u32 %v147, 4294901760
    %v2562 = vsub.f32 %v147, %v2561
    %v2563 = vand.u32 %v2562, 4294901760
    %2564 = vmatpush.msra.mxu0 %v2563
    %v2565 = vand.u32 %v146, 4294901760
    %v2566 = vsub.f32 %v146, %v2565
    %v2567 = vand.u32 %v2566, 4294901760
    %2568 = vmatpush.msra.mxu0 %v2567
    %v2569 = vand.u32 %v145, 4294901760
    %v2570 = vsub.f32 %v145, %v2569
    %v2571 = vand.u32 %v2570, 4294901760
    %2572 = vmatpush.msra.mxu0 %v2571
    %v2573 = vand.u32 %v144, 4294901760
    %v2574 = vsub.f32 %v144, %v2573
    %v2575 = vand.u32 %v2574, 4294901760
    %2576 = vmatpush.msra.mxu0 %v2575
    %v2577 = vand.u32 %v218, 4294901760
    %2578 = vmatmul.f32.gmra.mxu0 %v2577
    %v2579 = vpop.f32.mrf.mxu0
    %v2580 = vadd.f32 %v2511, %v2579
    %2581 = vdwg.mxu0
    %v2582 = vand.u32 %v159, 4294901760
    %2583 = vmatpush.msra.mxu0 %v2582
    %v2584 = vand.u32 %v158, 4294901760
    %2585 = vmatpush.msra.mxu0 %v2584
    %v2586 = vand.u32 %v157, 4294901760
    %2587 = vmatpush.msra.mxu0 %v2586
    %v2588 = vand.u32 %v156, 4294901760
    %2589 = vmatpush.msra.mxu0 %v2588
    %v2590 = vand.u32 %v155, 4294901760
    %2591 = vmatpush.msra.mxu0 %v2590
    %v2592 = vand.u32 %v154, 4294901760
    %2593 = vmatpush.msra.mxu0 %v2592
    %v2594 = vand.u32 %v153, 4294901760
    %2595 = vmatpush.msra.mxu0 %v2594
    %v2596 = vand.u32 %v152, 4294901760
    %2597 = vmatpush.msra.mxu0 %v2596
    %v2598 = vand.u32 %v151, 4294901760
    %2599 = vmatpush.msra.mxu0 %v2598
    %v2600 = vand.u32 %v150, 4294901760
    %2601 = vmatpush.msra.mxu0 %v2600
    %v2602 = vand.u32 %v149, 4294901760
    %2603 = vmatpush.msra.mxu0 %v2602
    %v2604 = vand.u32 %v148, 4294901760
    %2605 = vmatpush.msra.mxu0 %v2604
    %v2606 = vand.u32 %v147, 4294901760
    %2607 = vmatpush.msra.mxu0 %v2606
    %v2608 = vand.u32 %v146, 4294901760
    %2609 = vmatpush.msra.mxu0 %v2608
    %v2610 = vand.u32 %v145, 4294901760
    %2611 = vmatpush.msra.mxu0 %v2610
    %v2612 = vand.u32 %v144, 4294901760
    %2613 = vmatpush.msra.mxu0 %v2612
    %v2614 = vand.u32 %v218, 4294901760
    %2615 = vmatmul.f32.gmra.mxu0 %v2614
    %v2616 = vpop.f32.mrf.mxu0
    %v2617 = vadd.f32 %v2580, %v2616
    %2618 = vdwg.mxu0
    %v2619 = vand.u32 %v175, 4294901760
    %2620 = vmatpush.msra.mxu0 %v2619
    %v2621 = vand.u32 %v174, 4294901760
    %2622 = vmatpush.msra.mxu0 %v2621
    %v2623 = vand.u32 %v173, 4294901760
    %2624 = vmatpush.msra.mxu0 %v2623
    %v2625 = vand.u32 %v172, 4294901760
    %2626 = vmatpush.msra.mxu0 %v2625
    %v2627 = vand.u32 %v171, 4294901760
    %2628 = vmatpush.msra.mxu0 %v2627
    %v2629 = vand.u32 %v170, 4294901760
    %2630 = vmatpush.msra.mxu0 %v2629
    %v2631 = vand.u32 %v169, 4294901760
    %2632 = vmatpush.msra.mxu0 %v2631
    %v2633 = vand.u32 %v168, 4294901760
    %2634 = vmatpush.msra.mxu0 %v2633
    %v2635 = vand.u32 %v167, 4294901760
    %2636 = vmatpush.msra.mxu0 %v2635
    %v2637 = vand.u32 %v166, 4294901760
    %2638 = vmatpush.msra.mxu0 %v2637
    %v2639 = vand.u32 %v165, 4294901760
    %2640 = vmatpush.msra.mxu0 %v2639
    %v2641 = vand.u32 %v164, 4294901760
    %2642 = vmatpush.msra.mxu0 %v2641
    %v2643 = vand.u32 %v163, 4294901760
    %2644 = vmatpush.msra.mxu0 %v2643
    %v2645 = vand.u32 %v162, 4294901760
    %2646 = vmatpush.msra.mxu0 %v2645
    %v2647 = vand.u32 %v161, 4294901760
    %2648 = vmatpush.msra.mxu0 %v2647
    %v2649 = vand.u32 %v160, 4294901760
    %2650 = vmatpush.msra.mxu0 %v2649
    %v2651 = vand.u32 %v219, 4294901760
    %v2652 = vsub.f32 %v219, %v2651
    %v2653 = vand.u32 %v2652, 4294901760
    %v2654 = vsub.f32 %v2652, %v2653
    %v2655 = vand.u32 %v2654, 4294901760
    %2656 = vmatmul.f32.gmra.mxu0 %v2655
    %v2657 = vpop.f32.mrf.mxu0
    %v2658 = vadd.f32 %v2617, %v2657
    %2659 = vdwg.mxu0
    %v2660 = vand.u32 %v175, 4294901760
    %v2661 = vsub.f32 %v175, %v2660
    %v2662 = vand.u32 %v2661, 4294901760
    %v2663 = vsub.f32 %v2661, %v2662
    %v2664 = vand.u32 %v2663, 4294901760
    %2665 = vmatpush.msra.mxu0 %v2664
    %v2666 = vand.u32 %v174, 4294901760
    %v2667 = vsub.f32 %v174, %v2666
    %v2668 = vand.u32 %v2667, 4294901760
    %v2669 = vsub.f32 %v2667, %v2668
    %v2670 = vand.u32 %v2669, 4294901760
    %2671 = vmatpush.msra.mxu0 %v2670
    %v2672 = vand.u32 %v173, 4294901760
    %v2673 = vsub.f32 %v173, %v2672
    %v2674 = vand.u32 %v2673, 4294901760
    %v2675 = vsub.f32 %v2673, %v2674
    %v2676 = vand.u32 %v2675, 4294901760
    %2677 = vmatpush.msra.mxu0 %v2676
    %v2678 = vand.u32 %v172, 4294901760
    %v2679 = vsub.f32 %v172, %v2678
    %v2680 = vand.u32 %v2679, 4294901760
    %v2681 = vsub.f32 %v2679, %v2680
    %v2682 = vand.u32 %v2681, 4294901760
    %2683 = vmatpush.msra.mxu0 %v2682
    %v2684 = vand.u32 %v171, 4294901760
    %v2685 = vsub.f32 %v171, %v2684
    %v2686 = vand.u32 %v2685, 4294901760
    %v2687 = vsub.f32 %v2685, %v2686
    %v2688 = vand.u32 %v2687, 4294901760
    %2689 = vmatpush.msra.mxu0 %v2688
    %v2690 = vand.u32 %v170, 4294901760
    %v2691 = vsub.f32 %v170, %v2690
    %v2692 = vand.u32 %v2691, 4294901760
    %v2693 = vsub.f32 %v2691, %v2692
    %v2694 = vand.u32 %v2693, 4294901760
    %2695 = vmatpush.msra.mxu0 %v2694
    %v2696 = vand.u32 %v169, 4294901760
    %v2697 = vsub.f32 %v169, %v2696
    %v2698 = vand.u32 %v2697, 4294901760
    %v2699 = vsub.f32 %v2697, %v2698
    %v2700 = vand.u32 %v2699, 4294901760
    %2701 = vmatpush.msra.mxu0 %v2700
    %v2702 = vand.u32 %v168, 4294901760
    %v2703 = vsub.f32 %v168, %v2702
    %v2704 = vand.u32 %v2703, 4294901760
    %v2705 = vsub.f32 %v2703, %v2704
    %v2706 = vand.u32 %v2705, 4294901760
    %2707 = vmatpush.msra.mxu0 %v2706
    %v2708 = vand.u32 %v167, 4294901760
    %v2709 = vsub.f32 %v167, %v2708
    %v2710 = vand.u32 %v2709, 4294901760
    %v2711 = vsub.f32 %v2709, %v2710
    %v2712 = vand.u32 %v2711, 4294901760
    %2713 = vmatpush.msra.mxu0 %v2712
    %v2714 = vand.u32 %v166, 4294901760
    %v2715 = vsub.f32 %v166, %v2714
    %v2716 = vand.u32 %v2715, 4294901760
    %v2717 = vsub.f32 %v2715, %v2716
    %v2718 = vand.u32 %v2717, 4294901760
    %2719 = vmatpush.msra.mxu0 %v2718
    %v2720 = vand.u32 %v165, 4294901760
    %v2721 = vsub.f32 %v165, %v2720
    %v2722 = vand.u32 %v2721, 4294901760
    %v2723 = vsub.f32 %v2721, %v2722
    %v2724 = vand.u32 %v2723, 4294901760
    %2725 = vmatpush.msra.mxu0 %v2724
    %v2726 = vand.u32 %v164, 4294901760
    %v2727 = vsub.f32 %v164, %v2726
    %v2728 = vand.u32 %v2727, 4294901760
    %v2729 = vsub.f32 %v2727, %v2728
    %v2730 = vand.u32 %v2729, 4294901760
    %2731 = vmatpush.msra.mxu0 %v2730
    %v2732 = vand.u32 %v163, 4294901760
    %v2733 = vsub.f32 %v163, %v2732
    %v2734 = vand.u32 %v2733, 4294901760
    %v2735 = vsub.f32 %v2733, %v2734
    %v2736 = vand.u32 %v2735, 4294901760
    %2737 = vmatpush.msra.mxu0 %v2736
    %v2738 = vand.u32 %v162, 4294901760
    %v2739 = vsub.f32 %v162, %v2738
    %v2740 = vand.u32 %v2739, 4294901760
    %v2741 = vsub.f32 %v2739, %v2740
    %v2742 = vand.u32 %v2741, 4294901760
    %2743 = vmatpush.msra.mxu0 %v2742
    %v2744 = vand.u32 %v161, 4294901760
    %v2745 = vsub.f32 %v161, %v2744
    %v2746 = vand.u32 %v2745, 4294901760
    %v2747 = vsub.f32 %v2745, %v2746
    %v2748 = vand.u32 %v2747, 4294901760
    %2749 = vmatpush.msra.mxu0 %v2748
    %v2750 = vand.u32 %v160, 4294901760
    %v2751 = vsub.f32 %v160, %v2750
    %v2752 = vand.u32 %v2751, 4294901760
    %v2753 = vsub.f32 %v2751, %v2752
    %v2754 = vand.u32 %v2753, 4294901760
    %2755 = vmatpush.msra.mxu0 %v2754
    %v2756 = vand.u32 %v219, 4294901760
    %2757 = vmatmul.f32.gmra.mxu0 %v2756
    %v2758 = vpop.f32.mrf.mxu0
    %v2759 = vadd.f32 %v2658, %v2758
    %2760 = vdwg.mxu0
    %v2761 = vand.u32 %v175, 4294901760
    %v2762 = vsub.f32 %v175, %v2761
    %2763 = vmatpush.msra.mxu0 %v2762
    %v2764 = vand.u32 %v174, 4294901760
    %v2765 = vsub.f32 %v174, %v2764
    %2766 = vmatpush.msra.mxu0 %v2765
    %v2767 = vand.u32 %v173, 4294901760
    %v2768 = vsub.f32 %v173, %v2767
    %2769 = vmatpush.msra.mxu0 %v2768
    %v2770 = vand.u32 %v172, 4294901760
    %v2771 = vsub.f32 %v172, %v2770
    %2772 = vmatpush.msra.mxu0 %v2771
    %v2773 = vand.u32 %v171, 4294901760
    %v2774 = vsub.f32 %v171, %v2773
    %2775 = vmatpush.msra.mxu0 %v2774
    %v2776 = vand.u32 %v170, 4294901760
    %v2777 = vsub.f32 %v170, %v2776
    %2778 = vmatpush.msra.mxu0 %v2777
    %v2779 = vand.u32 %v169, 4294901760
    %v2780 = vsub.f32 %v169, %v2779
    %2781 = vmatpush.msra.mxu0 %v2780
    %v2782 = vand.u32 %v168, 4294901760
    %v2783 = vsub.f32 %v168, %v2782
    %2784 = vmatpush.msra.mxu0 %v2783
    %v2785 = vand.u32 %v167, 4294901760
    %v2786 = vsub.f32 %v167, %v2785
    %2787 = vmatpush.msra.mxu0 %v2786
    %v2788 = vand.u32 %v166, 4294901760
    %v2789 = vsub.f32 %v166, %v2788
    %2790 = vmatpush.msra.mxu0 %v2789
    %v2791 = vand.u32 %v165, 4294901760
    %v2792 = vsub.f32 %v165, %v2791
    %2793 = vmatpush.msra.mxu0 %v2792
    %v2794 = vand.u32 %v164, 4294901760
    %v2795 = vsub.f32 %v164, %v2794
    %2796 = vmatpush.msra.mxu0 %v2795
    %v2797 = vand.u32 %v163, 4294901760
    %v2798 = vsub.f32 %v163, %v2797
    %2799 = vmatpush.msra.mxu0 %v2798
    %v2800 = vand.u32 %v162, 4294901760
    %v2801 = vsub.f32 %v162, %v2800
    %2802 = vmatpush.msra.mxu0 %v2801
    %v2803 = vand.u32 %v161, 4294901760
    %v2804 = vsub.f32 %v161, %v2803
    %2805 = vmatpush.msra.mxu0 %v2804
    %v2806 = vand.u32 %v160, 4294901760
    %v2807 = vsub.f32 %v160, %v2806
    %2808 = vmatpush.msra.mxu0 %v2807
    %v2809 = vand.u32 %v219, 4294901760
    %v2810 = vsub.f32 %v219, %v2809
    %2811 = vmatmul.f32.gmra.mxu0 %v2810
    %v2812 = vpop.f32.mrf.mxu0
    %v2813 = vadd.f32 %v2759, %v2812
    %2814 = vdwg.mxu0
    %v2815 = vand.u32 %v175, 4294901760
    %2816 = vmatpush.msra.mxu0 %v2815
    %v2817 = vand.u32 %v174, 4294901760
    %2818 = vmatpush.msra.mxu0 %v2817
    %v2819 = vand.u32 %v173, 4294901760
    %2820 = vmatpush.msra.mxu0 %v2819
    %v2821 = vand.u32 %v172, 4294901760
    %2822 = vmatpush.msra.mxu0 %v2821
    %v2823 = vand.u32 %v171, 4294901760
    %2824 = vmatpush.msra.mxu0 %v2823
    %v2825 = vand.u32 %v170, 4294901760
    %2826 = vmatpush.msra.mxu0 %v2825
    %v2827 = vand.u32 %v169, 4294901760
    %2828 = vmatpush.msra.mxu0 %v2827
    %v2829 = vand.u32 %v168, 4294901760
    %2830 = vmatpush.msra.mxu0 %v2829
    %v2831 = vand.u32 %v167, 4294901760
    %2832 = vmatpush.msra.mxu0 %v2831
    %v2833 = vand.u32 %v166, 4294901760
    %2834 = vmatpush.msra.mxu0 %v2833
    %v2835 = vand.u32 %v165, 4294901760
    %2836 = vmatpush.msra.mxu0 %v2835
    %v2837 = vand.u32 %v164, 4294901760
    %2838 = vmatpush.msra.mxu0 %v2837
    %v2839 = vand.u32 %v163, 4294901760
    %2840 = vmatpush.msra.mxu0 %v2839
    %v2841 = vand.u32 %v162, 4294901760
    %2842 = vmatpush.msra.mxu0 %v2841
    %v2843 = vand.u32 %v161, 4294901760
    %2844 = vmatpush.msra.mxu0 %v2843
    %v2845 = vand.u32 %v160, 4294901760
    %2846 = vmatpush.msra.mxu0 %v2845
    %v2847 = vand.u32 %v219, 4294901760
    %v2848 = vsub.f32 %v219, %v2847
    %v2849 = vand.u32 %v2848, 4294901760
    %2850 = vmatmul.f32.gmra.mxu0 %v2849
    %v2851 = vpop.f32.mrf.mxu0
    %v2852 = vadd.f32 %v2813, %v2851
    %2853 = vdwg.mxu0
    %v2854 = vand.u32 %v175, 4294901760
    %v2855 = vsub.f32 %v175, %v2854
    %v2856 = vand.u32 %v2855, 4294901760
    %2857 = vmatpush.msra.mxu0 %v2856
    %v2858 = vand.u32 %v174, 4294901760
    %v2859 = vsub.f32 %v174, %v2858
    %v2860 = vand.u32 %v2859, 4294901760
    %2861 = vmatpush.msra.mxu0 %v2860
    %v2862 = vand.u32 %v173, 4294901760
    %v2863 = vsub.f32 %v173, %v2862
    %v2864 = vand.u32 %v2863, 4294901760
    %2865 = vmatpush.msra.mxu0 %v2864
    %v2866 = vand.u32 %v172, 4294901760
    %v2867 = vsub.f32 %v172, %v2866
    %v2868 = vand.u32 %v2867, 4294901760
    %2869 = vmatpush.msra.mxu0 %v2868
    %v2870 = vand.u32 %v171, 4294901760
    %v2871 = vsub.f32 %v171, %v2870
    %v2872 = vand.u32 %v2871, 4294901760
    %2873 = vmatpush.msra.mxu0 %v2872
    %v2874 = vand.u32 %v170, 4294901760
    %v2875 = vsub.f32 %v170, %v2874
    %v2876 = vand.u32 %v2875, 4294901760
    %2877 = vmatpush.msra.mxu0 %v2876
    %v2878 = vand.u32 %v169, 4294901760
    %v2879 = vsub.f32 %v169, %v2878
    %v2880 = vand.u32 %v2879, 4294901760
    %2881 = vmatpush.msra.mxu0 %v2880
    %v2882 = vand.u32 %v168, 4294901760
    %v2883 = vsub.f32 %v168, %v2882
    %v2884 = vand.u32 %v2883, 4294901760
    %2885 = vmatpush.msra.mxu0 %v2884
    %v2886 = vand.u32 %v167, 4294901760
    %v2887 = vsub.f32 %v167, %v2886
    %v2888 = vand.u32 %v2887, 4294901760
    %2889 = vmatpush.msra.mxu0 %v2888
    %v2890 = vand.u32 %v166, 4294901760
    %v2891 = vsub.f32 %v166, %v2890
    %v2892 = vand.u32 %v2891, 4294901760
    %2893 = vmatpush.msra.mxu0 %v2892
    %v2894 = vand.u32 %v165, 4294901760
    %v2895 = vsub.f32 %v165, %v2894
    %v2896 = vand.u32 %v2895, 4294901760
    %2897 = vmatpush.msra.mxu0 %v2896
    %v2898 = vand.u32 %v164, 4294901760
    %v2899 = vsub.f32 %v164, %v2898
    %v2900 = vand.u32 %v2899, 4294901760
    %2901 = vmatpush.msra.mxu0 %v2900
    %v2902 = vand.u32 %v163, 4294901760
    %v2903 = vsub.f32 %v163, %v2902
    %v2904 = vand.u32 %v2903, 4294901760
    %2905 = vmatpush.msra.mxu0 %v2904
    %v2906 = vand.u32 %v162, 4294901760
    %v2907 = vsub.f32 %v162, %v2906
    %v2908 = vand.u32 %v2907, 4294901760
    %2909 = vmatpush.msra.mxu0 %v2908
    %v2910 = vand.u32 %v161, 4294901760
    %v2911 = vsub.f32 %v161, %v2910
    %v2912 = vand.u32 %v2911, 4294901760
    %2913 = vmatpush.msra.mxu0 %v2912
    %v2914 = vand.u32 %v160, 4294901760
    %v2915 = vsub.f32 %v160, %v2914
    %v2916 = vand.u32 %v2915, 4294901760
    %2917 = vmatpush.msra.mxu0 %v2916
    %v2918 = vand.u32 %v219, 4294901760
    %2919 = vmatmul.f32.gmra.mxu0 %v2918
    %v2920 = vpop.f32.mrf.mxu0
    %v2921 = vadd.f32 %v2852, %v2920
    %2922 = vdwg.mxu0
    %v2923 = vand.u32 %v175, 4294901760
    %2924 = vmatpush.msra.mxu0 %v2923
    %v2925 = vand.u32 %v174, 4294901760
    %2926 = vmatpush.msra.mxu0 %v2925
    %v2927 = vand.u32 %v173, 4294901760
    %2928 = vmatpush.msra.mxu0 %v2927
    %v2929 = vand.u32 %v172, 4294901760
    %2930 = vmatpush.msra.mxu0 %v2929
    %v2931 = vand.u32 %v171, 4294901760
    %2932 = vmatpush.msra.mxu0 %v2931
    %v2933 = vand.u32 %v170, 4294901760
    %2934 = vmatpush.msra.mxu0 %v2933
    %v2935 = vand.u32 %v169, 4294901760
    %2936 = vmatpush.msra.mxu0 %v2935
    %v2937 = vand.u32 %v168, 4294901760
    %2938 = vmatpush.msra.mxu0 %v2937
    %v2939 = vand.u32 %v167, 4294901760
    %2940 = vmatpush.msra.mxu0 %v2939
    %v2941 = vand.u32 %v166, 4294901760
    %2942 = vmatpush.msra.mxu0 %v2941
    %v2943 = vand.u32 %v165, 4294901760
    %2944 = vmatpush.msra.mxu0 %v2943
    %v2945 = vand.u32 %v164, 4294901760
    %2946 = vmatpush.msra.mxu0 %v2945
    %v2947 = vand.u32 %v163, 4294901760
    %2948 = vmatpush.msra.mxu0 %v2947
    %v2949 = vand.u32 %v162, 4294901760
    %2950 = vmatpush.msra.mxu0 %v2949
    %v2951 = vand.u32 %v161, 4294901760
    %2952 = vmatpush.msra.mxu0 %v2951
    %v2953 = vand.u32 %v160, 4294901760
    %2954 = vmatpush.msra.mxu0 %v2953
    %v2955 = vand.u32 %v219, 4294901760
    %2956 = vmatmul.f32.gmra.mxu0 %v2955
    %v2957 = vpop.f32.mrf.mxu0
    %v2958 = vadd.f32 %v2921, %v2957
    %2959 = vdwg.mxu0
    %v2960 = vand.u32 %v191, 4294901760
    %2961 = vmatpush.msra.mxu0 %v2960
    %v2962 = vand.u32 %v190, 4294901760
    %2963 = vmatpush.msra.mxu0 %v2962
    %v2964 = vand.u32 %v189, 4294901760
    %2965 = vmatpush.msra.mxu0 %v2964
    %v2966 = vand.u32 %v188, 4294901760
    %2967 = vmatpush.msra.mxu0 %v2966
    %v2968 = vand.u32 %v187, 4294901760
    %2969 = vmatpush.msra.mxu0 %v2968
    %v2970 = vand.u32 %v186, 4294901760
    %2971 = vmatpush.msra.mxu0 %v2970
    %v2972 = vand.u32 %v185, 4294901760
    %2973 = vmatpush.msra.mxu0 %v2972
    %v2974 = vand.u32 %v184, 4294901760
    %2975 = vmatpush.msra.mxu0 %v2974
    %v2976 = vand.u32 %v183, 4294901760
    %2977 = vmatpush.msra.mxu0 %v2976
    %v2978 = vand.u32 %v182, 4294901760
    %2979 = vmatpush.msra.mxu0 %v2978
    %v2980 = vand.u32 %v181, 4294901760
    %2981 = vmatpush.msra.mxu0 %v2980
    %v2982 = vand.u32 %v180, 4294901760
    %2983 = vmatpush.msra.mxu0 %v2982
    %v2984 = vand.u32 %v179, 4294901760
    %2985 = vmatpush.msra.mxu0 %v2984
    %v2986 = vand.u32 %v178, 4294901760
    %2987 = vmatpush.msra.mxu0 %v2986
    %v2988 = vand.u32 %v177, 4294901760
    %2989 = vmatpush.msra.mxu0 %v2988
    %v2990 = vand.u32 %v176, 4294901760
    %2991 = vmatpush.msra.mxu0 %v2990
    %v2992 = vand.u32 %v220, 4294901760
    %v2993 = vsub.f32 %v220, %v2992
    %v2994 = vand.u32 %v2993, 4294901760
    %v2995 = vsub.f32 %v2993, %v2994
    %v2996 = vand.u32 %v2995, 4294901760
    %2997 = vmatmul.f32.gmra.mxu0 %v2996
    %v2998 = vpop.f32.mrf.mxu0
    %v2999 = vadd.f32 %v2958, %v2998
    %3000 = vdwg.mxu0
    %v3001 = vand.u32 %v191, 4294901760
    %v3002 = vsub.f32 %v191, %v3001
    %v3003 = vand.u32 %v3002, 4294901760
    %v3004 = vsub.f32 %v3002, %v3003
    %v3005 = vand.u32 %v3004, 4294901760
    %3006 = vmatpush.msra.mxu0 %v3005
    %v3007 = vand.u32 %v190, 4294901760
    %v3008 = vsub.f32 %v190, %v3007
    %v3009 = vand.u32 %v3008, 4294901760
    %v3010 = vsub.f32 %v3008, %v3009
    %v3011 = vand.u32 %v3010, 4294901760
    %3012 = vmatpush.msra.mxu0 %v3011
    %v3013 = vand.u32 %v189, 4294901760
    %v3014 = vsub.f32 %v189, %v3013
    %v3015 = vand.u32 %v3014, 4294901760
    %v3016 = vsub.f32 %v3014, %v3015
    %v3017 = vand.u32 %v3016, 4294901760
    %3018 = vmatpush.msra.mxu0 %v3017
    %v3019 = vand.u32 %v188, 4294901760
    %v3020 = vsub.f32 %v188, %v3019
    %v3021 = vand.u32 %v3020, 4294901760
    %v3022 = vsub.f32 %v3020, %v3021
    %v3023 = vand.u32 %v3022, 4294901760
    %3024 = vmatpush.msra.mxu0 %v3023
    %v3025 = vand.u32 %v187, 4294901760
    %v3026 = vsub.f32 %v187, %v3025
    %v3027 = vand.u32 %v3026, 4294901760
    %v3028 = vsub.f32 %v3026, %v3027
    %v3029 = vand.u32 %v3028, 4294901760
    %3030 = vmatpush.msra.mxu0 %v3029
    %v3031 = vand.u32 %v186, 4294901760
    %v3032 = vsub.f32 %v186, %v3031
    %v3033 = vand.u32 %v3032, 4294901760
    %v3034 = vsub.f32 %v3032, %v3033
    %v3035 = vand.u32 %v3034, 4294901760
    %3036 = vmatpush.msra.mxu0 %v3035
    %v3037 = vand.u32 %v185, 4294901760
    %v3038 = vsub.f32 %v185, %v3037
    %v3039 = vand.u32 %v3038, 4294901760
    %v3040 = vsub.f32 %v3038, %v3039
    %v3041 = vand.u32 %v3040, 4294901760
    %3042 = vmatpush.msra.mxu0 %v3041
    %v3043 = vand.u32 %v184, 4294901760
    %v3044 = vsub.f32 %v184, %v3043
    %v3045 = vand.u32 %v3044, 4294901760
    %v3046 = vsub.f32 %v3044, %v3045
    %v3047 = vand.u32 %v3046, 4294901760
    %3048 = vmatpush.msra.mxu0 %v3047
    %v3049 = vand.u32 %v183, 4294901760
    %v3050 = vsub.f32 %v183, %v3049
    %v3051 = vand.u32 %v3050, 4294901760
    %v3052 = vsub.f32 %v3050, %v3051
    %v3053 = vand.u32 %v3052, 4294901760
    %3054 = vmatpush.msra.mxu0 %v3053
    %v3055 = vand.u32 %v182, 4294901760
    %v3056 = vsub.f32 %v182, %v3055
    %v3057 = vand.u32 %v3056, 4294901760
    %v3058 = vsub.f32 %v3056, %v3057
    %v3059 = vand.u32 %v3058, 4294901760
    %3060 = vmatpush.msra.mxu0 %v3059
    %v3061 = vand.u32 %v181, 4294901760
    %v3062 = vsub.f32 %v181, %v3061
    %v3063 = vand.u32 %v3062, 4294901760
    %v3064 = vsub.f32 %v3062, %v3063
    %v3065 = vand.u32 %v3064, 4294901760
    %3066 = vmatpush.msra.mxu0 %v3065
    %v3067 = vand.u32 %v180, 4294901760
    %v3068 = vsub.f32 %v180, %v3067
    %v3069 = vand.u32 %v3068, 4294901760
    %v3070 = vsub.f32 %v3068, %v3069
    %v3071 = vand.u32 %v3070, 4294901760
    %3072 = vmatpush.msra.mxu0 %v3071
    %v3073 = vand.u32 %v179, 4294901760
    %v3074 = vsub.f32 %v179, %v3073
    %v3075 = vand.u32 %v3074, 4294901760
    %v3076 = vsub.f32 %v3074, %v3075
    %v3077 = vand.u32 %v3076, 4294901760
    %3078 = vmatpush.msra.mxu0 %v3077
    %v3079 = vand.u32 %v178, 4294901760
    %v3080 = vsub.f32 %v178, %v3079
    %v3081 = vand.u32 %v3080, 4294901760
    %v3082 = vsub.f32 %v3080, %v3081
    %v3083 = vand.u32 %v3082, 4294901760
    %3084 = vmatpush.msra.mxu0 %v3083
    %v3085 = vand.u32 %v177, 4294901760
    %v3086 = vsub.f32 %v177, %v3085
    %v3087 = vand.u32 %v3086, 4294901760
    %v3088 = vsub.f32 %v3086, %v3087
    %v3089 = vand.u32 %v3088, 4294901760
    %3090 = vmatpush.msra.mxu0 %v3089
    %v3091 = vand.u32 %v176, 4294901760
    %v3092 = vsub.f32 %v176, %v3091
    %v3093 = vand.u32 %v3092, 4294901760
    %v3094 = vsub.f32 %v3092, %v3093
    %v3095 = vand.u32 %v3094, 4294901760
    %3096 = vmatpush.msra.mxu0 %v3095
    %v3097 = vand.u32 %v220, 4294901760
    %3098 = vmatmul.f32.gmra.mxu0 %v3097
    %v3099 = vpop.f32.mrf.mxu0
    %v3100 = vadd.f32 %v2999, %v3099
    %3101 = vdwg.mxu0
    %v3102 = vand.u32 %v191, 4294901760
    %v3103 = vsub.f32 %v191, %v3102
    %3104 = vmatpush.msra.mxu0 %v3103
    %v3105 = vand.u32 %v190, 4294901760
    %v3106 = vsub.f32 %v190, %v3105
    %3107 = vmatpush.msra.mxu0 %v3106
    %v3108 = vand.u32 %v189, 4294901760
    %v3109 = vsub.f32 %v189, %v3108
    %3110 = vmatpush.msra.mxu0 %v3109
    %v3111 = vand.u32 %v188, 4294901760
    %v3112 = vsub.f32 %v188, %v3111
    %3113 = vmatpush.msra.mxu0 %v3112
    %v3114 = vand.u32 %v187, 4294901760
    %v3115 = vsub.f32 %v187, %v3114
    %3116 = vmatpush.msra.mxu0 %v3115
    %v3117 = vand.u32 %v186, 4294901760
    %v3118 = vsub.f32 %v186, %v3117
    %3119 = vmatpush.msra.mxu0 %v3118
    %v3120 = vand.u32 %v185, 4294901760
    %v3121 = vsub.f32 %v185, %v3120
    %3122 = vmatpush.msra.mxu0 %v3121
    %v3123 = vand.u32 %v184, 4294901760
    %v3124 = vsub.f32 %v184, %v3123
    %3125 = vmatpush.msra.mxu0 %v3124
    %v3126 = vand.u32 %v183, 4294901760
    %v3127 = vsub.f32 %v183, %v3126
    %3128 = vmatpush.msra.mxu0 %v3127
    %v3129 = vand.u32 %v182, 4294901760
    %v3130 = vsub.f32 %v182, %v3129
    %3131 = vmatpush.msra.mxu0 %v3130
    %v3132 = vand.u32 %v181, 4294901760
    %v3133 = vsub.f32 %v181, %v3132
    %3134 = vmatpush.msra.mxu0 %v3133
    %v3135 = vand.u32 %v180, 4294901760
    %v3136 = vsub.f32 %v180, %v3135
    %3137 = vmatpush.msra.mxu0 %v3136
    %v3138 = vand.u32 %v179, 4294901760
    %v3139 = vsub.f32 %v179, %v3138
    %3140 = vmatpush.msra.mxu0 %v3139
    %v3141 = vand.u32 %v178, 4294901760
    %v3142 = vsub.f32 %v178, %v3141
    %3143 = vmatpush.msra.mxu0 %v3142
    %v3144 = vand.u32 %v177, 4294901760
    %v3145 = vsub.f32 %v177, %v3144
    %3146 = vmatpush.msra.mxu0 %v3145
    %v3147 = vand.u32 %v176, 4294901760
    %v3148 = vsub.f32 %v176, %v3147
    %3149 = vmatpush.msra.mxu0 %v3148
    %v3150 = vand.u32 %v220, 4294901760
    %v3151 = vsub.f32 %v220, %v3150
    %3152 = vmatmul.f32.gmra.mxu0 %v3151
    %v3153 = vpop.f32.mrf.mxu0
    %v3154 = vadd.f32 %v3100, %v3153
    %3155 = vdwg.mxu0
    %v3156 = vand.u32 %v191, 4294901760
    %3157 = vmatpush.msra.mxu0 %v3156
    %v3158 = vand.u32 %v190, 4294901760
    %3159 = vmatpush.msra.mxu0 %v3158
    %v3160 = vand.u32 %v189, 4294901760
    %3161 = vmatpush.msra.mxu0 %v3160
    %v3162 = vand.u32 %v188, 4294901760
    %3163 = vmatpush.msra.mxu0 %v3162
    %v3164 = vand.u32 %v187, 4294901760
    %3165 = vmatpush.msra.mxu0 %v3164
    %v3166 = vand.u32 %v186, 4294901760
    %3167 = vmatpush.msra.mxu0 %v3166
    %v3168 = vand.u32 %v185, 4294901760
    %3169 = vmatpush.msra.mxu0 %v3168
    %v3170 = vand.u32 %v184, 4294901760
    %3171 = vmatpush.msra.mxu0 %v3170
    %v3172 = vand.u32 %v183, 4294901760
    %3173 = vmatpush.msra.mxu0 %v3172
    %v3174 = vand.u32 %v182, 4294901760
    %3175 = vmatpush.msra.mxu0 %v3174
    %v3176 = vand.u32 %v181, 4294901760
    %3177 = vmatpush.msra.mxu0 %v3176
    %v3178 = vand.u32 %v180, 4294901760
    %3179 = vmatpush.msra.mxu0 %v3178
    %v3180 = vand.u32 %v179, 4294901760
    %3181 = vmatpush.msra.mxu0 %v3180
    %v3182 = vand.u32 %v178, 4294901760
    %3183 = vmatpush.msra.mxu0 %v3182
    %v3184 = vand.u32 %v177, 4294901760
    %3185 = vmatpush.msra.mxu0 %v3184
    %v3186 = vand.u32 %v176, 4294901760
    %3187 = vmatpush.msra.mxu0 %v3186
    %v3188 = vand.u32 %v220, 4294901760
    %v3189 = vsub.f32 %v220, %v3188
    %v3190 = vand.u32 %v3189, 4294901760
    %3191 = vmatmul.f32.gmra.mxu0 %v3190
    %v3192 = vpop.f32.mrf.mxu0
    %v3193 = vadd.f32 %v3154, %v3192
    %3194 = vdwg.mxu0
    %v3195 = vand.u32 %v191, 4294901760
    %v3196 = vsub.f32 %v191, %v3195
    %v3197 = vand.u32 %v3196, 4294901760
    %3198 = vmatpush.msra.mxu0 %v3197
    %v3199 = vand.u32 %v190, 4294901760
    %v3200 = vsub.f32 %v190, %v3199
    %v3201 = vand.u32 %v3200, 4294901760
    %3202 = vmatpush.msra.mxu0 %v3201
    %v3203 = vand.u32 %v189, 4294901760
    %v3204 = vsub.f32 %v189, %v3203
    %v3205 = vand.u32 %v3204, 4294901760
    %3206 = vmatpush.msra.mxu0 %v3205
    %v3207 = vand.u32 %v188, 4294901760
    %v3208 = vsub.f32 %v188, %v3207
    %v3209 = vand.u32 %v3208, 4294901760
    %3210 = vmatpush.msra.mxu0 %v3209
    %v3211 = vand.u32 %v187, 4294901760
    %v3212 = vsub.f32 %v187, %v3211
    %v3213 = vand.u32 %v3212, 4294901760
    %3214 = vmatpush.msra.mxu0 %v3213
    %v3215 = vand.u32 %v186, 4294901760
    %v3216 = vsub.f32 %v186, %v3215
    %v3217 = vand.u32 %v3216, 4294901760
    %3218 = vmatpush.msra.mxu0 %v3217
    %v3219 = vand.u32 %v185, 4294901760
    %v3220 = vsub.f32 %v185, %v3219
    %v3221 = vand.u32 %v3220, 4294901760
    %3222 = vmatpush.msra.mxu0 %v3221
    %v3223 = vand.u32 %v184, 4294901760
    %v3224 = vsub.f32 %v184, %v3223
    %v3225 = vand.u32 %v3224, 4294901760
    %3226 = vmatpush.msra.mxu0 %v3225
    %v3227 = vand.u32 %v183, 4294901760
    %v3228 = vsub.f32 %v183, %v3227
    %v3229 = vand.u32 %v3228, 4294901760
    %3230 = vmatpush.msra.mxu0 %v3229
    %v3231 = vand.u32 %v182, 4294901760
    %v3232 = vsub.f32 %v182, %v3231
    %v3233 = vand.u32 %v3232, 4294901760
    %3234 = vmatpush.msra.mxu0 %v3233
    %v3235 = vand.u32 %v181, 4294901760
    %v3236 = vsub.f32 %v181, %v3235
    %v3237 = vand.u32 %v3236, 4294901760
    %3238 = vmatpush.msra.mxu0 %v3237
    %v3239 = vand.u32 %v180, 4294901760
    %v3240 = vsub.f32 %v180, %v3239
    %v3241 = vand.u32 %v3240, 4294901760
    %3242 = vmatpush.msra.mxu0 %v3241
    %v3243 = vand.u32 %v179, 4294901760
    %v3244 = vsub.f32 %v179, %v3243
    %v3245 = vand.u32 %v3244, 4294901760
    %3246 = vmatpush.msra.mxu0 %v3245
    %v3247 = vand.u32 %v178, 4294901760
    %v3248 = vsub.f32 %v178, %v3247
    %v3249 = vand.u32 %v3248, 4294901760
    %3250 = vmatpush.msra.mxu0 %v3249
    %v3251 = vand.u32 %v177, 4294901760
    %v3252 = vsub.f32 %v177, %v3251
    %v3253 = vand.u32 %v3252, 4294901760
    %3254 = vmatpush.msra.mxu0 %v3253
    %v3255 = vand.u32 %v176, 4294901760
    %v3256 = vsub.f32 %v176, %v3255
    %v3257 = vand.u32 %v3256, 4294901760
    %3258 = vmatpush.msra.mxu0 %v3257
    %v3259 = vand.u32 %v220, 4294901760
    %3260 = vmatmul.f32.gmra.mxu0 %v3259
    %v3261 = vpop.f32.mrf.mxu0
    %v3262 = vadd.f32 %v3193, %v3261
    %3263 = vdwg.mxu0
    %v3264 = vand.u32 %v191, 4294901760
    %3265 = vmatpush.msra.mxu0 %v3264
    %v3266 = vand.u32 %v190, 4294901760
    %3267 = vmatpush.msra.mxu0 %v3266
    %v3268 = vand.u32 %v189, 4294901760
    %3269 = vmatpush.msra.mxu0 %v3268
    %v3270 = vand.u32 %v188, 4294901760
    %3271 = vmatpush.msra.mxu0 %v3270
    %v3272 = vand.u32 %v187, 4294901760
    %3273 = vmatpush.msra.mxu0 %v3272
    %v3274 = vand.u32 %v186, 4294901760
    %3275 = vmatpush.msra.mxu0 %v3274
    %v3276 = vand.u32 %v185, 4294901760
    %3277 = vmatpush.msra.mxu0 %v3276
    %v3278 = vand.u32 %v184, 4294901760
    %3279 = vmatpush.msra.mxu0 %v3278
    %v3280 = vand.u32 %v183, 4294901760
    %3281 = vmatpush.msra.mxu0 %v3280
    %v3282 = vand.u32 %v182, 4294901760
    %3283 = vmatpush.msra.mxu0 %v3282
    %v3284 = vand.u32 %v181, 4294901760
    %3285 = vmatpush.msra.mxu0 %v3284
    %v3286 = vand.u32 %v180, 4294901760
    %3287 = vmatpush.msra.mxu0 %v3286
    %v3288 = vand.u32 %v179, 4294901760
    %3289 = vmatpush.msra.mxu0 %v3288
    %v3290 = vand.u32 %v178, 4294901760
    %3291 = vmatpush.msra.mxu0 %v3290
    %v3292 = vand.u32 %v177, 4294901760
    %3293 = vmatpush.msra.mxu0 %v3292
    %v3294 = vand.u32 %v176, 4294901760
    %3295 = vmatpush.msra.mxu0 %v3294
    %v3296 = vand.u32 %v220, 4294901760
    %3297 = vmatmul.f32.gmra.mxu0 %v3296
    %v3298 = vpop.f32.mrf.mxu0
    %v3299 = vadd.f32 %v3262, %v3298
    %3300 = vdwg.mxu0
    %v3301 = vand.u32 %v207, 4294901760
    %3302 = vmatpush.msra.mxu0 %v3301
    %v3303 = vand.u32 %v206, 4294901760
    %3304 = vmatpush.msra.mxu0 %v3303
    %v3305 = vand.u32 %v205, 4294901760
    %3306 = vmatpush.msra.mxu0 %v3305
    %v3307 = vand.u32 %v204, 4294901760
    %3308 = vmatpush.msra.mxu0 %v3307
    %v3309 = vand.u32 %v203, 4294901760
    %3310 = vmatpush.msra.mxu0 %v3309
    %v3311 = vand.u32 %v202, 4294901760
    %3312 = vmatpush.msra.mxu0 %v3311
    %v3313 = vand.u32 %v201, 4294901760
    %3314 = vmatpush.msra.mxu0 %v3313
    %v3315 = vand.u32 %v200, 4294901760
    %3316 = vmatpush.msra.mxu0 %v3315
    %v3317 = vand.u32 %v199, 4294901760
    %3318 = vmatpush.msra.mxu0 %v3317
    %v3319 = vand.u32 %v198, 4294901760
    %3320 = vmatpush.msra.mxu0 %v3319
    %v3321 = vand.u32 %v197, 4294901760
    %3322 = vmatpush.msra.mxu0 %v3321
    %v3323 = vand.u32 %v196, 4294901760
    %3324 = vmatpush.msra.mxu0 %v3323
    %v3325 = vand.u32 %v195, 4294901760
    %3326 = vmatpush.msra.mxu0 %v3325
    %v3327 = vand.u32 %v194, 4294901760
    %3328 = vmatpush.msra.mxu0 %v3327
    %v3329 = vand.u32 %v193, 4294901760
    %3330 = vmatpush.msra.mxu0 %v3329
    %v3331 = vand.u32 %v192, 4294901760
    %3332 = vmatpush.msra.mxu0 %v3331
    %v3333 = vand.u32 %v221, 4294901760
    %v3334 = vsub.f32 %v221, %v3333
    %v3335 = vand.u32 %v3334, 4294901760
    %v3336 = vsub.f32 %v3334, %v3335
    %v3337 = vand.u32 %v3336, 4294901760
    %3338 = vmatmul.f32.gmra.mxu0 %v3337
    %v3339 = vpop.f32.mrf.mxu0
    %v3340 = vadd.f32 %v3299, %v3339
    %3341 = vdwg.mxu0
    %v3342 = vand.u32 %v207, 4294901760
    %v3343 = vsub.f32 %v207, %v3342
    %v3344 = vand.u32 %v3343, 4294901760
    %v3345 = vsub.f32 %v3343, %v3344
    %v3346 = vand.u32 %v3345, 4294901760
    %3347 = vmatpush.msra.mxu0 %v3346
    %v3348 = vand.u32 %v206, 4294901760
    %v3349 = vsub.f32 %v206, %v3348
    %v3350 = vand.u32 %v3349, 4294901760
    %v3351 = vsub.f32 %v3349, %v3350
    %v3352 = vand.u32 %v3351, 4294901760
    %3353 = vmatpush.msra.mxu0 %v3352
    %v3354 = vand.u32 %v205, 4294901760
    %v3355 = vsub.f32 %v205, %v3354
    %v3356 = vand.u32 %v3355, 4294901760
    %v3357 = vsub.f32 %v3355, %v3356
    %v3358 = vand.u32 %v3357, 4294901760
    %3359 = vmatpush.msra.mxu0 %v3358
    %v3360 = vand.u32 %v204, 4294901760
    %v3361 = vsub.f32 %v204, %v3360
    %v3362 = vand.u32 %v3361, 4294901760
    %v3363 = vsub.f32 %v3361, %v3362
    %v3364 = vand.u32 %v3363, 4294901760
    %3365 = vmatpush.msra.mxu0 %v3364
    %v3366 = vand.u32 %v203, 4294901760
    %v3367 = vsub.f32 %v203, %v3366
    %v3368 = vand.u32 %v3367, 4294901760
    %v3369 = vsub.f32 %v3367, %v3368
    %v3370 = vand.u32 %v3369, 4294901760
    %3371 = vmatpush.msra.mxu0 %v3370
    %v3372 = vand.u32 %v202, 4294901760
    %v3373 = vsub.f32 %v202, %v3372
    %v3374 = vand.u32 %v3373, 4294901760
    %v3375 = vsub.f32 %v3373, %v3374
    %v3376 = vand.u32 %v3375, 4294901760
    %3377 = vmatpush.msra.mxu0 %v3376
    %v3378 = vand.u32 %v201, 4294901760
    %v3379 = vsub.f32 %v201, %v3378
    %v3380 = vand.u32 %v3379, 4294901760
    %v3381 = vsub.f32 %v3379, %v3380
    %v3382 = vand.u32 %v3381, 4294901760
    %3383 = vmatpush.msra.mxu0 %v3382
    %v3384 = vand.u32 %v200, 4294901760
    %v3385 = vsub.f32 %v200, %v3384
    %v3386 = vand.u32 %v3385, 4294901760
    %v3387 = vsub.f32 %v3385, %v3386
    %v3388 = vand.u32 %v3387, 4294901760
    %3389 = vmatpush.msra.mxu0 %v3388
    %v3390 = vand.u32 %v199, 4294901760
    %v3391 = vsub.f32 %v199, %v3390
    %v3392 = vand.u32 %v3391, 4294901760
    %v3393 = vsub.f32 %v3391, %v3392
    %v3394 = vand.u32 %v3393, 4294901760
    %3395 = vmatpush.msra.mxu0 %v3394
    %v3396 = vand.u32 %v198, 4294901760
    %v3397 = vsub.f32 %v198, %v3396
    %v3398 = vand.u32 %v3397, 4294901760
    %v3399 = vsub.f32 %v3397, %v3398
    %v3400 = vand.u32 %v3399, 4294901760
    %3401 = vmatpush.msra.mxu0 %v3400
    %v3402 = vand.u32 %v197, 4294901760
    %v3403 = vsub.f32 %v197, %v3402
    %v3404 = vand.u32 %v3403, 4294901760
    %v3405 = vsub.f32 %v3403, %v3404
    %v3406 = vand.u32 %v3405, 4294901760
    %3407 = vmatpush.msra.mxu0 %v3406
    %v3408 = vand.u32 %v196, 4294901760
    %v3409 = vsub.f32 %v196, %v3408
    %v3410 = vand.u32 %v3409, 4294901760
    %v3411 = vsub.f32 %v3409, %v3410
    %v3412 = vand.u32 %v3411, 4294901760
    %3413 = vmatpush.msra.mxu0 %v3412
    %v3414 = vand.u32 %v195, 4294901760
    %v3415 = vsub.f32 %v195, %v3414
    %v3416 = vand.u32 %v3415, 4294901760
    %v3417 = vsub.f32 %v3415, %v3416
    %v3418 = vand.u32 %v3417, 4294901760
    %3419 = vmatpush.msra.mxu0 %v3418
    %v3420 = vand.u32 %v194, 4294901760
    %v3421 = vsub.f32 %v194, %v3420
    %v3422 = vand.u32 %v3421, 4294901760
    %v3423 = vsub.f32 %v3421, %v3422
    %v3424 = vand.u32 %v3423, 4294901760
    %3425 = vmatpush.msra.mxu0 %v3424
    %v3426 = vand.u32 %v193, 4294901760
    %v3427 = vsub.f32 %v193, %v3426
    %v3428 = vand.u32 %v3427, 4294901760
    %v3429 = vsub.f32 %v3427, %v3428
    %v3430 = vand.u32 %v3429, 4294901760
    %3431 = vmatpush.msra.mxu0 %v3430
    %v3432 = vand.u32 %v192, 4294901760
    %v3433 = vsub.f32 %v192, %v3432
    %v3434 = vand.u32 %v3433, 4294901760
    %v3435 = vsub.f32 %v3433, %v3434
    %v3436 = vand.u32 %v3435, 4294901760
    %3437 = vmatpush.msra.mxu0 %v3436
    %v3438 = vand.u32 %v221, 4294901760
    %3439 = vmatmul.f32.gmra.mxu0 %v3438
    %v3440 = vpop.f32.mrf.mxu0
    %v3441 = vadd.f32 %v3340, %v3440
    %3442 = vdwg.mxu0
    %v3443 = vand.u32 %v207, 4294901760
    %v3444 = vsub.f32 %v207, %v3443
    %3445 = vmatpush.msra.mxu0 %v3444
    %v3446 = vand.u32 %v206, 4294901760
    %v3447 = vsub.f32 %v206, %v3446
    %3448 = vmatpush.msra.mxu0 %v3447
    %v3449 = vand.u32 %v205, 4294901760
    %v3450 = vsub.f32 %v205, %v3449
    %3451 = vmatpush.msra.mxu0 %v3450
    %v3452 = vand.u32 %v204, 4294901760
    %v3453 = vsub.f32 %v204, %v3452
    %3454 = vmatpush.msra.mxu0 %v3453
    %v3455 = vand.u32 %v203, 4294901760
    %v3456 = vsub.f32 %v203, %v3455
    %3457 = vmatpush.msra.mxu0 %v3456
    %v3458 = vand.u32 %v202, 4294901760
    %v3459 = vsub.f32 %v202, %v3458
    %3460 = vmatpush.msra.mxu0 %v3459
    %v3461 = vand.u32 %v201, 4294901760
    %v3462 = vsub.f32 %v201, %v3461
    %3463 = vmatpush.msra.mxu0 %v3462
    %v3464 = vand.u32 %v200, 4294901760
    %v3465 = vsub.f32 %v200, %v3464
    %3466 = vmatpush.msra.mxu0 %v3465
    %v3467 = vand.u32 %v199, 4294901760
    %v3468 = vsub.f32 %v199, %v3467
    %3469 = vmatpush.msra.mxu0 %v3468
    %v3470 = vand.u32 %v198, 4294901760
    %v3471 = vsub.f32 %v198, %v3470
    %3472 = vmatpush.msra.mxu0 %v3471
    %v3473 = vand.u32 %v197, 4294901760
    %v3474 = vsub.f32 %v197, %v3473
    %3475 = vmatpush.msra.mxu0 %v3474
    %v3476 = vand.u32 %v196, 4294901760
    %v3477 = vsub.f32 %v196, %v3476
    %3478 = vmatpush.msra.mxu0 %v3477
    %v3479 = vand.u32 %v195, 4294901760
    %v3480 = vsub.f32 %v195, %v3479
    %3481 = vmatpush.msra.mxu0 %v3480
    %v3482 = vand.u32 %v194, 4294901760
    %v3483 = vsub.f32 %v194, %v3482
    %3484 = vmatpush.msra.mxu0 %v3483
    %v3485 = vand.u32 %v193, 4294901760
    %v3486 = vsub.f32 %v193, %v3485
    %3487 = vmatpush.msra.mxu0 %v3486
    %v3488 = vand.u32 %v192, 4294901760
    %v3489 = vsub.f32 %v192, %v3488
    %3490 = vmatpush.msra.mxu0 %v3489
    %v3491 = vand.u32 %v221, 4294901760
    %v3492 = vsub.f32 %v221, %v3491
    %3493 = vmatmul.f32.gmra.mxu0 %v3492
    %v3494 = vpop.f32.mrf.mxu0
    %v3495 = vadd.f32 %v3441, %v3494
    %3496 = vdwg.mxu0
    %v3497 = vand.u32 %v207, 4294901760
    %3498 = vmatpush.msra.mxu0 %v3497
    %v3499 = vand.u32 %v206, 4294901760
    %3500 = vmatpush.msra.mxu0 %v3499
    %v3501 = vand.u32 %v205, 4294901760
    %3502 = vmatpush.msra.mxu0 %v3501
    %v3503 = vand.u32 %v204, 4294901760
    %3504 = vmatpush.msra.mxu0 %v3503
    %v3505 = vand.u32 %v203, 4294901760
    %3506 = vmatpush.msra.mxu0 %v3505
    %v3507 = vand.u32 %v202, 4294901760
    %3508 = vmatpush.msra.mxu0 %v3507
    %v3509 = vand.u32 %v201, 4294901760
    %3510 = vmatpush.msra.mxu0 %v3509
    %v3511 = vand.u32 %v200, 4294901760
    %3512 = vmatpush.msra.mxu0 %v3511
    %v3513 = vand.u32 %v199, 4294901760
    %3514 = vmatpush.msra.mxu0 %v3513
    %v3515 = vand.u32 %v198, 4294901760
    %3516 = vmatpush.msra.mxu0 %v3515
    %v3517 = vand.u32 %v197, 4294901760
    %3518 = vmatpush.msra.mxu0 %v3517
    %v3519 = vand.u32 %v196, 4294901760
    %3520 = vmatpush.msra.mxu0 %v3519
    %v3521 = vand.u32 %v195, 4294901760
    %3522 = vmatpush.msra.mxu0 %v3521
    %v3523 = vand.u32 %v194, 4294901760
    %3524 = vmatpush.msra.mxu0 %v3523
    %v3525 = vand.u32 %v193, 4294901760
    %3526 = vmatpush.msra.mxu0 %v3525
    %v3527 = vand.u32 %v192, 4294901760
    %3528 = vmatpush.msra.mxu0 %v3527
    %v3529 = vand.u32 %v221, 4294901760
    %v3530 = vsub.f32 %v221, %v3529
    %v3531 = vand.u32 %v3530, 4294901760
    %3532 = vmatmul.f32.gmra.mxu0 %v3531
    %v3533 = vpop.f32.mrf.mxu0
    %v3534 = vadd.f32 %v3495, %v3533
    %3535 = vdwg.mxu0
    %v3536 = vand.u32 %v207, 4294901760
    %v3537 = vsub.f32 %v207, %v3536
    %v3538 = vand.u32 %v3537, 4294901760
    %3539 = vmatpush.msra.mxu0 %v3538
    %v3540 = vand.u32 %v206, 4294901760
    %v3541 = vsub.f32 %v206, %v3540
    %v3542 = vand.u32 %v3541, 4294901760
    %3543 = vmatpush.msra.mxu0 %v3542
    %v3544 = vand.u32 %v205, 4294901760
    %v3545 = vsub.f32 %v205, %v3544
    %v3546 = vand.u32 %v3545, 4294901760
    %3547 = vmatpush.msra.mxu0 %v3546
    %v3548 = vand.u32 %v204, 4294901760
    %v3549 = vsub.f32 %v204, %v3548
    %v3550 = vand.u32 %v3549, 4294901760
    %3551 = vmatpush.msra.mxu0 %v3550
    %v3552 = vand.u32 %v203, 4294901760
    %v3553 = vsub.f32 %v203, %v3552
    %v3554 = vand.u32 %v3553, 4294901760
    %3555 = vmatpush.msra.mxu0 %v3554
    %v3556 = vand.u32 %v202, 4294901760
    %v3557 = vsub.f32 %v202, %v3556
    %v3558 = vand.u32 %v3557, 4294901760
    %3559 = vmatpush.msra.mxu0 %v3558
    %v3560 = vand.u32 %v201, 4294901760
    %v3561 = vsub.f32 %v201, %v3560
    %v3562 = vand.u32 %v3561, 4294901760
    %3563 = vmatpush.msra.mxu0 %v3562
    %v3564 = vand.u32 %v200, 4294901760
    %v3565 = vsub.f32 %v200, %v3564
    %v3566 = vand.u32 %v3565, 4294901760
    %3567 = vmatpush.msra.mxu0 %v3566
    %v3568 = vand.u32 %v199, 4294901760
    %v3569 = vsub.f32 %v199, %v3568
    %v3570 = vand.u32 %v3569, 4294901760
    %3571 = vmatpush.msra.mxu0 %v3570
    %v3572 = vand.u32 %v198, 4294901760
    %v3573 = vsub.f32 %v198, %v3572
    %v3574 = vand.u32 %v3573, 4294901760
    %3575 = vmatpush.msra.mxu0 %v3574
    %v3576 = vand.u32 %v197, 4294901760
    %v3577 = vsub.f32 %v197, %v3576
    %v3578 = vand.u32 %v3577, 4294901760
    %3579 = vmatpush.msra.mxu0 %v3578
    %v3580 = vand.u32 %v196, 4294901760
    %v3581 = vsub.f32 %v196, %v3580
    %v3582 = vand.u32 %v3581, 4294901760
    %3583 = vmatpush.msra.mxu0 %v3582
    %v3584 = vand.u32 %v195, 4294901760
    %v3585 = vsub.f32 %v195, %v3584
    %v3586 = vand.u32 %v3585, 4294901760
    %3587 = vmatpush.msra.mxu0 %v3586
    %v3588 = vand.u32 %v194, 4294901760
    %v3589 = vsub.f32 %v194, %v3588
    %v3590 = vand.u32 %v3589, 4294901760
    %3591 = vmatpush.msra.mxu0 %v3590
    %v3592 = vand.u32 %v193, 4294901760
    %v3593 = vsub.f32 %v193, %v3592
    %v3594 = vand.u32 %v3593, 4294901760
    %3595 = vmatpush.msra.mxu0 %v3594
    %v3596 = vand.u32 %v192, 4294901760
    %v3597 = vsub.f32 %v192, %v3596
    %v3598 = vand.u32 %v3597, 4294901760
    %3599 = vmatpush.msra.mxu0 %v3598
    %v3600 = vand.u32 %v221, 4294901760
    %3601 = vmatmul.f32.gmra.mxu0 %v3600
    %v3602 = vpop.f32.mrf.mxu0
    %v3603 = vadd.f32 %v3534, %v3602
    %3604 = vdwg.mxu0
    %v3605 = vand.u32 %v207, 4294901760
    %3606 = vmatpush.msra.mxu0 %v3605
    %v3607 = vand.u32 %v206, 4294901760
    %3608 = vmatpush.msra.mxu0 %v3607
    %v3609 = vand.u32 %v205, 4294901760
    %3610 = vmatpush.msra.mxu0 %v3609
    %v3611 = vand.u32 %v204, 4294901760
    %3612 = vmatpush.msra.mxu0 %v3611
    %v3613 = vand.u32 %v203, 4294901760
    %3614 = vmatpush.msra.mxu0 %v3613
    %v3615 = vand.u32 %v202, 4294901760
    %3616 = vmatpush.msra.mxu0 %v3615
    %v3617 = vand.u32 %v201, 4294901760
    %3618 = vmatpush.msra.mxu0 %v3617
    %v3619 = vand.u32 %v200, 4294901760
    %3620 = vmatpush.msra.mxu0 %v3619
    %v3621 = vand.u32 %v199, 4294901760
    %3622 = vmatpush.msra.mxu0 %v3621
    %v3623 = vand.u32 %v198, 4294901760
    %3624 = vmatpush.msra.mxu0 %v3623
    %v3625 = vand.u32 %v197, 4294901760
    %3626 = vmatpush.msra.mxu0 %v3625
    %v3627 = vand.u32 %v196, 4294901760
    %3628 = vmatpush.msra.mxu0 %v3627
    %v3629 = vand.u32 %v195, 4294901760
    %3630 = vmatpush.msra.mxu0 %v3629
    %v3631 = vand.u32 %v194, 4294901760
    %3632 = vmatpush.msra.mxu0 %v3631
    %v3633 = vand.u32 %v193, 4294901760
    %3634 = vmatpush.msra.mxu0 %v3633
    %v3635 = vand.u32 %v192, 4294901760
    %3636 = vmatpush.msra.mxu0 %v3635
    %v3637 = vand.u32 %v221, 4294901760
    %3638 = vmatmul.f32.gmra.mxu0 %v3637
    %v3639 = vpop.f32.mrf.mxu0
    %v3640 = vadd.f32 %v3603, %v3639
    %3641 = vdwg.mxu0
    %3642 = vst [vmem:[#allocation8] sm:$0x1] %v3640
    // Predicated region
    $region22: #{tpu_custom_call.1} parent=1 // pred_check
      _
    $region23: #{tpu_custom_call.1} parent=1 // pred_check_branch
      %3644 = sbr.rel (0) target = $region25
    $region24: #{tpu_custom_call.1} parent=1 // pred_region
      %3646 = vsyncadd [#allocation5], 0
      %s3648 = sshll.u32 [#allocation8], 4
      %s3649 = int_to_ptr.vmem [resolvable:$true] %s3648
      %s3650 = sshll.u32 %s3, 4
      %s3651 = int_to_ptr.hbm [resolvable:$true] %s3650
      %3653 = dma.vmem_to_hbm [thread:$0]  %s3649, 16, %s3651, [#allocation5]
    $region25: #{tpu_custom_call.1} parent=1 // pred_fallthru
      _
    // Predicated region
    $region26: #{tpu_custom_call.1} parent=1 // pred_check
      _
    $region27: #{tpu_custom_call.1} parent=1 // pred_check_branch
      %3655 = sbr.rel (0) target = $region29
    $region28: #{tpu_custom_call.1} parent=1 // pred_region
      %3657 = dma.done [#allocation5], 16
    $region29: #{tpu_custom_call.1} parent=1 // pred_fallthru
      _
    %3658 = vsyncpa [#allocation4], 1
    %3659 = vsyncpa [#allocation7], 1
    %3660 = vsyncpa [#allocation5], 1

</llo_original>
